<compile_context>
chip_gen: v7x
topology: tpu7x:2x2x1
jax: 0.10.0
libtpu: 0.0.40
codegen_flags: <defaults>
</compile_context>

<pallas_src>
import jax
import jax.numpy as jnp
import numpy as np
from jax import lax
from jax.experimental import pallas as pl
from jax.experimental.pallas import tpu as pltpu

_WEIGHT_ORDER = ("wb1", "bb1", "a1", "r1",
                 "wb2", "bb2", "a2", "r2",
                 "w3", "b3", "w4", "b4", "w5", "b5")


# ------------------------------ Pallas kernel -------------------------------

def _lenet5_kernel(x_ref,
                   wb1_ref, bb1_ref, a1_ref, r1_ref,
                   wb2_ref, bb2_ref, a2_ref, r2_ref,
                   w3_ref, b3_ref, w4_ref, b4_ref, w5_ref, b5_ref,
                   o_ref):
    f32, bf16 = jnp.float32, jnp.bfloat16

    # ---- conv1: 5x5, pad=2 (input pre-padded to 32x32), 1 -> 6, tanh ------
    # y1[i, c*28 + j] = tanh(b1[c] + sum_{di,dj} x[i+di, j+dj] * K1[c,di,dj])
    x = x_ref[0]                                            # (32, 32) bf16
    acc1 = jnp.zeros((28, 6 * 28), f32)
    for di in range(5):
        acc1 = acc1 + jnp.dot(x[di:di + 28, :], wb1_ref[di],
                              preferred_element_type=f32)
    y1 = jnp.tanh(acc1 + bb1_ref[...])                      # (28, 168) f32

    # ---- avgpool 2x2 / stride 2 (two matmuls, stays in VMEM) --------------
    t1 = jnp.dot(a1_ref[...], y1.astype(bf16), preferred_element_type=f32)
    p1 = jnp.dot(t1.astype(bf16), r1_ref[...], preferred_element_type=f32)
    # p1[p, c*14 + q] = pooled conv1 channel c at (p, q)     (14, 84) f32

    # ---- conv2: 5x5, 6 -> 16, tanh ----------------------------------------
    p1b = p1.astype(bf16)
    acc2 = jnp.zeros((10, 16 * 10), f32)
    for ci in range(6):
        plane = p1b[:, ci * 14:(ci + 1) * 14]               # (14, 14)
        for di in range(5):
            acc2 = acc2 + jnp.dot(plane[di:di + 10, :],
                                  wb2_ref[ci * 5 + di],
                                  preferred_element_type=f32)
    y2 = jnp.tanh(acc2 + bb2_ref[...])                      # (10, 160) f32

    # ---- avgpool 2x2 / stride 2 -------------------------------------------
    t2 = jnp.dot(a2_ref[...], y2.astype(bf16), preferred_element_type=f32)
    p2 = jnp.dot(t2.astype(bf16), r2_ref[...], preferred_element_type=f32)
    # p2[p, o*5 + q] = pooled conv2 channel o at (p, q)      (5, 80) f32

    # ---- conv3: 5x5 on 5x5 -> 120 features, tanh ---------------------------
    p2b = p2.astype(bf16)
    acc3 = jnp.zeros((1, 120), f32)
    for p in range(5):
        acc3 = acc3 + jnp.dot(p2b[p:p + 1, :], w3_ref[p],
                              preferred_element_type=f32)
    h3 = jnp.tanh(acc3 + b3_ref[...])                       # (1, 120) f32

    # ---- fc4 (tanh) + fc5 ---------------------------------------------------
    h4 = jnp.tanh(jnp.dot(h3.astype(bf16), w4_ref[...],
                          preferred_element_type=f32) + b4_ref[...])   # (1, 84)
    logits = jnp.dot(h4.astype(bf16), w5_ref[...],
                     preferred_element_type=f32) + b5_ref[...]         # (1, 10)
    o_ref[0] = logits


# ------------------------------ wrapper --------------------------------------

def _full_block(arr):
    zero = (0,) * arr.ndim
    return pl.BlockSpec(arr.shape, lambda b: zero)


def lenet5_forward(x_nchw, prep):
    B = x_nchw.shape[0]
    # NCHW (Cin=1) -> zero-padded (B, 32, 32) bf16 image planes.
    x = jnp.pad(x_nchw[:, 0, :, :].astype(jnp.float32),
                ((0, 0), (2, 2), (2, 2))).astype(jnp.bfloat16)

    weights = [prep[k] for k in _WEIGHT_ORDER]
    out = pl.pallas_call(
        _lenet5_kernel,
        out_shape=jax.ShapeDtypeStruct((B, 1, 10), jnp.float32),
        grid=(B,),
        in_specs=[pl.BlockSpec((1, 32, 32), lambda b: (b, 0, 0))]
                 + [_full_block(w) for w in weights],
        out_specs=pl.BlockSpec((1, 1, 10), lambda b: (b, 0, 0)),
        compiler_params=pltpu.CompilerParams(
            dimension_semantics=("parallel",),
            vmem_limit_bytes=32 * 1024 * 1024),
    )(x, *weights)
    return out.reshape(B, 10)


# ------------------------- one-time weight preparation -----------------------

def prepare_params(params):
    """Banded conv matrices, pooling matrices, FC transposes (done once)."""
    f32, bf16 = jnp.float32, jnp.bfloat16

    def shift_basis(in_w, out_w):
        # s[dj, w, j] = 1 iff w == j + dj   (the 5 kernel-column shifts)
        s = np.zeros((5, in_w, out_w), np.float32)
        for dj in range(5):
            for j in range(out_w):
                s[dj, j + dj, j] = 1.0
        return s

    def row_pool(out_len):
        # a[p, h] = 1 iff h in {2p, 2p+1}   (2x2 / stride-2 pooling, one axis)
        a = np.zeros((out_len, 2 * out_len), np.float32)
        for p in range(out_len):
            a[p, 2 * p] = 1.0
            a[p, 2 * p + 1] = 1.0
        return a

    # conv1 banded weights: Wb1[di][w, c*28+j] = K1[c, di, w-j]
    k1 = params["w1"][:, 0, :, :]                                   # (6, 5, 5)
    wb1 = jnp.einsum("cde,ewj->dwcj", k1,
                     shift_basis(32, 28)).reshape(5, 32, 6 * 28)
    bb1 = jnp.repeat(params["b1"], 28).reshape(1, 6 * 28)

    a1 = row_pool(14)                                               # (14, 28)
    r1 = 0.25 * np.kron(np.eye(6, dtype=np.float32), a1.T)          # (168, 84)

    # conv2 banded weights: Wb2[ci*5+di][w, o*10+j] = K2[o, ci, di, w-j]
    wb2 = jnp.einsum("ocde,ewj->cdwoj", params["w2"],
                     shift_basis(14, 10)).reshape(30, 14, 16 * 10)
    bb2 = jnp.repeat(params["b2"], 10).reshape(1, 16 * 10)

    a2 = row_pool(5)                                                # (5, 10)
    r2 = 0.25 * np.kron(np.eye(16, dtype=np.float32), a2.T)         # (160, 80)

    # conv3 as 5 matmuls: W3[p][c*5+q, o] = K3[o, c, p, q]
    w3 = jnp.transpose(params["w3"], (2, 1, 3, 0)).reshape(5, 16 * 5, 120)
    b3 = params["b3"].reshape(1, 120)

    w4 = params["w4"].T                                             # (120, 84)
    b4 = params["b4"].reshape(1, 84)
    w5 = params["w5"].T                                             # (84, 10)
    b5 = params["b5"].reshape(1, 10)

    return {
        "wb1": wb1.astype(bf16), "bb1": bb1.astype(f32),
        "a1": jnp.asarray(a1, bf16), "r1": jnp.asarray(r1, bf16),
        "wb2": wb2.astype(bf16), "bb2": bb2.astype(f32),
        "a2": jnp.asarray(a2, bf16), "r2": jnp.asarray(r2, bf16),
        "w3": w3.astype(bf16), "b3": b3.astype(f32),
        "w4": w4.astype(bf16), "b4": b4.astype(f32),
        "w5": w5.astype(bf16), "b5": b5.astype(f32),
    }


# --------------------------- deterministic params ----------------------------

def init_params(key):
    keys = jax.random.split(key, 10)

    def u(k, shape, fan_in):
        bound = 1.0 / (fan_in ** 0.5)   # PyTorch default init bound
        return jax.random.uniform(k, shape, jnp.float32, -bound, bound)

    return {
        "w1": u(keys[0], (6, 1, 5, 5), 1 * 25),
        "b1": u(keys[1], (6,), 1 * 25),
        "w2": u(keys[2], (16, 6, 5, 5), 6 * 25),
        "b2": u(keys[3], (16,), 6 * 25),
        "w3": u(keys[4], (120, 16, 5, 5), 16 * 25),
        "b3": u(keys[5], (120,), 16 * 25),
        "w4": u(keys[6], (84, 120), 120),   # Linear(120, 84) weight (out, in)
        "b4": u(keys[7], (84,), 120),
        "w5": u(keys[8], (10, 84), 84),     # Linear(84, 10) weight (out, in)
        "b5": u(keys[9], (10,), 84),
    }


# ------------------------------ XLA reference --------------------------------

def lenet5_reference(x_nchw, params):
    """Pure-XLA f32 reference for a numerical sanity check."""
    def conv(x, w, b, pad):
        y = lax.conv_general_dilated(
            x, w, window_strides=(1, 1), padding=[(pad, pad), (pad, pad)],
            dimension_numbers=("NCHW", "OIHW", "NCHW"))
        return jnp.tanh(y + b[None, :, None, None])

    def pool(x):
        return 0.25 * (x[:, :, 0::2, 0::2] + x[:, :, 0::2, 1::2]
                       + x[:, :, 1::2, 0::2] + x[:, :, 1::2, 1::2])

    x = x_nchw.astype(jnp.float32)
    x = pool(conv(x, params["w1"], params["b1"], 2))
    x = pool(conv(x, params["w2"], params["b2"], 0))
    x = conv(x, params["w3"], params["b3"], 0)
    x = x.reshape(x.shape[0], 120)
    x = jnp.tanh(x @ params["w4"].T + params["b4"])
    return x @ params["w5"].T + params["b5"]


if __name__ == "__main__":
    key = jax.random.PRNGKey(0)
    kx, kp = jax.random.split(key)
    # LeNet-5's Linear(120, 84) after the 5x5 conv stack implies 28x28 input.
    x = jax.random.normal(kx, (2, 1, 28, 28), dtype=jnp.float32)
    params = init_params(kp)
    prep = prepare_params(params)

    y = jax.jit(lenet5_forward)(x, prep)
    y = jax.block_until_ready(y)
    assert y.shape == (2, 10) and y.dtype == jnp.float32

    # Loose tolerance: the kernel uses bf16 MXU operands with f32 accumulation.
    y_ref = lenet5_reference(x, params)
    max_err = float(jnp.max(jnp.abs(y - y_ref)))
    assert max_err < 0.1, f"mismatch vs reference: max |err| = {max_err}"
    print("KERNEL_OK")
</pallas_src>

<mosaic_0001>
module attributes {stable_mosaic.version = 11 : i64} {
  func.func @_lenet5_kernel(%arg0: i32, %arg1: memref<1x32x32xbf16, #tpu.memory_space<vmem>>, %arg2: memref<5x32x168xbf16, #tpu.memory_space<vmem>>, %arg3: memref<1x168xf32, #tpu.memory_space<vmem>>, %arg4: memref<14x28xbf16, #tpu.memory_space<vmem>>, %arg5: memref<168x84xbf16, #tpu.memory_space<vmem>>, %arg6: memref<30x14x160xbf16, #tpu.memory_space<vmem>>, %arg7: memref<1x160xf32, #tpu.memory_space<vmem>>, %arg8: memref<5x10xbf16, #tpu.memory_space<vmem>>, %arg9: memref<160x80xbf16, #tpu.memory_space<vmem>>, %arg10: memref<5x80x120xbf16, #tpu.memory_space<vmem>>, %arg11: memref<1x120xf32, #tpu.memory_space<vmem>>, %arg12: memref<120x84xbf16, #tpu.memory_space<vmem>>, %arg13: memref<1x84xf32, #tpu.memory_space<vmem>>, %arg14: memref<84x10xbf16, #tpu.memory_space<vmem>>, %arg15: memref<1x10xf32, #tpu.memory_space<vmem>>, %arg16: memref<1x1x10xf32, #tpu.memory_space<vmem>>) attributes {dimension_semantics = [#tpu.dimension_semantics<parallel>], iteration_bounds = array<i64: 2>, scalar_prefetch = 0 : i64, scratch_operands = 0 : i64, tpu.core_type = #tpu.core_type<tc>, window_params = [{transform_indices = @transform_0, window_bounds = array<i64: 1, 32, 32>}, {pipeline_mode = #tpu.pipeline_mode<synchronous>, transform_indices = @transform_1, window_bounds = array<i64: 5, 32, 168>}, {pipeline_mode = #tpu.pipeline_mode<synchronous>, transform_indices = @transform_2, window_bounds = array<i64: 1, 168>}, {pipeline_mode = #tpu.pipeline_mode<synchronous>, transform_indices = @transform_3, window_bounds = array<i64: 14, 28>}, {pipeline_mode = #tpu.pipeline_mode<synchronous>, transform_indices = @transform_4, window_bounds = array<i64: 168, 84>}, {pipeline_mode = #tpu.pipeline_mode<synchronous>, transform_indices = @transform_5, window_bounds = array<i64: 30, 14, 160>}, {pipeline_mode = #tpu.pipeline_mode<synchronous>, transform_indices = @transform_6, window_bounds = array<i64: 1, 160>}, {pipeline_mode = #tpu.pipeline_mode<synchronous>, transform_indices = @transform_7, window_bounds = array<i64: 5, 10>}, {pipeline_mode = #tpu.pipeline_mode<synchronous>, transform_indices = @transform_8, window_bounds = array<i64: 160, 80>}, {pipeline_mode = #tpu.pipeline_mode<synchronous>, transform_indices = @transform_9, window_bounds = array<i64: 5, 80, 120>}, {pipeline_mode = #tpu.pipeline_mode<synchronous>, transform_indices = @transform_10, window_bounds = array<i64: 1, 120>}, {pipeline_mode = #tpu.pipeline_mode<synchronous>, transform_indices = @transform_11, window_bounds = array<i64: 120, 84>}, {pipeline_mode = #tpu.pipeline_mode<synchronous>, transform_indices = @transform_12, window_bounds = array<i64: 1, 84>}, {pipeline_mode = #tpu.pipeline_mode<synchronous>, transform_indices = @transform_13, window_bounds = array<i64: 84, 10>}, {pipeline_mode = #tpu.pipeline_mode<synchronous>, transform_indices = @transform_14, window_bounds = array<i64: 1, 10>}, {transform_indices = @transform_15, window_bounds = array<i64: 1, 1, 10>}]} {
    %c0 = arith.constant 0 : index
    %c0_0 = arith.constant 0 : index
    %c0_1 = arith.constant 0 : index
    %0 = vector.load %arg1[%c0, %c0_0, %c0_1] : memref<1x32x32xbf16, #tpu.memory_space<vmem>>, vector<1x32x32xbf16>
    %1 = vector.shape_cast %0 : vector<1x32x32xbf16> to vector<32x32xbf16>
    %cst = arith.constant 0.000000e+00 : f32
    %2 = vector.broadcast %cst : f32 to vector<28x168xf32>
    %3 = vector.extract_strided_slice %1 {offsets = [0, 0], sizes = [28, 32], strides = [1, 1]} : vector<32x32xbf16> to vector<28x32xbf16>
    %c0_2 = arith.constant 0 : index
    %c0_3 = arith.constant 0 : index
    %c0_4 = arith.constant 0 : index
    %4 = vector.load %arg2[%c0_2, %c0_3, %c0_4] : memref<5x32x168xbf16, #tpu.memory_space<vmem>>, vector<1x32x168xbf16>
    %5 = vector.shape_cast %4 : vector<1x32x168xbf16> to vector<32x168xbf16>
    %cst_5 = arith.constant dense<0.000000e+00> : vector<28x168xf32>
    %6 = tpu.matmul %3, %5, %cst_5 {dimension_numbers = #tpu.dot_dimension_numbers<[1], [0], [0], [1], [0, 0, 1, 1], [], []>} : vector<28x32xbf16>, vector<32x168xbf16>, vector<28x168xf32> -> vector<28x168xf32>
    %7 = arith.addf %2, %6 : vector<28x168xf32>
    %8 = vector.extract_strided_slice %1 {offsets = [1, 0], sizes = [28, 32], strides = [1, 1]} : vector<32x32xbf16> to vector<28x32xbf16>
    %c1 = arith.constant 1 : index
    %c0_6 = arith.constant 0 : index
    %c0_7 = arith.constant 0 : index
    %9 = vector.load %arg2[%c1, %c0_6, %c0_7] : memref<5x32x168xbf16, #tpu.memory_space<vmem>>, vector<1x32x168xbf16>
    %10 = vector.shape_cast %9 : vector<1x32x168xbf16> to vector<32x168xbf16>
    %cst_8 = arith.constant dense<0.000000e+00> : vector<28x168xf32>
    %11 = tpu.matmul %8, %10, %cst_8 {dimension_numbers = #tpu.dot_dimension_numbers<[1], [0], [0], [1], [0, 0, 1, 1], [], []>} : vector<28x32xbf16>, vector<32x168xbf16>, vector<28x168xf32> -> vector<28x168xf32>
    %12 = arith.addf %7, %11 : vector<28x168xf32>
    %13 = vector.extract_strided_slice %1 {offsets = [2, 0], sizes = [28, 32], strides = [1, 1]} : vector<32x32xbf16> to vector<28x32xbf16>
    %c2 = arith.constant 2 : index
    %c0_9 = arith.constant 0 : index
    %c0_10 = arith.constant 0 : index
    %14 = vector.load %arg2[%c2, %c0_9, %c0_10] : memref<5x32x168xbf16, #tpu.memory_space<vmem>>, vector<1x32x168xbf16>
    %15 = vector.shape_cast %14 : vector<1x32x168xbf16> to vector<32x168xbf16>
    %cst_11 = arith.constant dense<0.000000e+00> : vector<28x168xf32>
    %16 = tpu.matmul %13, %15, %cst_11 {dimension_numbers = #tpu.dot_dimension_numbers<[1], [0], [0], [1], [0, 0, 1, 1], [], []>} : vector<28x32xbf16>, vector<32x168xbf16>, vector<28x168xf32> -> vector<28x168xf32>
    %17 = arith.addf %12, %16 : vector<28x168xf32>
    %18 = vector.extract_strided_slice %1 {offsets = [3, 0], sizes = [28, 32], strides = [1, 1]} : vector<32x32xbf16> to vector<28x32xbf16>
    %c3 = arith.constant 3 : index
    %c0_12 = arith.constant 0 : index
    %c0_13 = arith.constant 0 : index
    %19 = vector.load %arg2[%c3, %c0_12, %c0_13] : memref<5x32x168xbf16, #tpu.memory_space<vmem>>, vector<1x32x168xbf16>
    %20 = vector.shape_cast %19 : vector<1x32x168xbf16> to vector<32x168xbf16>
    %cst_14 = arith.constant dense<0.000000e+00> : vector<28x168xf32>
    %21 = tpu.matmul %18, %20, %cst_14 {dimension_numbers = #tpu.dot_dimension_numbers<[1], [0], [0], [1], [0, 0, 1, 1], [], []>} : vector<28x32xbf16>, vector<32x168xbf16>, vector<28x168xf32> -> vector<28x168xf32>
    %22 = arith.addf %17, %21 : vector<28x168xf32>
    %23 = vector.extract_strided_slice %1 {offsets = [4, 0], sizes = [28, 32], strides = [1, 1]} : vector<32x32xbf16> to vector<28x32xbf16>
    %c4 = arith.constant 4 : index
    %c0_15 = arith.constant 0 : index
    %c0_16 = arith.constant 0 : index
    %24 = vector.load %arg2[%c4, %c0_15, %c0_16] : memref<5x32x168xbf16, #tpu.memory_space<vmem>>, vector<1x32x168xbf16>
    %25 = vector.shape_cast %24 : vector<1x32x168xbf16> to vector<32x168xbf16>
    %cst_17 = arith.constant dense<0.000000e+00> : vector<28x168xf32>
    %26 = tpu.matmul %23, %25, %cst_17 {dimension_numbers = #tpu.dot_dimension_numbers<[1], [0], [0], [1], [0, 0, 1, 1], [], []>} : vector<28x32xbf16>, vector<32x168xbf16>, vector<28x168xf32> -> vector<28x168xf32>
    %27 = arith.addf %22, %26 : vector<28x168xf32>
    %c0_18 = arith.constant 0 : index
    %c0_19 = arith.constant 0 : index
    %28 = vector.load %arg3[%c0_18, %c0_19] : memref<1x168xf32, #tpu.memory_space<vmem>>, vector<1x168xf32>
    %29 = vector.broadcast %28 : vector<1x168xf32> to vector<28x168xf32>
    %30 = arith.addf %27, %29 : vector<28x168xf32>
    %31 = math.tanh %30 : vector<28x168xf32>
    %c0_20 = arith.constant 0 : index
    %c0_21 = arith.constant 0 : index
    %32 = vector.load %arg4[%c0_20, %c0_21] : memref<14x28xbf16, #tpu.memory_space<vmem>>, vector<14x28xbf16>
    %33 = arith.truncf %31 : vector<28x168xf32> to vector<28x168xbf16>
    %cst_22 = arith.constant dense<0.000000e+00> : vector<14x168xf32>
    %34 = tpu.matmul %32, %33, %cst_22 {dimension_numbers = #tpu.dot_dimension_numbers<[1], [0], [0], [1], [0, 0, 1, 1], [], []>} : vector<14x28xbf16>, vector<28x168xbf16>, vector<14x168xf32> -> vector<14x168xf32>
    %35 = arith.truncf %34 : vector<14x168xf32> to vector<14x168xbf16>
    %c0_23 = arith.constant 0 : index
    %c0_24 = arith.constant 0 : index
    %36 = vector.load %arg5[%c0_23, %c0_24] : memref<168x84xbf16, #tpu.memory_space<vmem>>, vector<168x84xbf16>
    %cst_25 = arith.constant dense<0.000000e+00> : vector<14x84xf32>
    %37 = tpu.matmul %35, %36, %cst_25 {dimension_numbers = #tpu.dot_dimension_numbers<[1], [0], [0], [1], [0, 0, 1, 1], [], []>} : vector<14x168xbf16>, vector<168x84xbf16>, vector<14x84xf32> -> vector<14x84xf32>
    %38 = arith.truncf %37 : vector<14x84xf32> to vector<14x84xbf16>
    %cst_26 = arith.constant 0.000000e+00 : f32
    %39 = vector.broadcast %cst_26 : f32 to vector<10x160xf32>
    %40 = vector.extract_strided_slice %38 {offsets = [0, 0], sizes = [14, 14], strides = [1, 1]} : vector<14x84xbf16> to vector<14x14xbf16>
    %41 = vector.extract_strided_slice %40 {offsets = [0, 0], sizes = [10, 14], strides = [1, 1]} : vector<14x14xbf16> to vector<10x14xbf16>
    %c0_27 = arith.constant 0 : index
    %c0_28 = arith.constant 0 : index
    %c0_29 = arith.constant 0 : index
    %42 = vector.load %arg6[%c0_27, %c0_28, %c0_29] : memref<30x14x160xbf16, #tpu.memory_space<vmem>>, vector<1x14x160xbf16>
    %43 = vector.shape_cast %42 : vector<1x14x160xbf16> to vector<14x160xbf16>
    %cst_30 = arith.constant dense<0.000000e+00> : vector<10x160xf32>
    %44 = tpu.matmul %41, %43, %cst_30 {dimension_numbers = #tpu.dot_dimension_numbers<[1], [0], [0], [1], [0, 0, 1, 1], [], []>} : vector<10x14xbf16>, vector<14x160xbf16>, vector<10x160xf32> -> vector<10x160xf32>
    %45 = arith.addf %39, %44 : vector<10x160xf32>
    %46 = vector.extract_strided_slice %40 {offsets = [1, 0], sizes = [10, 14], strides = [1, 1]} : vector<14x14xbf16> to vector<10x14xbf16>
    %c1_31 = arith.constant 1 : index
    %c0_32 = arith.constant 0 : index
    %c0_33 = arith.constant 0 : index
    %47 = vector.load %arg6[%c1_31, %c0_32, %c0_33] : memref<30x14x160xbf16, #tpu.memory_space<vmem>>, vector<1x14x160xbf16>
    %48 = vector.shape_cast %47 : vector<1x14x160xbf16> to vector<14x160xbf16>
    %cst_34 = arith.constant dense<0.000000e+00> : vector<10x160xf32>
    %49 = tpu.matmul %46, %48, %cst_34 {dimension_numbers = #tpu.dot_dimension_numbers<[1], [0], [0], [1], [0, 0, 1, 1], [], []>} : vector<10x14xbf16>, vector<14x160xbf16>, vector<10x160xf32> -> vector<10x160xf32>
    %50 = arith.addf %45, %49 : vector<10x160xf32>
    %51 = vector.extract_strided_slice %40 {offsets = [2, 0], sizes = [10, 14], strides = [1, 1]} : vector<14x14xbf16> to vector<10x14xbf16>
    %c2_35 = arith.constant 2 : index
    %c0_36 = arith.constant 0 : index
    %c0_37 = arith.constant 0 : index
    %52 = vector.load %arg6[%c2_35, %c0_36, %c0_37] : memref<30x14x160xbf16, #tpu.memory_space<vmem>>, vector<1x14x160xbf16>
    %53 = vector.shape_cast %52 : vector<1x14x160xbf16> to vector<14x160xbf16>
    %cst_38 = arith.constant dense<0.000000e+00> : vector<10x160xf32>
    %54 = tpu.matmul %51, %53, %cst_38 {dimension_numbers = #tpu.dot_dimension_numbers<[1], [0], [0], [1], [0, 0, 1, 1], [], []>} : vector<10x14xbf16>, vector<14x160xbf16>, vector<10x160xf32> -> vector<10x160xf32>
    %55 = arith.addf %50, %54 : vector<10x160xf32>
    %56 = vector.extract_strided_slice %40 {offsets = [3, 0], sizes = [10, 14], strides = [1, 1]} : vector<14x14xbf16> to vector<10x14xbf16>
    %c3_39 = arith.constant 3 : index
    %c0_40 = arith.constant 0 : index
    %c0_41 = arith.constant 0 : index
    %57 = vector.load %arg6[%c3_39, %c0_40, %c0_41] : memref<30x14x160xbf16, #tpu.memory_space<vmem>>, vector<1x14x160xbf16>
    %58 = vector.shape_cast %57 : vector<1x14x160xbf16> to vector<14x160xbf16>
    %cst_42 = arith.constant dense<0.000000e+00> : vector<10x160xf32>
    %59 = tpu.matmul %56, %58, %cst_42 {dimension_numbers = #tpu.dot_dimension_numbers<[1], [0], [0], [1], [0, 0, 1, 1], [], []>} : vector<10x14xbf16>, vector<14x160xbf16>, vector<10x160xf32> -> vector<10x160xf32>
    %60 = arith.addf %55, %59 : vector<10x160xf32>
    %61 = vector.extract_strided_slice %40 {offsets = [4, 0], sizes = [10, 14], strides = [1, 1]} : vector<14x14xbf16> to vector<10x14xbf16>
    %c4_43 = arith.constant 4 : index
    %c0_44 = arith.constant 0 : index
    %c0_45 = arith.constant 0 : index
    %62 = vector.load %arg6[%c4_43, %c0_44, %c0_45] : memref<30x14x160xbf16, #tpu.memory_space<vmem>>, vector<1x14x160xbf16>
    %63 = vector.shape_cast %62 : vector<1x14x160xbf16> to vector<14x160xbf16>
    %cst_46 = arith.constant dense<0.000000e+00> : vector<10x160xf32>
    %64 = tpu.matmul %61, %63, %cst_46 {dimension_numbers = #tpu.dot_dimension_numbers<[1], [0], [0], [1], [0, 0, 1, 1], [], []>} : vector<10x14xbf16>, vector<14x160xbf16>, vector<10x160xf32> -> vector<10x160xf32>
    %65 = arith.addf %60, %64 : vector<10x160xf32>
    %66 = vector.extract_strided_slice %38 {offsets = [0, 14], sizes = [14, 14], strides = [1, 1]} : vector<14x84xbf16> to vector<14x14xbf16>
    %67 = vector.extract_strided_slice %66 {offsets = [0, 0], sizes = [10, 14], strides = [1, 1]} : vector<14x14xbf16> to vector<10x14xbf16>
    %c5 = arith.constant 5 : index
    %c0_47 = arith.constant 0 : index
    %c0_48 = arith.constant 0 : index
    %68 = vector.load %arg6[%c5, %c0_47, %c0_48] : memref<30x14x160xbf16, #tpu.memory_space<vmem>>, vector<1x14x160xbf16>
    %69 = vector.shape_cast %68 : vector<1x14x160xbf16> to vector<14x160xbf16>
    %cst_49 = arith.constant dense<0.000000e+00> : vector<10x160xf32>
    %70 = tpu.matmul %67, %69, %cst_49 {dimension_numbers = #tpu.dot_dimension_numbers<[1], [0], [0], [1], [0, 0, 1, 1], [], []>} : vector<10x14xbf16>, vector<14x160xbf16>, vector<10x160xf32> -> vector<10x160xf32>
    %71 = arith.addf %65, %70 : vector<10x160xf32>
    %72 = vector.extract_strided_slice %66 {offsets = [1, 0], sizes = [10, 14], strides = [1, 1]} : vector<14x14xbf16> to vector<10x14xbf16>
    %c6 = arith.constant 6 : index
    %c0_50 = arith.constant 0 : index
    %c0_51 = arith.constant 0 : index
    %73 = vector.load %arg6[%c6, %c0_50, %c0_51] : memref<30x14x160xbf16, #tpu.memory_space<vmem>>, vector<1x14x160xbf16>
    %74 = vector.shape_cast %73 : vector<1x14x160xbf16> to vector<14x160xbf16>
    %cst_52 = arith.constant dense<0.000000e+00> : vector<10x160xf32>
    %75 = tpu.matmul %72, %74, %cst_52 {dimension_numbers = #tpu.dot_dimension_numbers<[1], [0], [0], [1], [0, 0, 1, 1], [], []>} : vector<10x14xbf16>, vector<14x160xbf16>, vector<10x160xf32> -> vector<10x160xf32>
    %76 = arith.addf %71, %75 : vector<10x160xf32>
    %77 = vector.extract_strided_slice %66 {offsets = [2, 0], sizes = [10, 14], strides = [1, 1]} : vector<14x14xbf16> to vector<10x14xbf16>
    %c7 = arith.constant 7 : index
    %c0_53 = arith.constant 0 : index
    %c0_54 = arith.constant 0 : index
    %78 = vector.load %arg6[%c7, %c0_53, %c0_54] : memref<30x14x160xbf16, #tpu.memory_space<vmem>>, vector<1x14x160xbf16>
    %79 = vector.shape_cast %78 : vector<1x14x160xbf16> to vector<14x160xbf16>
    %cst_55 = arith.constant dense<0.000000e+00> : vector<10x160xf32>
    %80 = tpu.matmul %77, %79, %cst_55 {dimension_numbers = #tpu.dot_dimension_numbers<[1], [0], [0], [1], [0, 0, 1, 1], [], []>} : vector<10x14xbf16>, vector<14x160xbf16>, vector<10x160xf32> -> vector<10x160xf32>
    %81 = arith.addf %76, %80 : vector<10x160xf32>
    %82 = vector.extract_strided_slice %66 {offsets = [3, 0], sizes = [10, 14], strides = [1, 1]} : vector<14x14xbf16> to vector<10x14xbf16>
    %c8 = arith.constant 8 : index
    %c0_56 = arith.constant 0 : index
    %c0_57 = arith.constant 0 : index
    %83 = vector.load %arg6[%c8, %c0_56, %c0_57] : memref<30x14x160xbf16, #tpu.memory_space<vmem>>, vector<1x14x160xbf16>
    %84 = vector.shape_cast %83 : vector<1x14x160xbf16> to vector<14x160xbf16>
    %cst_58 = arith.constant dense<0.000000e+00> : vector<10x160xf32>
    %85 = tpu.matmul %82, %84, %cst_58 {dimension_numbers = #tpu.dot_dimension_numbers<[1], [0], [0], [1], [0, 0, 1, 1], [], []>} : vector<10x14xbf16>, vector<14x160xbf16>, vector<10x160xf32> -> vector<10x160xf32>
    %86 = arith.addf %81, %85 : vector<10x160xf32>
    %87 = vector.extract_strided_slice %66 {offsets = [4, 0], sizes = [10, 14], strides = [1, 1]} : vector<14x14xbf16> to vector<10x14xbf16>
    %c9 = arith.constant 9 : index
    %c0_59 = arith.constant 0 : index
    %c0_60 = arith.constant 0 : index
    %88 = vector.load %arg6[%c9, %c0_59, %c0_60] : memref<30x14x160xbf16, #tpu.memory_space<vmem>>, vector<1x14x160xbf16>
    %89 = vector.shape_cast %88 : vector<1x14x160xbf16> to vector<14x160xbf16>
    %cst_61 = arith.constant dense<0.000000e+00> : vector<10x160xf32>
    %90 = tpu.matmul %87, %89, %cst_61 {dimension_numbers = #tpu.dot_dimension_numbers<[1], [0], [0], [1], [0, 0, 1, 1], [], []>} : vector<10x14xbf16>, vector<14x160xbf16>, vector<10x160xf32> -> vector<10x160xf32>
    %91 = arith.addf %86, %90 : vector<10x160xf32>
    %92 = vector.extract_strided_slice %38 {offsets = [0, 28], sizes = [14, 14], strides = [1, 1]} : vector<14x84xbf16> to vector<14x14xbf16>
    %93 = vector.extract_strided_slice %92 {offsets = [0, 0], sizes = [10, 14], strides = [1, 1]} : vector<14x14xbf16> to vector<10x14xbf16>
    %c10 = arith.constant 10 : index
    %c0_62 = arith.constant 0 : index
    %c0_63 = arith.constant 0 : index
    %94 = vector.load %arg6[%c10, %c0_62, %c0_63] : memref<30x14x160xbf16, #tpu.memory_space<vmem>>, vector<1x14x160xbf16>
    %95 = vector.shape_cast %94 : vector<1x14x160xbf16> to vector<14x160xbf16>
    %cst_64 = arith.constant dense<0.000000e+00> : vector<10x160xf32>
    %96 = tpu.matmul %93, %95, %cst_64 {dimension_numbers = #tpu.dot_dimension_numbers<[1], [0], [0], [1], [0, 0, 1, 1], [], []>} : vector<10x14xbf16>, vector<14x160xbf16>, vector<10x160xf32> -> vector<10x160xf32>
    %97 = arith.addf %91, %96 : vector<10x160xf32>
    %98 = vector.extract_strided_slice %92 {offsets = [1, 0], sizes = [10, 14], strides = [1, 1]} : vector<14x14xbf16> to vector<10x14xbf16>
    %c11 = arith.constant 11 : index
    %c0_65 = arith.constant 0 : index
    %c0_66 = arith.constant 0 : index
    %99 = vector.load %arg6[%c11, %c0_65, %c0_66] : memref<30x14x160xbf16, #tpu.memory_space<vmem>>, vector<1x14x160xbf16>
    %100 = vector.shape_cast %99 : vector<1x14x160xbf16> to vector<14x160xbf16>
    %cst_67 = arith.constant dense<0.000000e+00> : vector<10x160xf32>
    %101 = tpu.matmul %98, %100, %cst_67 {dimension_numbers = #tpu.dot_dimension_numbers<[1], [0], [0], [1], [0, 0, 1, 1], [], []>} : vector<10x14xbf16>, vector<14x160xbf16>, vector<10x160xf32> -> vector<10x160xf32>
    %102 = arith.addf %97, %101 : vector<10x160xf32>
    %103 = vector.extract_strided_slice %92 {offsets = [2, 0], sizes = [10, 14], strides = [1, 1]} : vector<14x14xbf16> to vector<10x14xbf16>
    %c12 = arith.constant 12 : index
    %c0_68 = arith.constant 0 : index
    %c0_69 = arith.constant 0 : index
    %104 = vector.load %arg6[%c12, %c0_68, %c0_69] : memref<30x14x160xbf16, #tpu.memory_space<vmem>>, vector<1x14x160xbf16>
    %105 = vector.shape_cast %104 : vector<1x14x160xbf16> to vector<14x160xbf16>
    %cst_70 = arith.constant dense<0.000000e+00> : vector<10x160xf32>
    %106 = tpu.matmul %103, %105, %cst_70 {dimension_numbers = #tpu.dot_dimension_numbers<[1], [0], [0], [1], [0, 0, 1, 1], [], []>} : vector<10x14xbf16>, vector<14x160xbf16>, vector<10x160xf32> -> vector<10x160xf32>
    %107 = arith.addf %102, %106 : vector<10x160xf32>
    %108 = vector.extract_strided_slice %92 {offsets = [3, 0], sizes = [10, 14], strides = [1, 1]} : vector<14x14xbf16> to vector<10x14xbf16>
    %c13 = arith.constant 13 : index
    %c0_71 = arith.constant 0 : index
    %c0_72 = arith.constant 0 : index
    %109 = vector.load %arg6[%c13, %c0_71, %c0_72] : memref<30x14x160xbf16, #tpu.memory_space<vmem>>, vector<1x14x160xbf16>
    %110 = vector.shape_cast %109 : vector<1x14x160xbf16> to vector<14x160xbf16>
    %cst_73 = arith.constant dense<0.000000e+00> : vector<10x160xf32>
    %111 = tpu.matmul %108, %110, %cst_73 {dimension_numbers = #tpu.dot_dimension_numbers<[1], [0], [0], [1], [0, 0, 1, 1], [], []>} : vector<10x14xbf16>, vector<14x160xbf16>, vector<10x160xf32> -> vector<10x160xf32>
    %112 = arith.addf %107, %111 : vector<10x160xf32>
    %113 = vector.extract_strided_slice %92 {offsets = [4, 0], sizes = [10, 14], strides = [1, 1]} : vector<14x14xbf16> to vector<10x14xbf16>
    %c14 = arith.constant 14 : index
    %c0_74 = arith.constant 0 : index
    %c0_75 = arith.constant 0 : index
    %114 = vector.load %arg6[%c14, %c0_74, %c0_75] : memref<30x14x160xbf16, #tpu.memory_space<vmem>>, vector<1x14x160xbf16>
    %115 = vector.shape_cast %114 : vector<1x14x160xbf16> to vector<14x160xbf16>
    %cst_76 = arith.constant dense<0.000000e+00> : vector<10x160xf32>
    %116 = tpu.matmul %113, %115, %cst_76 {dimension_numbers = #tpu.dot_dimension_numbers<[1], [0], [0], [1], [0, 0, 1, 1], [], []>} : vector<10x14xbf16>, vector<14x160xbf16>, vector<10x160xf32> -> vector<10x160xf32>
    %117 = arith.addf %112, %116 : vector<10x160xf32>
    %118 = vector.extract_strided_slice %38 {offsets = [0, 42], sizes = [14, 14], strides = [1, 1]} : vector<14x84xbf16> to vector<14x14xbf16>
    %119 = vector.extract_strided_slice %118 {offsets = [0, 0], sizes = [10, 14], strides = [1, 1]} : vector<14x14xbf16> to vector<10x14xbf16>
    %c15 = arith.constant 15 : index
    %c0_77 = arith.constant 0 : index
    %c0_78 = arith.constant 0 : index
    %120 = vector.load %arg6[%c15, %c0_77, %c0_78] : memref<30x14x160xbf16, #tpu.memory_space<vmem>>, vector<1x14x160xbf16>
    %121 = vector.shape_cast %120 : vector<1x14x160xbf16> to vector<14x160xbf16>
    %cst_79 = arith.constant dense<0.000000e+00> : vector<10x160xf32>
    %122 = tpu.matmul %119, %121, %cst_79 {dimension_numbers = #tpu.dot_dimension_numbers<[1], [0], [0], [1], [0, 0, 1, 1], [], []>} : vector<10x14xbf16>, vector<14x160xbf16>, vector<10x160xf32> -> vector<10x160xf32>
    %123 = arith.addf %117, %122 : vector<10x160xf32>
    %124 = vector.extract_strided_slice %118 {offsets = [1, 0], sizes = [10, 14], strides = [1, 1]} : vector<14x14xbf16> to vector<10x14xbf16>
    %c16 = arith.constant 16 : index
    %c0_80 = arith.constant 0 : index
    %c0_81 = arith.constant 0 : index
    %125 = vector.load %arg6[%c16, %c0_80, %c0_81] : memref<30x14x160xbf16, #tpu.memory_space<vmem>>, vector<1x14x160xbf16>
    %126 = vector.shape_cast %125 : vector<1x14x160xbf16> to vector<14x160xbf16>
    %cst_82 = arith.constant dense<0.000000e+00> : vector<10x160xf32>
    %127 = tpu.matmul %124, %126, %cst_82 {dimension_numbers = #tpu.dot_dimension_numbers<[1], [0], [0], [1], [0, 0, 1, 1], [], []>} : vector<10x14xbf16>, vector<14x160xbf16>, vector<10x160xf32> -> vector<10x160xf32>
    %128 = arith.addf %123, %127 : vector<10x160xf32>
    %129 = vector.extract_strided_slice %118 {offsets = [2, 0], sizes = [10, 14], strides = [1, 1]} : vector<14x14xbf16> to vector<10x14xbf16>
    %c17 = arith.constant 17 : index
    %c0_83 = arith.constant 0 : index
    %c0_84 = arith.constant 0 : index
    %130 = vector.load %arg6[%c17, %c0_83, %c0_84] : memref<30x14x160xbf16, #tpu.memory_space<vmem>>, vector<1x14x160xbf16>
    %131 = vector.shape_cast %130 : vector<1x14x160xbf16> to vector<14x160xbf16>
    %cst_85 = arith.constant dense<0.000000e+00> : vector<10x160xf32>
    %132 = tpu.matmul %129, %131, %cst_85 {dimension_numbers = #tpu.dot_dimension_numbers<[1], [0], [0], [1], [0, 0, 1, 1], [], []>} : vector<10x14xbf16>, vector<14x160xbf16>, vector<10x160xf32> -> vector<10x160xf32>
    %133 = arith.addf %128, %132 : vector<10x160xf32>
    %134 = vector.extract_strided_slice %118 {offsets = [3, 0], sizes = [10, 14], strides = [1, 1]} : vector<14x14xbf16> to vector<10x14xbf16>
    %c18 = arith.constant 18 : index
    %c0_86 = arith.constant 0 : index
    %c0_87 = arith.constant 0 : index
    %135 = vector.load %arg6[%c18, %c0_86, %c0_87] : memref<30x14x160xbf16, #tpu.memory_space<vmem>>, vector<1x14x160xbf16>
    %136 = vector.shape_cast %135 : vector<1x14x160xbf16> to vector<14x160xbf16>
    %cst_88 = arith.constant dense<0.000000e+00> : vector<10x160xf32>
    %137 = tpu.matmul %134, %136, %cst_88 {dimension_numbers = #tpu.dot_dimension_numbers<[1], [0], [0], [1], [0, 0, 1, 1], [], []>} : vector<10x14xbf16>, vector<14x160xbf16>, vector<10x160xf32> -> vector<10x160xf32>
    %138 = arith.addf %133, %137 : vector<10x160xf32>
    %139 = vector.extract_strided_slice %118 {offsets = [4, 0], sizes = [10, 14], strides = [1, 1]} : vector<14x14xbf16> to vector<10x14xbf16>
    %c19 = arith.constant 19 : index
    %c0_89 = arith.constant 0 : index
    %c0_90 = arith.constant 0 : index
    %140 = vector.load %arg6[%c19, %c0_89, %c0_90] : memref<30x14x160xbf16, #tpu.memory_space<vmem>>, vector<1x14x160xbf16>
    %141 = vector.shape_cast %140 : vector<1x14x160xbf16> to vector<14x160xbf16>
    %cst_91 = arith.constant dense<0.000000e+00> : vector<10x160xf32>
    %142 = tpu.matmul %139, %141, %cst_91 {dimension_numbers = #tpu.dot_dimension_numbers<[1], [0], [0], [1], [0, 0, 1, 1], [], []>} : vector<10x14xbf16>, vector<14x160xbf16>, vector<10x160xf32> -> vector<10x160xf32>
    %143 = arith.addf %138, %142 : vector<10x160xf32>
    %144 = vector.extract_strided_slice %38 {offsets = [0, 56], sizes = [14, 14], strides = [1, 1]} : vector<14x84xbf16> to vector<14x14xbf16>
    %145 = vector.extract_strided_slice %144 {offsets = [0, 0], sizes = [10, 14], strides = [1, 1]} : vector<14x14xbf16> to vector<10x14xbf16>
    %c20 = arith.constant 20 : index
    %c0_92 = arith.constant 0 : index
    %c0_93 = arith.constant 0 : index
    %146 = vector.load %arg6[%c20, %c0_92, %c0_93] : memref<30x14x160xbf16, #tpu.memory_space<vmem>>, vector<1x14x160xbf16>
    %147 = vector.shape_cast %146 : vector<1x14x160xbf16> to vector<14x160xbf16>
    %cst_94 = arith.constant dense<0.000000e+00> : vector<10x160xf32>
    %148 = tpu.matmul %145, %147, %cst_94 {dimension_numbers = #tpu.dot_dimension_numbers<[1], [0], [0], [1], [0, 0, 1, 1], [], []>} : vector<10x14xbf16>, vector<14x160xbf16>, vector<10x160xf32> -> vector<10x160xf32>
    %149 = arith.addf %143, %148 : vector<10x160xf32>
    %150 = vector.extract_strided_slice %144 {offsets = [1, 0], sizes = [10, 14], strides = [1, 1]} : vector<14x14xbf16> to vector<10x14xbf16>
    %c21 = arith.constant 21 : index
    %c0_95 = arith.constant 0 : index
    %c0_96 = arith.constant 0 : index
    %151 = vector.load %arg6[%c21, %c0_95, %c0_96] : memref<30x14x160xbf16, #tpu.memory_space<vmem>>, vector<1x14x160xbf16>
    %152 = vector.shape_cast %151 : vector<1x14x160xbf16> to vector<14x160xbf16>
    %cst_97 = arith.constant dense<0.000000e+00> : vector<10x160xf32>
    %153 = tpu.matmul %150, %152, %cst_97 {dimension_numbers = #tpu.dot_dimension_numbers<[1], [0], [0], [1], [0, 0, 1, 1], [], []>} : vector<10x14xbf16>, vector<14x160xbf16>, vector<10x160xf32> -> vector<10x160xf32>
    %154 = arith.addf %149, %153 : vector<10x160xf32>
    %155 = vector.extract_strided_slice %144 {offsets = [2, 0], sizes = [10, 14], strides = [1, 1]} : vector<14x14xbf16> to vector<10x14xbf16>
    %c22 = arith.constant 22 : index
    %c0_98 = arith.constant 0 : index
    %c0_99 = arith.constant 0 : index
    %156 = vector.load %arg6[%c22, %c0_98, %c0_99] : memref<30x14x160xbf16, #tpu.memory_space<vmem>>, vector<1x14x160xbf16>
    %157 = vector.shape_cast %156 : vector<1x14x160xbf16> to vector<14x160xbf16>
    %cst_100 = arith.constant dense<0.000000e+00> : vector<10x160xf32>
    %158 = tpu.matmul %155, %157, %cst_100 {dimension_numbers = #tpu.dot_dimension_numbers<[1], [0], [0], [1], [0, 0, 1, 1], [], []>} : vector<10x14xbf16>, vector<14x160xbf16>, vector<10x160xf32> -> vector<10x160xf32>
    %159 = arith.addf %154, %158 : vector<10x160xf32>
    %160 = vector.extract_strided_slice %144 {offsets = [3, 0], sizes = [10, 14], strides = [1, 1]} : vector<14x14xbf16> to vector<10x14xbf16>
    %c23 = arith.constant 23 : index
    %c0_101 = arith.constant 0 : index
    %c0_102 = arith.constant 0 : index
    %161 = vector.load %arg6[%c23, %c0_101, %c0_102] : memref<30x14x160xbf16, #tpu.memory_space<vmem>>, vector<1x14x160xbf16>
    %162 = vector.shape_cast %161 : vector<1x14x160xbf16> to vector<14x160xbf16>
    %cst_103 = arith.constant dense<0.000000e+00> : vector<10x160xf32>
    %163 = tpu.matmul %160, %162, %cst_103 {dimension_numbers = #tpu.dot_dimension_numbers<[1], [0], [0], [1], [0, 0, 1, 1], [], []>} : vector<10x14xbf16>, vector<14x160xbf16>, vector<10x160xf32> -> vector<10x160xf32>
    %164 = arith.addf %159, %163 : vector<10x160xf32>
    %165 = vector.extract_strided_slice %144 {offsets = [4, 0], sizes = [10, 14], strides = [1, 1]} : vector<14x14xbf16> to vector<10x14xbf16>
    %c24 = arith.constant 24 : index
    %c0_104 = arith.constant 0 : index
    %c0_105 = arith.constant 0 : index
    %166 = vector.load %arg6[%c24, %c0_104, %c0_105] : memref<30x14x160xbf16, #tpu.memory_space<vmem>>, vector<1x14x160xbf16>
    %167 = vector.shape_cast %166 : vector<1x14x160xbf16> to vector<14x160xbf16>
    %cst_106 = arith.constant dense<0.000000e+00> : vector<10x160xf32>
    %168 = tpu.matmul %165, %167, %cst_106 {dimension_numbers = #tpu.dot_dimension_numbers<[1], [0], [0], [1], [0, 0, 1, 1], [], []>} : vector<10x14xbf16>, vector<14x160xbf16>, vector<10x160xf32> -> vector<10x160xf32>
    %169 = arith.addf %164, %168 : vector<10x160xf32>
    %170 = vector.extract_strided_slice %38 {offsets = [0, 70], sizes = [14, 14], strides = [1, 1]} : vector<14x84xbf16> to vector<14x14xbf16>
    %171 = vector.extract_strided_slice %170 {offsets = [0, 0], sizes = [10, 14], strides = [1, 1]} : vector<14x14xbf16> to vector<10x14xbf16>
    %c25 = arith.constant 25 : index
    %c0_107 = arith.constant 0 : index
    %c0_108 = arith.constant 0 : index
    %172 = vector.load %arg6[%c25, %c0_107, %c0_108] : memref<30x14x160xbf16, #tpu.memory_space<vmem>>, vector<1x14x160xbf16>
    %173 = vector.shape_cast %172 : vector<1x14x160xbf16> to vector<14x160xbf16>
    %cst_109 = arith.constant dense<0.000000e+00> : vector<10x160xf32>
    %174 = tpu.matmul %171, %173, %cst_109 {dimension_numbers = #tpu.dot_dimension_numbers<[1], [0], [0], [1], [0, 0, 1, 1], [], []>} : vector<10x14xbf16>, vector<14x160xbf16>, vector<10x160xf32> -> vector<10x160xf32>
    %175 = arith.addf %169, %174 : vector<10x160xf32>
    %176 = vector.extract_strided_slice %170 {offsets = [1, 0], sizes = [10, 14], strides = [1, 1]} : vector<14x14xbf16> to vector<10x14xbf16>
    %c26 = arith.constant 26 : index
    %c0_110 = arith.constant 0 : index
    %c0_111 = arith.constant 0 : index
    %177 = vector.load %arg6[%c26, %c0_110, %c0_111] : memref<30x14x160xbf16, #tpu.memory_space<vmem>>, vector<1x14x160xbf16>
    %178 = vector.shape_cast %177 : vector<1x14x160xbf16> to vector<14x160xbf16>
    %cst_112 = arith.constant dense<0.000000e+00> : vector<10x160xf32>
    %179 = tpu.matmul %176, %178, %cst_112 {dimension_numbers = #tpu.dot_dimension_numbers<[1], [0], [0], [1], [0, 0, 1, 1], [], []>} : vector<10x14xbf16>, vector<14x160xbf16>, vector<10x160xf32> -> vector<10x160xf32>
    %180 = arith.addf %175, %179 : vector<10x160xf32>
    %181 = vector.extract_strided_slice %170 {offsets = [2, 0], sizes = [10, 14], strides = [1, 1]} : vector<14x14xbf16> to vector<10x14xbf16>
    %c27 = arith.constant 27 : index
    %c0_113 = arith.constant 0 : index
    %c0_114 = arith.constant 0 : index
    %182 = vector.load %arg6[%c27, %c0_113, %c0_114] : memref<30x14x160xbf16, #tpu.memory_space<vmem>>, vector<1x14x160xbf16>
    %183 = vector.shape_cast %182 : vector<1x14x160xbf16> to vector<14x160xbf16>
    %cst_115 = arith.constant dense<0.000000e+00> : vector<10x160xf32>
    %184 = tpu.matmul %181, %183, %cst_115 {dimension_numbers = #tpu.dot_dimension_numbers<[1], [0], [0], [1], [0, 0, 1, 1], [], []>} : vector<10x14xbf16>, vector<14x160xbf16>, vector<10x160xf32> -> vector<10x160xf32>
    %185 = arith.addf %180, %184 : vector<10x160xf32>
    %186 = vector.extract_strided_slice %170 {offsets = [3, 0], sizes = [10, 14], strides = [1, 1]} : vector<14x14xbf16> to vector<10x14xbf16>
    %c28 = arith.constant 28 : index
    %c0_116 = arith.constant 0 : index
    %c0_117 = arith.constant 0 : index
    %187 = vector.load %arg6[%c28, %c0_116, %c0_117] : memref<30x14x160xbf16, #tpu.memory_space<vmem>>, vector<1x14x160xbf16>
    %188 = vector.shape_cast %187 : vector<1x14x160xbf16> to vector<14x160xbf16>
    %cst_118 = arith.constant dense<0.000000e+00> : vector<10x160xf32>
    %189 = tpu.matmul %186, %188, %cst_118 {dimension_numbers = #tpu.dot_dimension_numbers<[1], [0], [0], [1], [0, 0, 1, 1], [], []>} : vector<10x14xbf16>, vector<14x160xbf16>, vector<10x160xf32> -> vector<10x160xf32>
    %190 = arith.addf %185, %189 : vector<10x160xf32>
    %191 = vector.extract_strided_slice %170 {offsets = [4, 0], sizes = [10, 14], strides = [1, 1]} : vector<14x14xbf16> to vector<10x14xbf16>
    %c29 = arith.constant 29 : index
    %c0_119 = arith.constant 0 : index
    %c0_120 = arith.constant 0 : index
    %192 = vector.load %arg6[%c29, %c0_119, %c0_120] : memref<30x14x160xbf16, #tpu.memory_space<vmem>>, vector<1x14x160xbf16>
    %193 = vector.shape_cast %192 : vector<1x14x160xbf16> to vector<14x160xbf16>
    %cst_121 = arith.constant dense<0.000000e+00> : vector<10x160xf32>
    %194 = tpu.matmul %191, %193, %cst_121 {dimension_numbers = #tpu.dot_dimension_numbers<[1], [0], [0], [1], [0, 0, 1, 1], [], []>} : vector<10x14xbf16>, vector<14x160xbf16>, vector<10x160xf32> -> vector<10x160xf32>
    %195 = arith.addf %190, %194 : vector<10x160xf32>
    %c0_122 = arith.constant 0 : index
    %c0_123 = arith.constant 0 : index
    %196 = vector.load %arg7[%c0_122, %c0_123] : memref<1x160xf32, #tpu.memory_space<vmem>>, vector<1x160xf32>
    %197 = vector.broadcast %196 : vector<1x160xf32> to vector<10x160xf32>
    %198 = arith.addf %195, %197 : vector<10x160xf32>
    %199 = math.tanh %198 : vector<10x160xf32>
    %c0_124 = arith.constant 0 : index
    %c0_125 = arith.constant 0 : index
    %200 = vector.load %arg8[%c0_124, %c0_125] : memref<5x10xbf16, #tpu.memory_space<vmem>>, vector<5x10xbf16>
    %201 = arith.truncf %199 : vector<10x160xf32> to vector<10x160xbf16>
    %cst_126 = arith.constant dense<0.000000e+00> : vector<5x160xf32>
    %202 = tpu.matmul %200, %201, %cst_126 {dimension_numbers = #tpu.dot_dimension_numbers<[1], [0], [0], [1], [0, 0, 1, 1], [], []>} : vector<5x10xbf16>, vector<10x160xbf16>, vector<5x160xf32> -> vector<5x160xf32>
    %203 = arith.truncf %202 : vector<5x160xf32> to vector<5x160xbf16>
    %c0_127 = arith.constant 0 : index
    %c0_128 = arith.constant 0 : index
    %204 = vector.load %arg9[%c0_127, %c0_128] : memref<160x80xbf16, #tpu.memory_space<vmem>>, vector<160x80xbf16>
    %cst_129 = arith.constant dense<0.000000e+00> : vector<5x80xf32>
    %205 = tpu.matmul %203, %204, %cst_129 {dimension_numbers = #tpu.dot_dimension_numbers<[1], [0], [0], [1], [0, 0, 1, 1], [], []>} : vector<5x160xbf16>, vector<160x80xbf16>, vector<5x80xf32> -> vector<5x80xf32>
    %206 = arith.truncf %205 : vector<5x80xf32> to vector<5x80xbf16>
    %cst_130 = arith.constant 0.000000e+00 : f32
    %207 = vector.broadcast %cst_130 : f32 to vector<1x120xf32>
    %208 = vector.extract_strided_slice %206 {offsets = [0, 0], sizes = [1, 80], strides = [1, 1]} : vector<5x80xbf16> to vector<1x80xbf16>
    %c0_131 = arith.constant 0 : index
    %c0_132 = arith.constant 0 : index
    %c0_133 = arith.constant 0 : index
    %209 = vector.load %arg10[%c0_131, %c0_132, %c0_133] : memref<5x80x120xbf16, #tpu.memory_space<vmem>>, vector<1x80x120xbf16>
    %210 = vector.shape_cast %209 : vector<1x80x120xbf16> to vector<80x120xbf16>
    %cst_134 = arith.constant dense<0.000000e+00> : vector<1x120xf32>
    %211 = tpu.matmul %208, %210, %cst_134 {dimension_numbers = #tpu.dot_dimension_numbers<[1], [0], [0], [1], [0, 0, 1, 1], [], []>} : vector<1x80xbf16>, vector<80x120xbf16>, vector<1x120xf32> -> vector<1x120xf32>
    %212 = arith.addf %207, %211 : vector<1x120xf32>
    %213 = vector.extract_strided_slice %206 {offsets = [1, 0], sizes = [1, 80], strides = [1, 1]} : vector<5x80xbf16> to vector<1x80xbf16>
    %c1_135 = arith.constant 1 : index
    %c0_136 = arith.constant 0 : index
    %c0_137 = arith.constant 0 : index
    %214 = vector.load %arg10[%c1_135, %c0_136, %c0_137] : memref<5x80x120xbf16, #tpu.memory_space<vmem>>, vector<1x80x120xbf16>
    %215 = vector.shape_cast %214 : vector<1x80x120xbf16> to vector<80x120xbf16>
    %cst_138 = arith.constant dense<0.000000e+00> : vector<1x120xf32>
    %216 = tpu.matmul %213, %215, %cst_138 {dimension_numbers = #tpu.dot_dimension_numbers<[1], [0], [0], [1], [0, 0, 1, 1], [], []>} : vector<1x80xbf16>, vector<80x120xbf16>, vector<1x120xf32> -> vector<1x120xf32>
    %217 = arith.addf %212, %216 : vector<1x120xf32>
    %218 = vector.extract_strided_slice %206 {offsets = [2, 0], sizes = [1, 80], strides = [1, 1]} : vector<5x80xbf16> to vector<1x80xbf16>
    %c2_139 = arith.constant 2 : index
    %c0_140 = arith.constant 0 : index
    %c0_141 = arith.constant 0 : index
    %219 = vector.load %arg10[%c2_139, %c0_140, %c0_141] : memref<5x80x120xbf16, #tpu.memory_space<vmem>>, vector<1x80x120xbf16>
    %220 = vector.shape_cast %219 : vector<1x80x120xbf16> to vector<80x120xbf16>
    %cst_142 = arith.constant dense<0.000000e+00> : vector<1x120xf32>
    %221 = tpu.matmul %218, %220, %cst_142 {dimension_numbers = #tpu.dot_dimension_numbers<[1], [0], [0], [1], [0, 0, 1, 1], [], []>} : vector<1x80xbf16>, vector<80x120xbf16>, vector<1x120xf32> -> vector<1x120xf32>
    %222 = arith.addf %217, %221 : vector<1x120xf32>
    %223 = vector.extract_strided_slice %206 {offsets = [3, 0], sizes = [1, 80], strides = [1, 1]} : vector<5x80xbf16> to vector<1x80xbf16>
    %c3_143 = arith.constant 3 : index
    %c0_144 = arith.constant 0 : index
    %c0_145 = arith.constant 0 : index
    %224 = vector.load %arg10[%c3_143, %c0_144, %c0_145] : memref<5x80x120xbf16, #tpu.memory_space<vmem>>, vector<1x80x120xbf16>
    %225 = vector.shape_cast %224 : vector<1x80x120xbf16> to vector<80x120xbf16>
    %cst_146 = arith.constant dense<0.000000e+00> : vector<1x120xf32>
    %226 = tpu.matmul %223, %225, %cst_146 {dimension_numbers = #tpu.dot_dimension_numbers<[1], [0], [0], [1], [0, 0, 1, 1], [], []>} : vector<1x80xbf16>, vector<80x120xbf16>, vector<1x120xf32> -> vector<1x120xf32>
    %227 = arith.addf %222, %226 : vector<1x120xf32>
    %228 = vector.extract_strided_slice %206 {offsets = [4, 0], sizes = [1, 80], strides = [1, 1]} : vector<5x80xbf16> to vector<1x80xbf16>
    %c4_147 = arith.constant 4 : index
    %c0_148 = arith.constant 0 : index
    %c0_149 = arith.constant 0 : index
    %229 = vector.load %arg10[%c4_147, %c0_148, %c0_149] : memref<5x80x120xbf16, #tpu.memory_space<vmem>>, vector<1x80x120xbf16>
    %230 = vector.shape_cast %229 : vector<1x80x120xbf16> to vector<80x120xbf16>
    %cst_150 = arith.constant dense<0.000000e+00> : vector<1x120xf32>
    %231 = tpu.matmul %228, %230, %cst_150 {dimension_numbers = #tpu.dot_dimension_numbers<[1], [0], [0], [1], [0, 0, 1, 1], [], []>} : vector<1x80xbf16>, vector<80x120xbf16>, vector<1x120xf32> -> vector<1x120xf32>
    %232 = arith.addf %227, %231 : vector<1x120xf32>
    %c0_151 = arith.constant 0 : index
    %c0_152 = arith.constant 0 : index
    %233 = vector.load %arg11[%c0_151, %c0_152] : memref<1x120xf32, #tpu.memory_space<vmem>>, vector<1x120xf32>
    %234 = arith.addf %232, %233 : vector<1x120xf32>
    %235 = math.tanh %234 : vector<1x120xf32>
    %236 = arith.truncf %235 : vector<1x120xf32> to vector<1x120xbf16>
    %c0_153 = arith.constant 0 : index
    %c0_154 = arith.constant 0 : index
    %237 = vector.load %arg12[%c0_153, %c0_154] : memref<120x84xbf16, #tpu.memory_space<vmem>>, vector<120x84xbf16>
    %cst_155 = arith.constant dense<0.000000e+00> : vector<1x84xf32>
    %238 = tpu.matmul %236, %237, %cst_155 {dimension_numbers = #tpu.dot_dimension_numbers<[1], [0], [0], [1], [0, 0, 1, 1], [], []>} : vector<1x120xbf16>, vector<120x84xbf16>, vector<1x84xf32> -> vector<1x84xf32>
    %c0_156 = arith.constant 0 : index
    %c0_157 = arith.constant 0 : index
    %239 = vector.load %arg13[%c0_156, %c0_157] : memref<1x84xf32, #tpu.memory_space<vmem>>, vector<1x84xf32>
    %240 = arith.addf %238, %239 : vector<1x84xf32>
    %241 = math.tanh %240 : vector<1x84xf32>
    %242 = arith.truncf %241 : vector<1x84xf32> to vector<1x84xbf16>
    %c0_158 = arith.constant 0 : index
    %c0_159 = arith.constant 0 : index
    %243 = vector.load %arg14[%c0_158, %c0_159] : memref<84x10xbf16, #tpu.memory_space<vmem>>, vector<84x10xbf16>
    %cst_160 = arith.constant dense<0.000000e+00> : vector<1x10xf32>
    %244 = tpu.matmul %242, %243, %cst_160 {dimension_numbers = #tpu.dot_dimension_numbers<[1], [0], [0], [1], [0, 0, 1, 1], [], []>} : vector<1x84xbf16>, vector<84x10xbf16>, vector<1x10xf32> -> vector<1x10xf32>
    %c0_161 = arith.constant 0 : index
    %c0_162 = arith.constant 0 : index
    %245 = vector.load %arg15[%c0_161, %c0_162] : memref<1x10xf32, #tpu.memory_space<vmem>>, vector<1x10xf32>
    %246 = arith.addf %244, %245 : vector<1x10xf32>
    %c0_163 = arith.constant 0 : index
    %c0_164 = arith.constant 0 : index
    %c0_165 = arith.constant 0 : index
    %247 = vector.load %arg16[%c0_163, %c0_164, %c0_165] : memref<1x1x10xf32, #tpu.memory_space<vmem>>, vector<1x1x10xf32>
    %248 = vector.shape_cast %247 : vector<1x1x10xf32> to vector<1x10xf32>
    %249 = vector.shape_cast %246 : vector<1x10xf32> to vector<1x1x10xf32>
    tpu.vector_store %arg16[%c0_163, %c0_164, %c0_165], %249 {strides = array<i32>} : memref<1x1x10xf32, #tpu.memory_space<vmem>>, vector<1x1x10xf32>,
    return
  }
  func.func @transform_0(%arg0: i32) -> (i32, i32, i32) {
    %c0_i32 = arith.constant 0 : i32
    %c0_i32_0 = arith.constant 0 : i32
    %c0_i32_1 = arith.constant 0 : i32
    return %arg0, %c0_i32, %c0_i32_0 : i32, i32, i32
  }
  func.func @transform_1(%arg0: i32) -> (i32, i32, i32) {
    %c0_i32 = arith.constant 0 : i32
    %c0_i32_0 = arith.constant 0 : i32
    %c0_i32_1 = arith.constant 0 : i32
    %c0_i32_2 = arith.constant 0 : i32
    return %c0_i32, %c0_i32_0, %c0_i32_1 : i32, i32, i32
  }
  func.func @transform_2(%arg0: i32) -> (i32, i32) {
    %c0_i32 = arith.constant 0 : i32
    %c0_i32_0 = arith.constant 0 : i32
    %c0_i32_1 = arith.constant 0 : i32
    return %c0_i32, %c0_i32_0 : i32, i32
  }
  func.func @transform_3(%arg0: i32) -> (i32, i32) {
    %c0_i32 = arith.constant 0 : i32
    %c0_i32_0 = arith.constant 0 : i32
    %c0_i32_1 = arith.constant 0 : i32
    return %c0_i32, %c0_i32_0 : i32, i32
  }
  func.func @transform_4(%arg0: i32) -> (i32, i32) {
    %c0_i32 = arith.constant 0 : i32
    %c0_i32_0 = arith.constant 0 : i32
    %c0_i32_1 = arith.constant 0 : i32
    return %c0_i32, %c0_i32_0 : i32, i32
  }
  func.func @transform_5(%arg0: i32) -> (i32, i32, i32) {
    %c0_i32 = arith.constant 0 : i32
    %c0_i32_0 = arith.constant 0 : i32
    %c0_i32_1 = arith.constant 0 : i32
    %c0_i32_2 = arith.constant 0 : i32
    return %c0_i32, %c0_i32_0, %c0_i32_1 : i32, i32, i32
  }
  func.func @transform_6(%arg0: i32) -> (i32, i32) {
    %c0_i32 = arith.constant 0 : i32
    %c0_i32_0 = arith.constant 0 : i32
    %c0_i32_1 = arith.constant 0 : i32
    return %c0_i32, %c0_i32_0 : i32, i32
  }
  func.func @transform_7(%arg0: i32) -> (i32, i32) {
    %c0_i32 = arith.constant 0 : i32
    %c0_i32_0 = arith.constant 0 : i32
    %c0_i32_1 = arith.constant 0 : i32
    return %c0_i32, %c0_i32_0 : i32, i32
  }
  func.func @transform_8(%arg0: i32) -> (i32, i32) {
    %c0_i32 = arith.constant 0 : i32
    %c0_i32_0 = arith.constant 0 : i32
    %c0_i32_1 = arith.constant 0 : i32
    return %c0_i32, %c0_i32_0 : i32, i32
  }
  func.func @transform_9(%arg0: i32) -> (i32, i32, i32) {
    %c0_i32 = arith.constant 0 : i32
    %c0_i32_0 = arith.constant 0 : i32
    %c0_i32_1 = arith.constant 0 : i32
    %c0_i32_2 = arith.constant 0 : i32
    return %c0_i32, %c0_i32_0, %c0_i32_1 : i32, i32, i32
  }
  func.func @transform_10(%arg0: i32) -> (i32, i32) {
    %c0_i32 = arith.constant 0 : i32
    %c0_i32_0 = arith.constant 0 : i32
    %c0_i32_1 = arith.constant 0 : i32
    return %c0_i32, %c0_i32_0 : i32, i32
  }
  func.func @transform_11(%arg0: i32) -> (i32, i32) {
    %c0_i32 = arith.constant 0 : i32
    %c0_i32_0 = arith.constant 0 : i32
    %c0_i32_1 = arith.constant 0 : i32
    return %c0_i32, %c0_i32_0 : i32, i32
  }
  func.func @transform_12(%arg0: i32) -> (i32, i32) {
    %c0_i32 = arith.constant 0 : i32
    %c0_i32_0 = arith.constant 0 : i32
    %c0_i32_1 = arith.constant 0 : i32
    return %c0_i32, %c0_i32_0 : i32, i32
  }
  func.func @transform_13(%arg0: i32) -> (i32, i32) {
    %c0_i32 = arith.constant 0 : i32
    %c0_i32_0 = arith.constant 0 : i32
    %c0_i32_1 = arith.constant 0 : i32
    return %c0_i32, %c0_i32_0 : i32, i32
  }
  func.func @transform_14(%arg0: i32) -> (i32, i32) {
    %c0_i32 = arith.constant 0 : i32
    %c0_i32_0 = arith.constant 0 : i32
    %c0_i32_1 = arith.constant 0 : i32
    return %c0_i32, %c0_i32_0 : i32, i32
  }
  func.func @transform_15(%arg0: i32) -> (i32, i32, i32) {
    %c0_i32 = arith.constant 0 : i32
    %c0_i32_0 = arith.constant 0 : i32
    %c0_i32_1 = arith.constant 0 : i32
    return %arg0, %c0_i32, %c0_i32_0 : i32, i32, i32
  }
}

</mosaic_0001>

<llo_original>
// kernel: lenet5_forward.1
$region0: #{lenet5_forward.1}
  #allocation0 [shape = 'u32[]', space=smem, size = 0x4, offset = 0x4, fixed_abs, tag = 'smem constant byte address 0x4 - core index']
  #allocation1 [shape = 'u32[144,128]{1,0:T(1,128)}', space=vmem, size = 0x12000, scoped, tag = 'internal scratch']
  %s0 = inlined_call_operand.vmem [shape: bf16[2,32,32], index: 0, kind: input, shape index: {}]
  %s1 = inlined_call_operand.vmem [shape: bf16[5,32,168], index: 1, kind: input, shape index: {}]
  %s2 = inlined_call_operand.vmem [shape: f32[1,168], index: 2, kind: input, shape index: {}]
  %s3 = inlined_call_operand.vmem [shape: bf16[14,28], index: 3, kind: input, shape index: {}]
  %s4 = inlined_call_operand.vmem [shape: bf16[168,84], index: 4, kind: input, shape index: {}]
  %s5 = inlined_call_operand.vmem [shape: bf16[30,14,160], index: 5, kind: input, shape index: {}]
  %s6 = inlined_call_operand.vmem [shape: f32[1,160], index: 6, kind: input, shape index: {}]
  %s7 = inlined_call_operand.vmem [shape: bf16[5,10], index: 7, kind: input, shape index: {}]
  %s8 = inlined_call_operand.vmem [shape: bf16[160,80], index: 8, kind: input, shape index: {}]
  %s9 = inlined_call_operand.vmem [shape: bf16[5,80,120], index: 9, kind: input, shape index: {}]
  %s10 = inlined_call_operand.vmem [shape: f32[1,120], index: 10, kind: input, shape index: {}]
  %s11 = inlined_call_operand.vmem [shape: bf16[120,84], index: 11, kind: input, shape index: {}]
  %s12 = inlined_call_operand.vmem [shape: f32[1,84], index: 12, kind: input, shape index: {}]
  %s13 = inlined_call_operand.vmem [shape: bf16[84,10], index: 13, kind: input, shape index: {}]
  %s14 = inlined_call_operand.vmem [shape: f32[1,10], index: 14, kind: input, shape index: {}]
  %s15 = inlined_call_operand.hbm [shape: f32[2,1,10], index: 15, kind: output, shape index: {}]
  %s16 = sld [smem:[#allocation0]]
  $region93: #{lenet5_forward.1} parent=0
    _
  %s18 = ssub.s32 1, %s16
  %s19 = scalar_select 0, %s18, %s16
  $region1: #{lenet5_forward.1} parent=0
    #allocation2 [shape = 'u8[1024]{0}', space=vmem, size = 0x400, scoped, tag = 'output window, operand 0']
    #allocation3 [shape = 's32[2]{0}', space=sflag, size = 0x8, scoped, tag = 'scoped memory for lenet5_forward.1']
    %20 = vsyncpa [#allocation3], 0
    %s21 = scalar_lea.sflag [#allocation3], 1
    %22 = vsyncpa %s21, 0
    loop: start=0, step=1, limit=4
    $region2: #{lenet5_forward.1} parent=1 // loop_pre_header
      _
    $region3: #{lenet5_forward.1} parent=1 // loop_header
      %s24 = sphi 0, %s28
      %p25 = scmp.ge.s32.totalorder %s24, 4
      %s34 = sphi 0, %s36
      %s37 = sphi 0, %s34
      %s38 = sphi 0, %s37
      %s54 = sphi 0, %s38
      %s58 = sphi 0, %s58
      %s60 = sphi 0, %s58
      %s61 = sphi 0, %s60
      %s75 = sphi 0, %s61
      %s79 = sphi 0, %s79
      %s81 = sphi 0, %s79
      %s82 = sphi 0, %s81
      %s96 = sphi 0, %s82
      %s100 = sphi 0, %s100
      %s102 = sphi 0, %s100
      %s103 = sphi 0, %s102
      %s117 = sphi 0, %s103
      %s121 = sphi 0, %s121
      %s123 = sphi 0, %s121
      %s124 = sphi 0, %s123
      %s138 = sphi 0, %s124
      %s142 = sphi 0, %s142
      %s144 = sphi 0, %s142
      %s145 = sphi 0, %s144
      %s159 = sphi 0, %s145
      %s163 = sphi 0, %s163
      %s165 = sphi 0, %s163
      %s166 = sphi 0, %s165
      %s180 = sphi 0, %s166
      %s184 = sphi 0, %s184
      %s186 = sphi 0, %s184
      %s187 = sphi 0, %s186
      %s201 = sphi 0, %s187
      %s205 = sphi 0, %s205
      %s207 = sphi 0, %s205
      %s208 = sphi 0, %s207
      %s222 = sphi 0, %s208
      %s226 = sphi 0, %s226
      %s228 = sphi 0, %s226
      %s229 = sphi 0, %s228
      %s243 = sphi 0, %s229
      %s247 = sphi 0, %s247
      %s249 = sphi 0, %s247
      %s250 = sphi 0, %s249
      %s264 = sphi 0, %s250
      %s268 = sphi 0, %s268
      %s270 = sphi 0, %s268
      %s271 = sphi 0, %s270
      %s285 = sphi 0, %s271
      %s289 = sphi 0, %s289
      %s291 = sphi 0, %s289
      %s292 = sphi 0, %s291
      %s306 = sphi 0, %s292
      %s310 = sphi 0, %s310
      %s312 = sphi 0, %s310
      %s313 = sphi 0, %s312
      %s327 = sphi 0, %s313
      %s331 = sphi 0, %s331
      %s333 = sphi 0, %s331
      %s334 = sphi 0, %s333
      %s348 = sphi 0, %s334
      %s354 = sphi 0, %s356
      %s357 = sphi 0, %s354
      %s358 = sphi 0, %s357
      %s374 = sphi 0, %s358
    $region4: #{lenet5_forward.1} parent=1 // loop_header_branch
      %27 = sbr.rel (%p25) target = $region8
    $region5: #{lenet5_forward.1} parent=1 // loop_body
      %s29 = ssub.s32 %s24, 1
      %s30 = ssub.s32 %s24, 2
      %s31 = sadd.s32 %s24, 1
      %s32 = ssub.s32 %s24, %s31
      %p33 = scmp.eq.s32.totalorder %s32, 0
      %s35 = sadd.s32 %s34, 1
      %s36 = scalar_select %p33, %s34, %s35
      %p39 = pneg %p33
      %p40 = scmp.eq.s32.totalorder %s24, 1
      %p41 = por %p39, %p40
      %p42 = scmp.ne.s32.totalorder %s34, %s37
      %p43 = scmp.eq.s32.totalorder %s24, 0
      %p44 = por %p42, %p43
      %p45 = scmp.ne.s32.totalorder %s34, %s37
      %p46 = scmp.eq.s32.totalorder %s29, 1
      %p47 = por %p45, %p46
      %p48 = scmp.ne.s32.totalorder %s37, %s38
      %p49 = scmp.eq.s32.totalorder %s29, 0
      %p50 = por %p48, %p49
      %p51 = scmp.ne.s32.totalorder %s37, %s38
      %p52 = scmp.eq.s32.totalorder %s30, 1
      %p53 = por %p51, %p52
      %p55 = scmp.ne.s32.totalorder %s38, %s54
      %p56 = scmp.eq.s32.totalorder %s30, 0
      %p57 = por %p55, %p56
      %s59 = sadd.s32 %s58, 1
      %p62 = scmp.eq.s32.totalorder %s24, 1
      %p63 = scmp.ne.s32.totalorder %s58, %s60
      %p64 = scmp.eq.s32.totalorder %s24, 0
      %p65 = por %p63, %p64
      %p66 = scmp.ne.s32.totalorder %s58, %s60
      %p67 = scmp.eq.s32.totalorder %s29, 1
      %p68 = por %p66, %p67
      %p69 = scmp.ne.s32.totalorder %s60, %s61
      %p70 = scmp.eq.s32.totalorder %s29, 0
      %p71 = por %p69, %p70
      %p72 = scmp.ne.s32.totalorder %s60, %s61
      %p73 = scmp.eq.s32.totalorder %s30, 1
      %p74 = por %p72, %p73
      %p76 = scmp.ne.s32.totalorder %s61, %s75
      %p77 = scmp.eq.s32.totalorder %s30, 0
      %p78 = por %p76, %p77
      %s80 = sadd.s32 %s79, 1
      %p83 = scmp.eq.s32.totalorder %s24, 1
      %p84 = scmp.ne.s32.totalorder %s79, %s81
      %p85 = scmp.eq.s32.totalorder %s24, 0
      %p86 = por %p84, %p85
      %p87 = scmp.ne.s32.totalorder %s79, %s81
      %p88 = scmp.eq.s32.totalorder %s29, 1
      %p89 = por %p87, %p88
      %p90 = scmp.ne.s32.totalorder %s81, %s82
      %p91 = scmp.eq.s32.totalorder %s29, 0
      %p92 = por %p90, %p91
      %p93 = scmp.ne.s32.totalorder %s81, %s82
      %p94 = scmp.eq.s32.totalorder %s30, 1
      %p95 = por %p93, %p94
      %p97 = scmp.ne.s32.totalorder %s82, %s96
      %p98 = scmp.eq.s32.totalorder %s30, 0
      %p99 = por %p97, %p98
      %s101 = sadd.s32 %s100, 1
      %p104 = scmp.eq.s32.totalorder %s24, 1
      %p105 = scmp.ne.s32.totalorder %s100, %s102
      %p106 = scmp.eq.s32.totalorder %s24, 0
      %p107 = por %p105, %p106
      %p108 = scmp.ne.s32.totalorder %s100, %s102
      %p109 = scmp.eq.s32.totalorder %s29, 1
      %p110 = por %p108, %p109
      %p111 = scmp.ne.s32.totalorder %s102, %s103
      %p112 = scmp.eq.s32.totalorder %s29, 0
      %p113 = por %p111, %p112
      %p114 = scmp.ne.s32.totalorder %s102, %s103
      %p115 = scmp.eq.s32.totalorder %s30, 1
      %p116 = por %p114, %p115
      %p118 = scmp.ne.s32.totalorder %s103, %s117
      %p119 = scmp.eq.s32.totalorder %s30, 0
      %p120 = por %p118, %p119
      %s122 = sadd.s32 %s121, 1
      %p125 = scmp.eq.s32.totalorder %s24, 1
      %p126 = scmp.ne.s32.totalorder %s121, %s123
      %p127 = scmp.eq.s32.totalorder %s24, 0
      %p128 = por %p126, %p127
      %p129 = scmp.ne.s32.totalorder %s121, %s123
      %p130 = scmp.eq.s32.totalorder %s29, 1
      %p131 = por %p129, %p130
      %p132 = scmp.ne.s32.totalorder %s123, %s124
      %p133 = scmp.eq.s32.totalorder %s29, 0
      %p134 = por %p132, %p133
      %p135 = scmp.ne.s32.totalorder %s123, %s124
      %p136 = scmp.eq.s32.totalorder %s30, 1
      %p137 = por %p135, %p136
      %p139 = scmp.ne.s32.totalorder %s124, %s138
      %p140 = scmp.eq.s32.totalorder %s30, 0
      %p141 = por %p139, %p140
      %s143 = sadd.s32 %s142, 1
      %p146 = scmp.eq.s32.totalorder %s24, 1
      %p147 = scmp.ne.s32.totalorder %s142, %s144
      %p148 = scmp.eq.s32.totalorder %s24, 0
      %p149 = por %p147, %p148
      %p150 = scmp.ne.s32.totalorder %s142, %s144
      %p151 = scmp.eq.s32.totalorder %s29, 1
      %p152 = por %p150, %p151
      %p153 = scmp.ne.s32.totalorder %s144, %s145
      %p154 = scmp.eq.s32.totalorder %s29, 0
      %p155 = por %p153, %p154
      %p156 = scmp.ne.s32.totalorder %s144, %s145
      %p157 = scmp.eq.s32.totalorder %s30, 1
      %p158 = por %p156, %p157
      %p160 = scmp.ne.s32.totalorder %s145, %s159
      %p161 = scmp.eq.s32.totalorder %s30, 0
      %p162 = por %p160, %p161
      %s164 = sadd.s32 %s163, 1
      %p167 = scmp.eq.s32.totalorder %s24, 1
      %p168 = scmp.ne.s32.totalorder %s163, %s165
      %p169 = scmp.eq.s32.totalorder %s24, 0
      %p170 = por %p168, %p169
      %p171 = scmp.ne.s32.totalorder %s163, %s165
      %p172 = scmp.eq.s32.totalorder %s29, 1
      %p173 = por %p171, %p172
      %p174 = scmp.ne.s32.totalorder %s165, %s166
      %p175 = scmp.eq.s32.totalorder %s29, 0
      %p176 = por %p174, %p175
      %p177 = scmp.ne.s32.totalorder %s165, %s166
      %p178 = scmp.eq.s32.totalorder %s30, 1
      %p179 = por %p177, %p178
      %p181 = scmp.ne.s32.totalorder %s166, %s180
      %p182 = scmp.eq.s32.totalorder %s30, 0
      %p183 = por %p181, %p182
      %s185 = sadd.s32 %s184, 1
      %p188 = scmp.eq.s32.totalorder %s24, 1
      %p189 = scmp.ne.s32.totalorder %s184, %s186
      %p190 = scmp.eq.s32.totalorder %s24, 0
      %p191 = por %p189, %p190
      %p192 = scmp.ne.s32.totalorder %s184, %s186
      %p193 = scmp.eq.s32.totalorder %s29, 1
      %p194 = por %p192, %p193
      %p195 = scmp.ne.s32.totalorder %s186, %s187
      %p196 = scmp.eq.s32.totalorder %s29, 0
      %p197 = por %p195, %p196
      %p198 = scmp.ne.s32.totalorder %s186, %s187
      %p199 = scmp.eq.s32.totalorder %s30, 1
      %p200 = por %p198, %p199
      %p202 = scmp.ne.s32.totalorder %s187, %s201
      %p203 = scmp.eq.s32.totalorder %s30, 0
      %p204 = por %p202, %p203
      %s206 = sadd.s32 %s205, 1
      %p209 = scmp.eq.s32.totalorder %s24, 1
      %p210 = scmp.ne.s32.totalorder %s205, %s207
      %p211 = scmp.eq.s32.totalorder %s24, 0
      %p212 = por %p210, %p211
      %p213 = scmp.ne.s32.totalorder %s205, %s207
      %p214 = scmp.eq.s32.totalorder %s29, 1
      %p215 = por %p213, %p214
      %p216 = scmp.ne.s32.totalorder %s207, %s208
      %p217 = scmp.eq.s32.totalorder %s29, 0
      %p218 = por %p216, %p217
      %p219 = scmp.ne.s32.totalorder %s207, %s208
      %p220 = scmp.eq.s32.totalorder %s30, 1
      %p221 = por %p219, %p220
      %p223 = scmp.ne.s32.totalorder %s208, %s222
      %p224 = scmp.eq.s32.totalorder %s30, 0
      %p225 = por %p223, %p224
      %s227 = sadd.s32 %s226, 1
      %p230 = scmp.eq.s32.totalorder %s24, 1
      %p231 = scmp.ne.s32.totalorder %s226, %s228
      %p232 = scmp.eq.s32.totalorder %s24, 0
      %p233 = por %p231, %p232
      %p234 = scmp.ne.s32.totalorder %s226, %s228
      %p235 = scmp.eq.s32.totalorder %s29, 1
      %p236 = por %p234, %p235
      %p237 = scmp.ne.s32.totalorder %s228, %s229
      %p238 = scmp.eq.s32.totalorder %s29, 0
      %p239 = por %p237, %p238
      %p240 = scmp.ne.s32.totalorder %s228, %s229
      %p241 = scmp.eq.s32.totalorder %s30, 1
      %p242 = por %p240, %p241
      %p244 = scmp.ne.s32.totalorder %s229, %s243
      %p245 = scmp.eq.s32.totalorder %s30, 0
      %p246 = por %p244, %p245
      %s248 = sadd.s32 %s247, 1
      %p251 = scmp.eq.s32.totalorder %s24, 1
      %p252 = scmp.ne.s32.totalorder %s247, %s249
      %p253 = scmp.eq.s32.totalorder %s24, 0
      %p254 = por %p252, %p253
      %p255 = scmp.ne.s32.totalorder %s247, %s249
      %p256 = scmp.eq.s32.totalorder %s29, 1
      %p257 = por %p255, %p256
      %p258 = scmp.ne.s32.totalorder %s249, %s250
      %p259 = scmp.eq.s32.totalorder %s29, 0
      %p260 = por %p258, %p259
      %p261 = scmp.ne.s32.totalorder %s249, %s250
      %p262 = scmp.eq.s32.totalorder %s30, 1
      %p263 = por %p261, %p262
      %p265 = scmp.ne.s32.totalorder %s250, %s264
      %p266 = scmp.eq.s32.totalorder %s30, 0
      %p267 = por %p265, %p266
      %s269 = sadd.s32 %s268, 1
      %p272 = scmp.eq.s32.totalorder %s24, 1
      %p273 = scmp.ne.s32.totalorder %s268, %s270
      %p274 = scmp.eq.s32.totalorder %s24, 0
      %p275 = por %p273, %p274
      %p276 = scmp.ne.s32.totalorder %s268, %s270
      %p277 = scmp.eq.s32.totalorder %s29, 1
      %p278 = por %p276, %p277
      %p279 = scmp.ne.s32.totalorder %s270, %s271
      %p280 = scmp.eq.s32.totalorder %s29, 0
      %p281 = por %p279, %p280
      %p282 = scmp.ne.s32.totalorder %s270, %s271
      %p283 = scmp.eq.s32.totalorder %s30, 1
      %p284 = por %p282, %p283
      %p286 = scmp.ne.s32.totalorder %s271, %s285
      %p287 = scmp.eq.s32.totalorder %s30, 0
      %p288 = por %p286, %p287
      %s290 = sadd.s32 %s289, 1
      %p293 = scmp.eq.s32.totalorder %s24, 1
      %p294 = scmp.ne.s32.totalorder %s289, %s291
      %p295 = scmp.eq.s32.totalorder %s24, 0
      %p296 = por %p294, %p295
      %p297 = scmp.ne.s32.totalorder %s289, %s291
      %p298 = scmp.eq.s32.totalorder %s29, 1
      %p299 = por %p297, %p298
      %p300 = scmp.ne.s32.totalorder %s291, %s292
      %p301 = scmp.eq.s32.totalorder %s29, 0
      %p302 = por %p300, %p301
      %p303 = scmp.ne.s32.totalorder %s291, %s292
      %p304 = scmp.eq.s32.totalorder %s30, 1
      %p305 = por %p303, %p304
      %p307 = scmp.ne.s32.totalorder %s292, %s306
      %p308 = scmp.eq.s32.totalorder %s30, 0
      %p309 = por %p307, %p308
      %s311 = sadd.s32 %s310, 1
      %p314 = scmp.eq.s32.totalorder %s24, 1
      %p315 = scmp.ne.s32.totalorder %s310, %s312
      %p316 = scmp.eq.s32.totalorder %s24, 0
      %p317 = por %p315, %p316
      %p318 = scmp.ne.s32.totalorder %s310, %s312
      %p319 = scmp.eq.s32.totalorder %s29, 1
      %p320 = por %p318, %p319
      %p321 = scmp.ne.s32.totalorder %s312, %s313
      %p322 = scmp.eq.s32.totalorder %s29, 0
      %p323 = por %p321, %p322
      %p324 = scmp.ne.s32.totalorder %s312, %s313
      %p325 = scmp.eq.s32.totalorder %s30, 1
      %p326 = por %p324, %p325
      %p328 = scmp.ne.s32.totalorder %s313, %s327
      %p329 = scmp.eq.s32.totalorder %s30, 0
      %p330 = por %p328, %p329
      %s332 = sadd.s32 %s331, 1
      %p335 = scmp.eq.s32.totalorder %s24, 1
      %p336 = scmp.ne.s32.totalorder %s331, %s333
      %p337 = scmp.eq.s32.totalorder %s24, 0
      %p338 = por %p336, %p337
      %p339 = scmp.ne.s32.totalorder %s331, %s333
      %p340 = scmp.eq.s32.totalorder %s29, 1
      %p341 = por %p339, %p340
      %p342 = scmp.ne.s32.totalorder %s333, %s334
      %p343 = scmp.eq.s32.totalorder %s29, 0
      %p344 = por %p342, %p343
      %p345 = scmp.ne.s32.totalorder %s333, %s334
      %p346 = scmp.eq.s32.totalorder %s30, 1
      %p347 = por %p345, %p346
      %p349 = scmp.ne.s32.totalorder %s334, %s348
      %p350 = scmp.eq.s32.totalorder %s30, 0
      %p351 = por %p349, %p350
      %s352 = ssub.s32 %s24, %s31
      %p353 = scmp.eq.s32.totalorder %s352, 0
      %s355 = sadd.s32 %s354, 1
      %s356 = scalar_select %p353, %s354, %s355
      %p359 = pneg %p353
      %p360 = scmp.eq.s32.totalorder %s24, 1
      %p361 = por %p359, %p360
      %p362 = scmp.ne.s32.totalorder %s354, %s357
      %p363 = scmp.eq.s32.totalorder %s24, 0
      %p364 = por %p362, %p363
      %p365 = scmp.ne.s32.totalorder %s354, %s357
      %p366 = scmp.eq.s32.totalorder %s29, 1
      %p367 = por %p365, %p366
      %p368 = scmp.ne.s32.totalorder %s357, %s358
      %p369 = scmp.eq.s32.totalorder %s29, 0
      %p370 = por %p368, %p369
      %p371 = scmp.ne.s32.totalorder %s357, %s358
      %p372 = scmp.eq.s32.totalorder %s30, 1
      %p373 = por %p371, %p372
      %p375 = scmp.ne.s32.totalorder %s358, %s374
      %p376 = scmp.eq.s32.totalorder %s30, 0
      %p377 = por %p375, %p376
      %p378 = scmp.le.s32.totalorder 1, %s24
      %p379 = scmp.lt.s32.totalorder %s24, 3
      %p380 = pnand %p378, %p379
      %p381 = pneg %p380
      // Predicated region
      $region9: #{lenet5_forward.1} parent=5 // pred_check
        _
      $region10: #{lenet5_forward.1} parent=5 // pred_check_branch
        %383 = sbr.rel (%p380) target = $region12
      $region11: #{lenet5_forward.1} parent=5 // pred_region
        %s384 = ssub.s32 %s24, 1
        // Predicated region
        $region13: #{lenet5_forward.1} parent=11 // pred_check
          %p385 = pneg %p71
        $region14: #{lenet5_forward.1} parent=11 // pred_check_branch
          %387 = sbr.rel (%p385) target = $region16
        $region15: #{lenet5_forward.1} parent=11 // pred_region
          _
        $region16: #{lenet5_forward.1} parent=11 // pred_fallthru
          _
        // Predicated region
        $region17: #{lenet5_forward.1} parent=11 // pred_check
          %p388 = pneg %p92
        $region18: #{lenet5_forward.1} parent=11 // pred_check_branch
          %390 = sbr.rel (%p388) target = $region20
        $region19: #{lenet5_forward.1} parent=11 // pred_region
          _
        $region20: #{lenet5_forward.1} parent=11 // pred_fallthru
          _
        // Predicated region
        $region21: #{lenet5_forward.1} parent=11 // pred_check
          %p391 = pneg %p113
        $region22: #{lenet5_forward.1} parent=11 // pred_check_branch
          %393 = sbr.rel (%p391) target = $region24
        $region23: #{lenet5_forward.1} parent=11 // pred_region
          _
        $region24: #{lenet5_forward.1} parent=11 // pred_fallthru
          _
        // Predicated region
        $region25: #{lenet5_forward.1} parent=11 // pred_check
          %p394 = pneg %p134
        $region26: #{lenet5_forward.1} parent=11 // pred_check_branch
          %396 = sbr.rel (%p394) target = $region28
        $region27: #{lenet5_forward.1} parent=11 // pred_region
          _
        $region28: #{lenet5_forward.1} parent=11 // pred_fallthru
          _
        // Predicated region
        $region29: #{lenet5_forward.1} parent=11 // pred_check
          %p397 = pneg %p155
        $region30: #{lenet5_forward.1} parent=11 // pred_check_branch
          %399 = sbr.rel (%p397) target = $region32
        $region31: #{lenet5_forward.1} parent=11 // pred_region
          _
        $region32: #{lenet5_forward.1} parent=11 // pred_fallthru
          _
        // Predicated region
        $region33: #{lenet5_forward.1} parent=11 // pred_check
          %p400 = pneg %p176
        $region34: #{lenet5_forward.1} parent=11 // pred_check_branch
          %402 = sbr.rel (%p400) target = $region36
        $region35: #{lenet5_forward.1} parent=11 // pred_region
          _
        $region36: #{lenet5_forward.1} parent=11 // pred_fallthru
          _
        // Predicated region
        $region37: #{lenet5_forward.1} parent=11 // pred_check
          %p403 = pneg %p197
        $region38: #{lenet5_forward.1} parent=11 // pred_check_branch
          %405 = sbr.rel (%p403) target = $region40
        $region39: #{lenet5_forward.1} parent=11 // pred_region
          _
        $region40: #{lenet5_forward.1} parent=11 // pred_fallthru
          _
        // Predicated region
        $region41: #{lenet5_forward.1} parent=11 // pred_check
          %p406 = pneg %p218
        $region42: #{lenet5_forward.1} parent=11 // pred_check_branch
          %408 = sbr.rel (%p406) target = $region44
        $region43: #{lenet5_forward.1} parent=11 // pred_region
          _
        $region44: #{lenet5_forward.1} parent=11 // pred_fallthru
          _
        // Predicated region
        $region45: #{lenet5_forward.1} parent=11 // pred_check
          %p409 = pneg %p239
        $region46: #{lenet5_forward.1} parent=11 // pred_check_branch
          %411 = sbr.rel (%p409) target = $region48
        $region47: #{lenet5_forward.1} parent=11 // pred_region
          _
        $region48: #{lenet5_forward.1} parent=11 // pred_fallthru
          _
        // Predicated region
        $region49: #{lenet5_forward.1} parent=11 // pred_check
          %p412 = pneg %p260
        $region50: #{lenet5_forward.1} parent=11 // pred_check_branch
          %414 = sbr.rel (%p412) target = $region52
        $region51: #{lenet5_forward.1} parent=11 // pred_region
          _
        $region52: #{lenet5_forward.1} parent=11 // pred_fallthru
          _
        // Predicated region
        $region53: #{lenet5_forward.1} parent=11 // pred_check
          %p415 = pneg %p281
        $region54: #{lenet5_forward.1} parent=11 // pred_check_branch
          %417 = sbr.rel (%p415) target = $region56
        $region55: #{lenet5_forward.1} parent=11 // pred_region
          _
        $region56: #{lenet5_forward.1} parent=11 // pred_fallthru
          _
        // Predicated region
        $region57: #{lenet5_forward.1} parent=11 // pred_check
          %p418 = pneg %p302
        $region58: #{lenet5_forward.1} parent=11 // pred_check_branch
          %420 = sbr.rel (%p418) target = $region60
        $region59: #{lenet5_forward.1} parent=11 // pred_region
          _
        $region60: #{lenet5_forward.1} parent=11 // pred_fallthru
          _
        // Predicated region
        $region61: #{lenet5_forward.1} parent=11 // pred_check
          %p421 = pneg %p323
        $region62: #{lenet5_forward.1} parent=11 // pred_check_branch
          %423 = sbr.rel (%p421) target = $region64
        $region63: #{lenet5_forward.1} parent=11 // pred_region
          _
        $region64: #{lenet5_forward.1} parent=11 // pred_fallthru
          _
        // Predicated region
        $region65: #{lenet5_forward.1} parent=11 // pred_check
          %p424 = pneg %p344
        $region66: #{lenet5_forward.1} parent=11 // pred_check_branch
          %426 = sbr.rel (%p424) target = $region68
        $region67: #{lenet5_forward.1} parent=11 // pred_region
          _
        $region68: #{lenet5_forward.1} parent=11 // pred_fallthru
          _
      $region12: #{lenet5_forward.1} parent=5 // pred_fallthru
        _
      %p427 = scmp.lt.s32.totalorder %s24, 2
      // Predicated region
      $region69: #{lenet5_forward.1} parent=5 // pred_check
        %p428 = pneg %p427
      $region70: #{lenet5_forward.1} parent=5 // pred_check_branch
        %430 = sbr.rel (%p428) target = $region72
      $region71: #{lenet5_forward.1} parent=5 // pred_region
        // Predicated region
        $region73: #{lenet5_forward.1} parent=71 // pred_check
          %p431 = pneg %p44
        $region74: #{lenet5_forward.1} parent=71 // pred_check_branch
          %433 = sbr.rel (%p431) target = $region76
        $region75: #{lenet5_forward.1} parent=71 // pred_region
          %p434 = scmp.lt.s32.totalorder %s24, 1
          %s435 = scalar_select %p434, %s24, 1
          %s436 = smul.addr %s435, 4
          %s437 = smul.addr %s436, 4
          %s438 = scalar_lea.vmem %s0, %s437
        $region76: #{lenet5_forward.1} parent=71 // pred_fallthru
          _
      $region72: #{lenet5_forward.1} parent=5 // pred_fallthru
        _
      %p439 = scmp.le.s32.totalorder 1, %s24
      %p440 = scmp.lt.s32.totalorder %s24, 3
      %p441 = pnand %p439, %p440
      %p442 = pneg %p441
      // Predicated region
      $region77: #{lenet5_forward.1} parent=5 // pred_check
        _
      $region78: #{lenet5_forward.1} parent=5 // pred_check_branch
        %444 = sbr.rel (%p441) target = $region80
      $region79: #{lenet5_forward.1} parent=5 // pred_region
        %s445 = ssub.s32 %s24, 1
        %p446 = scmp.lt.s32.totalorder %s29, 1
        %s447 = scalar_select %p446, %s29, 1
        %s448 = smul.addr %s447, 4
        %s449 = smul.addr %s448, 4
        %s450 = scalar_lea.vmem %s0, %s449
        %p451 = pneg %p50
        %p452 = pneg %p47
        %p453 = pneg %p71
        %p454 = pneg %p68
        %p455 = pneg %p92
        %p456 = pneg %p89
        %p457 = pneg %p113
        %p458 = pneg %p110
        %p459 = pneg %p134
        %p460 = pneg %p131
        %p461 = pneg %p155
        %p462 = pneg %p152
        %p463 = pneg %p176
        %p464 = pneg %p173
        %p465 = pneg %p197
        %p466 = pneg %p194
        %p467 = pneg %p218
        %p468 = pneg %p215
        %p469 = pneg %p239
        %p470 = pneg %p236
        %p471 = pneg %p260
        %p472 = pneg %p257
        %p473 = pneg %p281
        %p474 = pneg %p278
        %p475 = pneg %p302
        %p476 = pneg %p299
        %p477 = pneg %p323
        %p478 = pneg %p320
        %p479 = pneg %p344
        %p480 = pneg %p341
        %p481 = pneg %p370
        %p482 = pneg %p367
        %s483 = sand.u32 %s357, 1
        %s484 = scalar_lea.sflag [#allocation3], %s483
        %s485 = sand.u32 %s357, 1
        %s486 = scalar_lea.vmem [#allocation2], %s485
        %p487 = scmp.lt.s32.totalorder %s29, 1
        %s488 = scalar_select %p487, %s29, 1
        %s489 = smul.addr %s488, 4
        %s490 = smul.addr %s489, 4
        %s491 = scalar_lea.vmem %s0, %s490
        %v493 = vld [vmem:[%s491] sm:$0xf]
        %v494 = vld [vmem:[%s491 + $0x4] sm:$0xf]
        %v495 = vld [vmem:[%s491 + $0x8] sm:$0xf]
        %v496 = vld [vmem:[%s491 + $0xc] sm:$0xf]
        %v497 = vld [vmem:[%s1] sm:$0xff]
        %v498 = vld [vmem:[%s1 + $0x8] sm:$0xff]
        %v499 = vld [vmem:[%s1 + $0x10] sm:$0xff]
        %v500 = vld [vmem:[%s1 + $0x18] sm:$0xff]
        %s501 = scalar_lea.vmem %s1, 32
        %v502 = vld [vmem:[%s501] sm:$0xff]
        %v503 = vld [vmem:[%s501 + $0x8] sm:$0xff]
        %v504 = vld [vmem:[%s501 + $0x10] sm:$0xff]
        %v505 = vld [vmem:[%s501 + $0x18] sm:$0xff]
        %v510 = vunpack.c.l.b16 %v493
        %v511 = vunpack.c.l.b16 %v494
        %v512 = vunpack.c.l.b16 %v495
        %v513 = vunpack.c.l.b16 %v496
        %v514 = vpack.c.b16 %v511, %v510
        %v515 = vpack.c.b16 %v513, %v512
        %vm516 = vsmask.f32 7424
        %v518 = vshrl.u32 %v514, 16
        %v520 = vshll.u32 %v514, 16
        %v522 = vrot.slane %v520, 1
        %v523 = vor.u32 %v518, %v522
        %v525 = vshll.u32 %v515, 16
        %v527 = vrot.slane %v525, 1
        %v528 = vsel %vm516, %v523, %v527
        %v529 = vshrl.u32 %v515, 16
        %v531 = vor.u32 %v529, %v527
        %v536 = vunpack.c.l.b16 %v502
        %v537 = vunpack.c.h.b16 %v502
        %v538 = vunpack.c.l.b16 %v503
        %v539 = vunpack.c.h.b16 %v503
        %v540 = vunpack.c.l.b16 %v504
        %v541 = vunpack.c.h.b16 %v504
        %v542 = vunpack.c.l.b16 %v505
        %v543 = vunpack.c.h.b16 %v505
        %v544 = vpack.c.b16 %v538, %v536
        %v545 = vpack.c.b16 %v539, %v537
        %v546 = vpack.c.b16 %v542, %v540
        %v547 = vpack.c.b16 %v543, %v541
        %vm552 = vcmask 261120
        %v554 = vsel %vm552, %v528, 0
        %v557 = vsel %vm552, %v531, 0
        %559 = vmatprep.subr.bf16.mxu0 %v545
        %560 = vmatpush1.bf16.msra.mxu0 %v544
        %561 = vmatprep.subr.bf16.mxu0 %v547
        %562 = vmatpush1.bf16.msra.mxu0 %v546
        %563 = vmatprep.subr.bf16.mxu0 0
        %564 = vmatpush1.bf16.msra.mxu0 0
        %565 = vmatprep.subr.bf16.mxu0 0
        %566 = vmatpush1.bf16.msra.mxu0 0
        %567 = vmatprep.subr.bf16.mxu0 0
        %568 = vmatpush1.bf16.msra.mxu0 0
        %569 = vmatprep.subr.bf16.mxu0 0
        %570 = vmatpush1.bf16.msra.mxu0 0
        %571 = vmatprep.subr.bf16.mxu0 0
        %572 = vmatpush1.bf16.msra.mxu0 0
        %573 = vmatprep.subr.bf16.mxu0 0
        %574 = vmatpush1.bf16.msra.mxu0 0
        %575 = vmatprep.subr.bf16.mxu0 0
        %576 = vmatpush1.bf16.msra.mxu0 0
        %577 = vmatprep.subr.bf16.mxu0 0
        %578 = vmatpush1.bf16.msra.mxu0 0
        %579 = vmatprep.subr.bf16.mxu0 0
        %580 = vmatpush1.bf16.msra.mxu0 0
        %581 = vmatprep.subr.bf16.mxu0 0
        %582 = vmatpush1.bf16.msra.mxu0 0
        %583 = vmatprep.subr.bf16.mxu0 0
        %584 = vmatpush1.bf16.msra.mxu0 0
        %585 = vmatprep.subr.bf16.mxu0 0
        %586 = vmatpush1.bf16.msra.mxu0 0
        %587 = vmatprep.subr.bf16.mxu0 0
        %588 = vmatpush1.bf16.msra.mxu0 0
        %589 = vmatprep.subr.bf16.mxu0 0
        %590 = vmatpush1.bf16.msra.mxu0 0
        %591 = vmatprep.mubr.bf16.mxu0 0
        %592 = vmatmul.mubr.bf16.gmra.mrb[0].mxu0 %v554
        %v593 = vpop.f32.mrb[0].mxu0
        %v594 = vadd.f32 0.0, %v593
        %v595 = vpop.f32.mrb[0].mxu0
        %v596 = vadd.f32 0.0, %v595
        %v597 = vpop.f32.mrb[0].mxu0
        %v598 = vadd.f32 0.0, %v597
        %v599 = vpop.f32.mrb[0].mxu0
        %v600 = vadd.f32 0.0, %v599
        %601 = vmatprep.mubr.bf16.mxu0 0
        %602 = vmatmul.mubr.bf16.gmra.mrb[0].mxu0 %v557
        %v603 = vpop.f32.mrb[0].mxu0
        %v604 = vadd.f32 0.0, %v603
        %v605 = vpop.f32.mrb[0].mxu0
        %v606 = vadd.f32 0.0, %v605
        %v607 = vpop.f32.mrb[0].mxu0
        %v608 = vadd.f32 0.0, %v607
        %v609 = vpop.f32.mrb[0].mxu0
        %v610 = vadd.f32 0.0, %v609
        %611 = vdwg.mxu0
        %v616 = vunpack.c.l.b16 %v497
        %v617 = vunpack.c.h.b16 %v497
        %v618 = vunpack.c.l.b16 %v498
        %v619 = vunpack.c.h.b16 %v498
        %v620 = vunpack.c.l.b16 %v499
        %v621 = vunpack.c.h.b16 %v499
        %v622 = vunpack.c.l.b16 %v500
        %v623 = vunpack.c.h.b16 %v500
        %v624 = vpack.c.b16 %v618, %v616
        %v625 = vpack.c.b16 %v619, %v617
        %v626 = vpack.c.b16 %v622, %v620
        %v627 = vpack.c.b16 %v623, %v621
        %v632 = vsel %vm552, %v514, 0
        %v634 = vsel %vm552, %v515, 0
        %636 = vmatprep.subr.bf16.mxu0 %v625
        %637 = vmatpush1.bf16.msra.mxu0 %v624
        %638 = vmatprep.subr.bf16.mxu0 %v627
        %639 = vmatpush1.bf16.msra.mxu0 %v626
        %640 = vmatprep.subr.bf16.mxu0 0
        %641 = vmatpush1.bf16.msra.mxu0 0
        %642 = vmatprep.subr.bf16.mxu0 0
        %643 = vmatpush1.bf16.msra.mxu0 0
        %644 = vmatprep.subr.bf16.mxu0 0
        %645 = vmatpush1.bf16.msra.mxu0 0
        %646 = vmatprep.subr.bf16.mxu0 0
        %647 = vmatpush1.bf16.msra.mxu0 0
        %648 = vmatprep.subr.bf16.mxu0 0
        %649 = vmatpush1.bf16.msra.mxu0 0
        %650 = vmatprep.subr.bf16.mxu0 0
        %651 = vmatpush1.bf16.msra.mxu0 0
        %652 = vmatprep.subr.bf16.mxu0 0
        %653 = vmatpush1.bf16.msra.mxu0 0
        %654 = vmatprep.subr.bf16.mxu0 0
        %655 = vmatpush1.bf16.msra.mxu0 0
        %656 = vmatprep.subr.bf16.mxu0 0
        %657 = vmatpush1.bf16.msra.mxu0 0
        %658 = vmatprep.subr.bf16.mxu0 0
        %659 = vmatpush1.bf16.msra.mxu0 0
        %660 = vmatprep.subr.bf16.mxu0 0
        %661 = vmatpush1.bf16.msra.mxu0 0
        %662 = vmatprep.subr.bf16.mxu0 0
        %663 = vmatpush1.bf16.msra.mxu0 0
        %664 = vmatprep.subr.bf16.mxu0 0
        %665 = vmatpush1.bf16.msra.mxu0 0
        %666 = vmatprep.subr.bf16.mxu0 0
        %667 = vmatpush1.bf16.msra.mxu0 0
        %668 = vmatprep.mubr.bf16.mxu0 0
        %669 = vmatmul.mubr.bf16.gmra.mrb[0].mxu0 %v632
        %v670 = vpop.f32.mrb[0].mxu0
        %v671 = vadd.f32 %v594, %v670
        %v672 = vpop.f32.mrb[0].mxu0
        %v673 = vadd.f32 %v596, %v672
        %v674 = vpop.f32.mrb[0].mxu0
        %v675 = vadd.f32 %v598, %v674
        %v676 = vpop.f32.mrb[0].mxu0
        %v677 = vadd.f32 %v600, %v676
        %678 = vmatprep.mubr.bf16.mxu0 0
        %679 = vmatmul.mubr.bf16.gmra.mrb[0].mxu0 %v634
        %v680 = vpop.f32.mrb[0].mxu0
        %v681 = vadd.f32 %v604, %v680
        %v682 = vpop.f32.mrb[0].mxu0
        %v683 = vadd.f32 %v606, %v682
        %v684 = vpop.f32.mrb[0].mxu0
        %v685 = vadd.f32 %v608, %v684
        %v686 = vpop.f32.mrb[0].mxu0
        %v687 = vadd.f32 %v610, %v686
        %688 = vdwg.mxu0
        %s689 = scalar_lea.vmem %s1, 64
        %v690 = vld [vmem:[%s689] sm:$0xff]
        %v691 = vld [vmem:[%s689 + $0x8] sm:$0xff]
        %v692 = vld [vmem:[%s689 + $0x10] sm:$0xff]
        %v693 = vld [vmem:[%s689 + $0x18] sm:$0xff]
        %vm694 = vcmask 1046528
        %v695 = vrot.slane %v514, 1
        %v696 = vrot.slane %v515, 1
        %v697 = vsel %vm694, %v695, %v696
        %v702 = vunpack.c.l.b16 %v690
        %v703 = vunpack.c.h.b16 %v690
        %v704 = vunpack.c.l.b16 %v691
        %v705 = vunpack.c.h.b16 %v691
        %v706 = vunpack.c.l.b16 %v692
        %v707 = vunpack.c.h.b16 %v692
        %v708 = vunpack.c.l.b16 %v693
        %v709 = vunpack.c.h.b16 %v693
        %v710 = vpack.c.b16 %v704, %v702
        %v711 = vpack.c.b16 %v705, %v703
        %v712 = vpack.c.b16 %v708, %v706
        %v713 = vpack.c.b16 %v709, %v707
        %v719 = vsel %vm552, %v697, 0
        %v722 = vsel %vm552, %v696, 0
        %724 = vmatprep.subr.bf16.mxu0 %v711
        %725 = vmatpush1.bf16.msra.mxu0 %v710
        %726 = vmatprep.subr.bf16.mxu0 %v713
        %727 = vmatpush1.bf16.msra.mxu0 %v712
        %728 = vmatprep.subr.bf16.mxu0 0
        %729 = vmatpush1.bf16.msra.mxu0 0
        %730 = vmatprep.subr.bf16.mxu0 0
        %731 = vmatpush1.bf16.msra.mxu0 0
        %732 = vmatprep.subr.bf16.mxu0 0
        %733 = vmatpush1.bf16.msra.mxu0 0
        %734 = vmatprep.subr.bf16.mxu0 0
        %735 = vmatpush1.bf16.msra.mxu0 0
        %736 = vmatprep.subr.bf16.mxu0 0
        %737 = vmatpush1.bf16.msra.mxu0 0
        %738 = vmatprep.subr.bf16.mxu0 0
        %739 = vmatpush1.bf16.msra.mxu0 0
        %740 = vmatprep.subr.bf16.mxu0 0
        %741 = vmatpush1.bf16.msra.mxu0 0
        %742 = vmatprep.subr.bf16.mxu0 0
        %743 = vmatpush1.bf16.msra.mxu0 0
        %744 = vmatprep.subr.bf16.mxu0 0
        %745 = vmatpush1.bf16.msra.mxu0 0
        %746 = vmatprep.subr.bf16.mxu0 0
        %747 = vmatpush1.bf16.msra.mxu0 0
        %748 = vmatprep.subr.bf16.mxu0 0
        %749 = vmatpush1.bf16.msra.mxu0 0
        %750 = vmatprep.subr.bf16.mxu0 0
        %751 = vmatpush1.bf16.msra.mxu0 0
        %752 = vmatprep.subr.bf16.mxu0 0
        %753 = vmatpush1.bf16.msra.mxu0 0
        %754 = vmatprep.subr.bf16.mxu0 0
        %755 = vmatpush1.bf16.msra.mxu0 0
        %756 = vmatprep.mubr.bf16.mxu0 0
        %757 = vmatmul.mubr.bf16.gmra.mrb[0].mxu0 %v719
        %v758 = vpop.f32.mrb[0].mxu0
        %v759 = vadd.f32 0.0, %v758
        %v760 = vpop.f32.mrb[0].mxu0
        %v761 = vadd.f32 0.0, %v760
        %v762 = vpop.f32.mrb[0].mxu0
        %v763 = vadd.f32 0.0, %v762
        %v764 = vpop.f32.mrb[0].mxu0
        %v765 = vadd.f32 0.0, %v764
        %766 = vmatprep.mubr.bf16.mxu0 0
        %767 = vmatmul.mubr.bf16.gmra.mrb[0].mxu0 %v722
        %v768 = vpop.f32.mrb[0].mxu0
        %v769 = vadd.f32 0.0, %v768
        %v770 = vpop.f32.mrb[0].mxu0
        %v771 = vadd.f32 0.0, %v770
        %v772 = vpop.f32.mrb[0].mxu0
        %v773 = vadd.f32 0.0, %v772
        %v774 = vpop.f32.mrb[0].mxu0
        %v775 = vadd.f32 0.0, %v774
        %776 = vdwg.mxu0
        %v777 = vadd.f32 %v671, %v759
        %v778 = vadd.f32 %v673, %v761
        %v779 = vadd.f32 %v675, %v763
        %v780 = vadd.f32 %v677, %v765
        %v781 = vadd.f32 %v681, %v769
        %v782 = vadd.f32 %v683, %v771
        %v783 = vadd.f32 %v685, %v773
        %v784 = vadd.f32 %v687, %v775
        %s785 = scalar_lea.vmem %s1, 96
        %v786 = vld [vmem:[%s785] sm:$0xff]
        %v787 = vld [vmem:[%s785 + $0x8] sm:$0xff]
        %v788 = vld [vmem:[%s785 + $0x10] sm:$0xff]
        %v789 = vld [vmem:[%s785 + $0x18] sm:$0xff]
        %vm790 = vsmask.f32 6400
        %v791 = vrot.slane %v518, 1
        %v792 = vrot.slane %v520, 2
        %v793 = vor.u32 %v791, %v792
        %v794 = vrot.slane %v529, 1
        %v795 = vrot.slane %v525, 2
        %v796 = vor.u32 %v794, %v795
        %v797 = vsel %vm790, %v793, %v796
        %v802 = vunpack.c.l.b16 %v786
        %v803 = vunpack.c.h.b16 %v786
        %v804 = vunpack.c.l.b16 %v787
        %v805 = vunpack.c.h.b16 %v787
        %v806 = vunpack.c.l.b16 %v788
        %v807 = vunpack.c.h.b16 %v788
        %v808 = vunpack.c.l.b16 %v789
        %v809 = vunpack.c.h.b16 %v789
        %v810 = vpack.c.b16 %v804, %v802
        %v811 = vpack.c.b16 %v805, %v803
        %v812 = vpack.c.b16 %v808, %v806
        %v813 = vpack.c.b16 %v809, %v807
        %v819 = vsel %vm552, %v797, 0
        %v822 = vsel %vm552, %v796, 0
        %824 = vmatprep.subr.bf16.mxu0 %v811
        %825 = vmatpush1.bf16.msra.mxu0 %v810
        %826 = vmatprep.subr.bf16.mxu0 %v813
        %827 = vmatpush1.bf16.msra.mxu0 %v812
        %828 = vmatprep.subr.bf16.mxu0 0
        %829 = vmatpush1.bf16.msra.mxu0 0
        %830 = vmatprep.subr.bf16.mxu0 0
        %831 = vmatpush1.bf16.msra.mxu0 0
        %832 = vmatprep.subr.bf16.mxu0 0
        %833 = vmatpush1.bf16.msra.mxu0 0
        %834 = vmatprep.subr.bf16.mxu0 0
        %835 = vmatpush1.bf16.msra.mxu0 0
        %836 = vmatprep.subr.bf16.mxu0 0
        %837 = vmatpush1.bf16.msra.mxu0 0
        %838 = vmatprep.subr.bf16.mxu0 0
        %839 = vmatpush1.bf16.msra.mxu0 0
        %840 = vmatprep.subr.bf16.mxu0 0
        %841 = vmatpush1.bf16.msra.mxu0 0
        %842 = vmatprep.subr.bf16.mxu0 0
        %843 = vmatpush1.bf16.msra.mxu0 0
        %844 = vmatprep.subr.bf16.mxu0 0
        %845 = vmatpush1.bf16.msra.mxu0 0
        %846 = vmatprep.subr.bf16.mxu0 0
        %847 = vmatpush1.bf16.msra.mxu0 0
        %848 = vmatprep.subr.bf16.mxu0 0
        %849 = vmatpush1.bf16.msra.mxu0 0
        %850 = vmatprep.subr.bf16.mxu0 0
        %851 = vmatpush1.bf16.msra.mxu0 0
        %852 = vmatprep.subr.bf16.mxu0 0
        %853 = vmatpush1.bf16.msra.mxu0 0
        %854 = vmatprep.subr.bf16.mxu0 0
        %855 = vmatpush1.bf16.msra.mxu0 0
        %856 = vmatprep.mubr.bf16.mxu0 0
        %857 = vmatmul.mubr.bf16.gmra.mrb[0].mxu0 %v819
        %v858 = vpop.f32.mrb[0].mxu0
        %v859 = vadd.f32 0.0, %v858
        %v860 = vpop.f32.mrb[0].mxu0
        %v861 = vadd.f32 0.0, %v860
        %v862 = vpop.f32.mrb[0].mxu0
        %v863 = vadd.f32 0.0, %v862
        %v864 = vpop.f32.mrb[0].mxu0
        %v865 = vadd.f32 0.0, %v864
        %866 = vmatprep.mubr.bf16.mxu0 0
        %867 = vmatmul.mubr.bf16.gmra.mrb[0].mxu0 %v822
        %v868 = vpop.f32.mrb[0].mxu0
        %v869 = vadd.f32 0.0, %v868
        %v870 = vpop.f32.mrb[0].mxu0
        %v871 = vadd.f32 0.0, %v870
        %v872 = vpop.f32.mrb[0].mxu0
        %v873 = vadd.f32 0.0, %v872
        %v874 = vpop.f32.mrb[0].mxu0
        %v875 = vadd.f32 0.0, %v874
        %876 = vdwg.mxu0
        %v877 = vadd.f32 %v777, %v859
        %v878 = vadd.f32 %v778, %v861
        %v879 = vadd.f32 %v779, %v863
        %v880 = vadd.f32 %v780, %v865
        %v881 = vadd.f32 %v781, %v869
        %v882 = vadd.f32 %v782, %v871
        %v883 = vadd.f32 %v783, %v873
        %v884 = vadd.f32 %v784, %v875
        %s885 = scalar_lea.vmem %s1, 128
        %v886 = vld [vmem:[%s885] sm:$0xff]
        %v887 = vld [vmem:[%s885 + $0x8] sm:$0xff]
        %v888 = vld [vmem:[%s885 + $0x10] sm:$0xff]
        %v889 = vld [vmem:[%s885 + $0x18] sm:$0xff]
        %vm890 = vcmask 1045504
        %v891 = vrot.slane %v514, 2
        %v892 = vrot.slane %v515, 2
        %v893 = vsel %vm890, %v891, %v892
        %v898 = vunpack.c.l.b16 %v886
        %v899 = vunpack.c.h.b16 %v886
        %v900 = vunpack.c.l.b16 %v887
        %v901 = vunpack.c.h.b16 %v887
        %v902 = vunpack.c.l.b16 %v888
        %v903 = vunpack.c.h.b16 %v888
        %v904 = vunpack.c.l.b16 %v889
        %v905 = vunpack.c.h.b16 %v889
        %v906 = vpack.c.b16 %v900, %v898
        %v907 = vpack.c.b16 %v901, %v899
        %v908 = vpack.c.b16 %v904, %v902
        %v909 = vpack.c.b16 %v905, %v903
        %v915 = vsel %vm552, %v893, 0
        %v918 = vsel %vm552, %v892, 0
        %920 = vmatprep.subr.bf16.mxu0 %v907
        %921 = vmatpush1.bf16.msra.mxu0 %v906
        %922 = vmatprep.subr.bf16.mxu0 %v909
        %923 = vmatpush1.bf16.msra.mxu0 %v908
        %924 = vmatprep.subr.bf16.mxu0 0
        %925 = vmatpush1.bf16.msra.mxu0 0
        %926 = vmatprep.subr.bf16.mxu0 0
        %927 = vmatpush1.bf16.msra.mxu0 0
        %928 = vmatprep.subr.bf16.mxu0 0
        %929 = vmatpush1.bf16.msra.mxu0 0
        %930 = vmatprep.subr.bf16.mxu0 0
        %931 = vmatpush1.bf16.msra.mxu0 0
        %932 = vmatprep.subr.bf16.mxu0 0
        %933 = vmatpush1.bf16.msra.mxu0 0
        %934 = vmatprep.subr.bf16.mxu0 0
        %935 = vmatpush1.bf16.msra.mxu0 0
        %936 = vmatprep.subr.bf16.mxu0 0
        %937 = vmatpush1.bf16.msra.mxu0 0
        %938 = vmatprep.subr.bf16.mxu0 0
        %939 = vmatpush1.bf16.msra.mxu0 0
        %940 = vmatprep.subr.bf16.mxu0 0
        %941 = vmatpush1.bf16.msra.mxu0 0
        %942 = vmatprep.subr.bf16.mxu0 0
        %943 = vmatpush1.bf16.msra.mxu0 0
        %944 = vmatprep.subr.bf16.mxu0 0
        %945 = vmatpush1.bf16.msra.mxu0 0
        %946 = vmatprep.subr.bf16.mxu0 0
        %947 = vmatpush1.bf16.msra.mxu0 0
        %948 = vmatprep.subr.bf16.mxu0 0
        %949 = vmatpush1.bf16.msra.mxu0 0
        %950 = vmatprep.subr.bf16.mxu0 0
        %951 = vmatpush1.bf16.msra.mxu0 0
        %952 = vmatprep.mubr.bf16.mxu0 0
        %953 = vmatmul.mubr.bf16.gmra.mrb[0].mxu0 %v915
        %v954 = vpop.f32.mrb[0].mxu0
        %v955 = vadd.f32 0.0, %v954
        %v956 = vpop.f32.mrb[0].mxu0
        %v957 = vadd.f32 0.0, %v956
        %v958 = vpop.f32.mrb[0].mxu0
        %v959 = vadd.f32 0.0, %v958
        %v960 = vpop.f32.mrb[0].mxu0
        %v961 = vadd.f32 0.0, %v960
        %962 = vmatprep.mubr.bf16.mxu0 0
        %963 = vmatmul.mubr.bf16.gmra.mrb[0].mxu0 %v918
        %v964 = vpop.f32.mrb[0].mxu0
        %v965 = vadd.f32 0.0, %v964
        %v966 = vpop.f32.mrb[0].mxu0
        %v967 = vadd.f32 0.0, %v966
        %v968 = vpop.f32.mrb[0].mxu0
        %v969 = vadd.f32 0.0, %v968
        %v970 = vpop.f32.mrb[0].mxu0
        %v971 = vadd.f32 0.0, %v970
        %972 = vdwg.mxu0
        %v973 = vadd.f32 %v877, %v955
        %v974 = vadd.f32 %v878, %v957
        %v975 = vadd.f32 %v879, %v959
        %v976 = vadd.f32 %v880, %v961
        %v977 = vadd.f32 %v881, %v965
        %v978 = vadd.f32 %v882, %v967
        %v979 = vadd.f32 %v883, %v969
        %v980 = vadd.f32 %v884, %v971
        %v981 = vld [vmem:[%s2] sm:$0x3]
        %v983 = vlaneseq
        %v984 = vshrl.u32 %v983, 7
        %v985 = vsub.s32 0, %v984
        %v986 = vrot.slane %v981, %v985
        %v987 = vlaneseq
        %v988 = vshrl.u32 %v987, 7
        %v989 = vsub.s32 1, %v988
        %v990 = vrot.slane %v981, %v989
        %v993 = vadd.f32 %v973, %v986
        %v994 = vadd.f32 %v974, %v990
        %v995 = vadd.f32 %v975, %v986
        %v996 = vadd.f32 %v976, %v990
        %v997 = vadd.f32 %v977, %v986
        %v998 = vadd.f32 %v978, %v990
        %v999 = vadd.f32 %v979, %v986
        %v1000 = vadd.f32 %v980, %v990
        %v1001 = vtanh.pop %v993
        %v1002 = vtanh.pop %v994
        %v1003 = vtanh.pop %v995
        %v1004 = vtanh.pop %v996
        %v1005 = vtanh.pop %v997
        %v1006 = vtanh.pop %v998
        %v1007 = vtanh.pop %v999
        %v1008 = vtanh.pop %v1000
        %v1009 = vld [vmem:[%s3] sm:$0xf]
        %v1010 = vld [vmem:[%s3 + $0x4] sm:$0x7]
        %v1011 = vpack.c.bf16 %v1003, %v1001
        %v1012 = vpack.c.bf16 %v1004, %v1002
        %v1013 = vpack.c.bf16 %v1007, %v1005
        %v1014 = vpack.c.bf16 %v1008, %v1006
        %v1017 = vunpack.c.l.b16 %v1009
        %v1018 = vunpack.c.l.b16 %v1010
        %v1019 = vpack.c.b16 %v1018, %v1017
        %vm1020 = vcmask 228352
        %v1022 = vsel %vm1020, %v1019, 0
        %vm1024 = vcmask 1045504
        %v1026 = vsel %vm1024, %v1013, 0
        %v1029 = vsel %vm1024, %v1014, 0
        %1031 = vmatprep.subr.bf16.mxu0 %v1012
        %1032 = vmatpush1.bf16.msra.mxu0 %v1011
        %1033 = vmatprep.subr.bf16.mxu0 %v1029
        %1034 = vmatpush1.bf16.msra.mxu0 %v1026
        %1035 = vmatprep.subr.bf16.mxu0 0
        %1036 = vmatpush1.bf16.msra.mxu0 0
        %1037 = vmatprep.subr.bf16.mxu0 0
        %1038 = vmatpush1.bf16.msra.mxu0 0
        %1039 = vmatprep.subr.bf16.mxu0 0
        %1040 = vmatpush1.bf16.msra.mxu0 0
        %1041 = vmatprep.subr.bf16.mxu0 0
        %1042 = vmatpush1.bf16.msra.mxu0 0
        %1043 = vmatprep.subr.bf16.mxu0 0
        %1044 = vmatpush1.bf16.msra.mxu0 0
        %1045 = vmatprep.subr.bf16.mxu0 0
        %1046 = vmatpush1.bf16.msra.mxu0 0
        %1047 = vmatprep.subr.bf16.mxu0 0
        %1048 = vmatpush1.bf16.msra.mxu0 0
        %1049 = vmatprep.subr.bf16.mxu0 0
        %1050 = vmatpush1.bf16.msra.mxu0 0
        %1051 = vmatprep.subr.bf16.mxu0 0
        %1052 = vmatpush1.bf16.msra.mxu0 0
        %1053 = vmatprep.subr.bf16.mxu0 0
        %1054 = vmatpush1.bf16.msra.mxu0 0
        %1055 = vmatprep.subr.bf16.mxu0 0
        %1056 = vmatpush1.bf16.msra.mxu0 0
        %1057 = vmatprep.subr.bf16.mxu0 0
        %1058 = vmatpush1.bf16.msra.mxu0 0
        %1059 = vmatprep.subr.bf16.mxu0 0
        %1060 = vmatpush1.bf16.msra.mxu0 0
        %1061 = vmatprep.subr.bf16.mxu0 0
        %1062 = vmatpush1.bf16.msra.mxu0 0
        %1063 = vmatprep.mubr.bf16.mxu0 0
        %1064 = vmatmul.mubr.bf16.gmra.mrb[0].mxu0 %v1022
        %v1065 = vpop.f32.mrb[0].mxu0
        %v1066 = vadd.f32 0.0, %v1065
        %v1067 = vpop.f32.mrb[0].mxu0
        %v1068 = vadd.f32 0.0, %v1067
        %v1069 = vpop.f32.mrb[0].mxu0
        %v1070 = vadd.f32 0.0, %v1069
        %v1071 = vpop.f32.mrb[0].mxu0
        %v1072 = vadd.f32 0.0, %v1071
        %1073 = vdwg.mxu0
        %v1074 = vpack.c.bf16 %v1070, %v1066
        %v1075 = vpack.c.bf16 %v1072, %v1068
        %v1076 = vld [vmem:[%s4] sm:$0xf]
        %v1077 = vld [vmem:[%s4 + $0x4] sm:$0xf]
        %v1078 = vld [vmem:[%s4 + $0x8] sm:$0xf]
        %v1079 = vld [vmem:[%s4 + $0xc] sm:$0xf]
        %v1080 = vld [vmem:[%s4 + $0x10] sm:$0xf]
        %v1081 = vld [vmem:[%s4 + $0x14] sm:$0xf]
        %v1082 = vld [vmem:[%s4 + $0x18] sm:$0xf]
        %v1083 = vld [vmem:[%s4 + $0x1c] sm:$0xf]
        %v1084 = vld [vmem:[%s4 + $0x20] sm:$0xf]
        %v1085 = vld [vmem:[%s4 + $0x24] sm:$0xf]
        %v1086 = vld [vmem:[%s4 + $0x28] sm:$0xf]
        %v1087 = vld [vmem:[%s4 + $0x2c] sm:$0xf]
        %v1088 = vld [vmem:[%s4 + $0x30] sm:$0xf]
        %v1089 = vld [vmem:[%s4 + $0x34] sm:$0xf]
        %v1090 = vld [vmem:[%s4 + $0x38] sm:$0xf]
        %v1091 = vld [vmem:[%s4 + $0x3c] sm:$0xf]
        %v1092 = vld [vmem:[%s4 + $0x40] sm:$0xf]
        %v1093 = vld [vmem:[%s4 + $0x44] sm:$0xf]
        %v1094 = vld [vmem:[%s4 + $0x48] sm:$0xf]
        %v1095 = vld [vmem:[%s4 + $0x4c] sm:$0xf]
        %v1096 = vld [vmem:[%s4 + $0x50] sm:$0xf]
        %v1118 = vunpack.c.l.b16 %v1076
        %v1119 = vunpack.c.l.b16 %v1077
        %v1120 = vunpack.c.l.b16 %v1078
        %v1121 = vunpack.c.l.b16 %v1079
        %v1122 = vunpack.c.l.b16 %v1080
        %v1123 = vunpack.c.l.b16 %v1081
        %v1124 = vunpack.c.l.b16 %v1082
        %v1125 = vunpack.c.l.b16 %v1083
        %v1126 = vunpack.c.l.b16 %v1084
        %v1127 = vunpack.c.l.b16 %v1085
        %v1128 = vunpack.c.l.b16 %v1086
        %v1129 = vunpack.c.l.b16 %v1087
        %v1130 = vunpack.c.l.b16 %v1088
        %v1131 = vunpack.c.l.b16 %v1089
        %v1132 = vunpack.c.l.b16 %v1090
        %v1133 = vunpack.c.l.b16 %v1091
        %v1134 = vunpack.c.l.b16 %v1092
        %v1135 = vunpack.c.l.b16 %v1093
        %v1136 = vunpack.c.l.b16 %v1094
        %v1137 = vunpack.c.l.b16 %v1095
        %v1138 = vunpack.c.l.b16 %v1096
        %v1139 = vpack.c.b16 %v1119, %v1118
        %v1140 = vpack.c.b16 %v1121, %v1120
        %v1141 = vpack.c.b16 %v1123, %v1122
        %v1142 = vpack.c.b16 %v1125, %v1124
        %v1143 = vpack.c.b16 %v1127, %v1126
        %v1144 = vpack.c.b16 %v1129, %v1128
        %v1145 = vpack.c.b16 %v1131, %v1130
        %v1146 = vpack.c.b16 %v1133, %v1132
        %v1147 = vpack.c.b16 %v1135, %v1134
        %v1148 = vpack.c.b16 %v1137, %v1136
        %v1149 = vpack.c.b16 %v1138, %v1138
        %vm1160 = vcmask 326656
        %v1162 = vsel %vm1160, %v1075, 0
        %vm1164 = vcmask 1043456
        %v1166 = vsel %vm1164, %v1149, 0
        %1168 = vmatprep.subr.bf16.mxu0 0
        %1169 = vmatpush1.bf16.msra.mxu0 %v1139
        %1170 = vmatprep.subr.bf16.mxu0 0
        %1171 = vmatpush1.bf16.msra.mxu0 %v1140
        %1172 = vmatprep.subr.bf16.mxu0 0
        %1173 = vmatpush1.bf16.msra.mxu0 %v1141
        %1174 = vmatprep.subr.bf16.mxu0 0
        %1175 = vmatpush1.bf16.msra.mxu0 %v1142
        %1176 = vmatprep.subr.bf16.mxu0 0
        %1177 = vmatpush1.bf16.msra.mxu0 %v1143
        %1178 = vmatprep.subr.bf16.mxu0 0
        %1179 = vmatpush1.bf16.msra.mxu0 %v1144
        %1180 = vmatprep.subr.bf16.mxu0 0
        %1181 = vmatpush1.bf16.msra.mxu0 %v1145
        %1182 = vmatprep.subr.bf16.mxu0 0
        %1183 = vmatpush1.bf16.msra.mxu0 %v1146
        %1184 = vmatprep.subr.bf16.mxu0 0
        %1185 = vmatpush1.bf16.msra.mxu0 %v1147
        %1186 = vmatprep.subr.bf16.mxu0 0
        %1187 = vmatpush1.bf16.msra.mxu0 %v1148
        %1188 = vmatprep.subr.bf16.mxu0 0
        %1189 = vmatpush1.bf16.msra.mxu0 %v1166
        %1190 = vmatprep.subr.bf16.mxu0 0
        %1191 = vmatpush1.bf16.msra.mxu0 0
        %1192 = vmatprep.subr.bf16.mxu0 0
        %1193 = vmatpush1.bf16.msra.mxu0 0
        %1194 = vmatprep.subr.bf16.mxu0 0
        %1195 = vmatpush1.bf16.msra.mxu0 0
        %1196 = vmatprep.subr.bf16.mxu0 0
        %1197 = vmatpush1.bf16.msra.mxu0 0
        %1198 = vmatprep.subr.bf16.mxu0 0
        %1199 = vmatpush1.bf16.msra.mxu0 0
        %1200 = vmatprep.mubr.bf16.mxu0 %v1162
        %1201 = vmatmul.mubr.bf16.gmra.mrb[0].mxu0 %v1074
        %v1202 = vpop.f32.mrb[0].mxu0
        %v1203 = vadd.f32 0.0, %v1202
        %v1204 = vpop.f32.mrb[0].mxu0
        %v1205 = vpop.f32.mrb[0].mxu0
        %v1206 = vadd.f32 0.0, %v1205
        %v1207 = vpop.f32.mrb[0].mxu0
        %1208 = vdwg.mxu0
        %v1209 = vpack.c.bf16 %v1206, %v1203
        %v1210 = vld [vmem:[%s5] sm:$0xff]
        %v1211 = vld [vmem:[%s5 + $0x8] sm:$0x77]
        %s1212 = scalar_lea.vmem %s5, 16
        %v1213 = vld [vmem:[%s1212] sm:$0xff]
        %v1214 = vld [vmem:[%s1212 + $0x8] sm:$0x77]
        %v1216 = vshrl.u32 %v1209, 16
        %v1218 = vshll.u32 %v1209, 16
        %v1220 = vrot.slane %v1218, 1
        %v1221 = vor.u32 %v1216, %v1220
        %v1224 = vunpack.c.l.b16 %v1213
        %v1225 = vunpack.c.h.b16 %v1213
        %v1226 = vunpack.c.l.b16 %v1214
        %v1227 = vunpack.c.h.b16 %v1214
        %v1228 = vpack.c.b16 %v1226, %v1224
        %v1229 = vpack.c.b16 %v1227, %v1225
        %vm1230 = vcmask 113664
        %v1232 = vsel %vm1230, %v1221, 0
        %vm1234 = vcmask 1046528
        %v1236 = vsel %vm1234, %v1228, 0
        %v1239 = vsel %vm1234, %v1229, 0
        %1241 = vmatprep.subr.bf16.mxu0 %v1239
        %1242 = vmatpush1.bf16.msra.mxu0 %v1236
        %1243 = vmatprep.subr.bf16.mxu0 0
        %1244 = vmatpush1.bf16.msra.mxu0 0
        %1245 = vmatprep.subr.bf16.mxu0 0
        %1246 = vmatpush1.bf16.msra.mxu0 0
        %1247 = vmatprep.subr.bf16.mxu0 0
        %1248 = vmatpush1.bf16.msra.mxu0 0
        %1249 = vmatprep.subr.bf16.mxu0 0
        %1250 = vmatpush1.bf16.msra.mxu0 0
        %1251 = vmatprep.subr.bf16.mxu0 0
        %1252 = vmatpush1.bf16.msra.mxu0 0
        %1253 = vmatprep.subr.bf16.mxu0 0
        %1254 = vmatpush1.bf16.msra.mxu0 0
        %1255 = vmatprep.subr.bf16.mxu0 0
        %1256 = vmatpush1.bf16.msra.mxu0 0
        %1257 = vmatprep.subr.bf16.mxu0 0
        %1258 = vmatpush1.bf16.msra.mxu0 0
        %1259 = vmatprep.subr.bf16.mxu0 0
        %1260 = vmatpush1.bf16.msra.mxu0 0
        %1261 = vmatprep.subr.bf16.mxu0 0
        %1262 = vmatpush1.bf16.msra.mxu0 0
        %1263 = vmatprep.subr.bf16.mxu0 0
        %1264 = vmatpush1.bf16.msra.mxu0 0
        %1265 = vmatprep.subr.bf16.mxu0 0
        %1266 = vmatpush1.bf16.msra.mxu0 0
        %1267 = vmatprep.subr.bf16.mxu0 0
        %1268 = vmatpush1.bf16.msra.mxu0 0
        %1269 = vmatprep.subr.bf16.mxu0 0
        %1270 = vmatpush1.bf16.msra.mxu0 0
        %1271 = vmatprep.subr.bf16.mxu0 0
        %1272 = vmatpush1.bf16.msra.mxu0 0
        %1273 = vmatprep.mubr.bf16.mxu0 0
        %1274 = vmatmul.mubr.bf16.gmra.mrb[0].mxu0 %v1232
        %v1275 = vpop.f32.mrb[0].mxu0
        %v1276 = vadd.f32 0.0, %v1275
        %v1277 = vpop.f32.mrb[0].mxu0
        %v1278 = vadd.f32 0.0, %v1277
        %v1279 = vpop.f32.mrb[0].mxu0
        %v1280 = vadd.f32 0.0, %v1279
        %v1281 = vpop.f32.mrb[0].mxu0
        %v1282 = vadd.f32 0.0, %v1281
        %1283 = vdwg.mxu0
        %v1286 = vunpack.c.l.b16 %v1210
        %v1287 = vunpack.c.h.b16 %v1210
        %v1288 = vunpack.c.l.b16 %v1211
        %v1289 = vunpack.c.h.b16 %v1211
        %v1290 = vpack.c.b16 %v1288, %v1286
        %v1291 = vpack.c.b16 %v1289, %v1287
        %v1292 = vsel %vm1230, %v1209, 0
        %v1295 = vsel %vm1234, %v1290, 0
        %v1298 = vsel %vm1234, %v1291, 0
        %1300 = vmatprep.subr.bf16.mxu0 %v1298
        %1301 = vmatpush1.bf16.msra.mxu0 %v1295
        %1302 = vmatprep.subr.bf16.mxu0 0
        %1303 = vmatpush1.bf16.msra.mxu0 0
        %1304 = vmatprep.subr.bf16.mxu0 0
        %1305 = vmatpush1.bf16.msra.mxu0 0
        %1306 = vmatprep.subr.bf16.mxu0 0
        %1307 = vmatpush1.bf16.msra.mxu0 0
        %1308 = vmatprep.subr.bf16.mxu0 0
        %1309 = vmatpush1.bf16.msra.mxu0 0
        %1310 = vmatprep.subr.bf16.mxu0 0
        %1311 = vmatpush1.bf16.msra.mxu0 0
        %1312 = vmatprep.subr.bf16.mxu0 0
        %1313 = vmatpush1.bf16.msra.mxu0 0
        %1314 = vmatprep.subr.bf16.mxu0 0
        %1315 = vmatpush1.bf16.msra.mxu0 0
        %1316 = vmatprep.subr.bf16.mxu0 0
        %1317 = vmatpush1.bf16.msra.mxu0 0
        %1318 = vmatprep.subr.bf16.mxu0 0
        %1319 = vmatpush1.bf16.msra.mxu0 0
        %1320 = vmatprep.subr.bf16.mxu0 0
        %1321 = vmatpush1.bf16.msra.mxu0 0
        %1322 = vmatprep.subr.bf16.mxu0 0
        %1323 = vmatpush1.bf16.msra.mxu0 0
        %1324 = vmatprep.subr.bf16.mxu0 0
        %1325 = vmatpush1.bf16.msra.mxu0 0
        %1326 = vmatprep.subr.bf16.mxu0 0
        %1327 = vmatpush1.bf16.msra.mxu0 0
        %1328 = vmatprep.subr.bf16.mxu0 0
        %1329 = vmatpush1.bf16.msra.mxu0 0
        %1330 = vmatprep.subr.bf16.mxu0 0
        %1331 = vmatpush1.bf16.msra.mxu0 0
        %1332 = vmatprep.mubr.bf16.mxu0 0
        %1333 = vmatmul.mubr.bf16.gmra.mrb[0].mxu0 %v1292
        %v1334 = vpop.f32.mrb[0].mxu0
        %v1335 = vadd.f32 %v1276, %v1334
        %v1336 = vpop.f32.mrb[0].mxu0
        %v1337 = vadd.f32 %v1278, %v1336
        %v1338 = vpop.f32.mrb[0].mxu0
        %v1339 = vadd.f32 %v1280, %v1338
        %v1340 = vpop.f32.mrb[0].mxu0
        %v1341 = vadd.f32 %v1282, %v1340
        %1342 = vdwg.mxu0
        %s1343 = scalar_lea.vmem %s5, 32
        %v1344 = vld [vmem:[%s1343] sm:$0xff]
        %v1345 = vld [vmem:[%s1343 + $0x8] sm:$0x77]
        %v1347 = vrot.slane %v1209, 1
        %v1350 = vunpack.c.l.b16 %v1344
        %v1351 = vunpack.c.h.b16 %v1344
        %v1352 = vunpack.c.l.b16 %v1345
        %v1353 = vunpack.c.h.b16 %v1345
        %v1354 = vpack.c.b16 %v1352, %v1350
        %v1355 = vpack.c.b16 %v1353, %v1351
        %v1357 = vsel %vm1230, %v1347, 0
        %v1360 = vsel %vm1234, %v1354, 0
        %v1363 = vsel %vm1234, %v1355, 0
        %1365 = vmatprep.subr.bf16.mxu0 %v1363
        %1366 = vmatpush1.bf16.msra.mxu0 %v1360
        %1367 = vmatprep.subr.bf16.mxu0 0
        %1368 = vmatpush1.bf16.msra.mxu0 0
        %1369 = vmatprep.subr.bf16.mxu0 0
        %1370 = vmatpush1.bf16.msra.mxu0 0
        %1371 = vmatprep.subr.bf16.mxu0 0
        %1372 = vmatpush1.bf16.msra.mxu0 0
        %1373 = vmatprep.subr.bf16.mxu0 0
        %1374 = vmatpush1.bf16.msra.mxu0 0
        %1375 = vmatprep.subr.bf16.mxu0 0
        %1376 = vmatpush1.bf16.msra.mxu0 0
        %1377 = vmatprep.subr.bf16.mxu0 0
        %1378 = vmatpush1.bf16.msra.mxu0 0
        %1379 = vmatprep.subr.bf16.mxu0 0
        %1380 = vmatpush1.bf16.msra.mxu0 0
        %1381 = vmatprep.subr.bf16.mxu0 0
        %1382 = vmatpush1.bf16.msra.mxu0 0
        %1383 = vmatprep.subr.bf16.mxu0 0
        %1384 = vmatpush1.bf16.msra.mxu0 0
        %1385 = vmatprep.subr.bf16.mxu0 0
        %1386 = vmatpush1.bf16.msra.mxu0 0
        %1387 = vmatprep.subr.bf16.mxu0 0
        %1388 = vmatpush1.bf16.msra.mxu0 0
        %1389 = vmatprep.subr.bf16.mxu0 0
        %1390 = vmatpush1.bf16.msra.mxu0 0
        %1391 = vmatprep.subr.bf16.mxu0 0
        %1392 = vmatpush1.bf16.msra.mxu0 0
        %1393 = vmatprep.subr.bf16.mxu0 0
        %1394 = vmatpush1.bf16.msra.mxu0 0
        %1395 = vmatprep.subr.bf16.mxu0 0
        %1396 = vmatpush1.bf16.msra.mxu0 0
        %1397 = vmatprep.mubr.bf16.mxu0 0
        %1398 = vmatmul.mubr.bf16.gmra.mrb[0].mxu0 %v1357
        %v1399 = vpop.f32.mrb[0].mxu0
        %v1400 = vadd.f32 0.0, %v1399
        %v1401 = vpop.f32.mrb[0].mxu0
        %v1402 = vadd.f32 0.0, %v1401
        %v1403 = vpop.f32.mrb[0].mxu0
        %v1404 = vadd.f32 0.0, %v1403
        %v1405 = vpop.f32.mrb[0].mxu0
        %v1406 = vadd.f32 0.0, %v1405
        %1407 = vdwg.mxu0
        %v1408 = vadd.f32 %v1335, %v1400
        %v1409 = vadd.f32 %v1337, %v1402
        %v1410 = vadd.f32 %v1339, %v1404
        %v1411 = vadd.f32 %v1341, %v1406
        %s1412 = scalar_lea.vmem %s5, 48
        %v1413 = vld [vmem:[%s1412] sm:$0xff]
        %v1414 = vld [vmem:[%s1412 + $0x8] sm:$0x77]
        %v1415 = vrot.slane %v1216, 1
        %v1416 = vrot.slane %v1218, 2
        %v1417 = vor.u32 %v1415, %v1416
        %v1420 = vunpack.c.l.b16 %v1413
        %v1421 = vunpack.c.h.b16 %v1413
        %v1422 = vunpack.c.l.b16 %v1414
        %v1423 = vunpack.c.h.b16 %v1414
        %v1424 = vpack.c.b16 %v1422, %v1420
        %v1425 = vpack.c.b16 %v1423, %v1421
        %v1427 = vsel %vm1230, %v1417, 0
        %v1430 = vsel %vm1234, %v1424, 0
        %v1433 = vsel %vm1234, %v1425, 0
        %1435 = vmatprep.subr.bf16.mxu0 %v1433
        %1436 = vmatpush1.bf16.msra.mxu0 %v1430
        %1437 = vmatprep.subr.bf16.mxu0 0
        %1438 = vmatpush1.bf16.msra.mxu0 0
        %1439 = vmatprep.subr.bf16.mxu0 0
        %1440 = vmatpush1.bf16.msra.mxu0 0
        %1441 = vmatprep.subr.bf16.mxu0 0
        %1442 = vmatpush1.bf16.msra.mxu0 0
        %1443 = vmatprep.subr.bf16.mxu0 0
        %1444 = vmatpush1.bf16.msra.mxu0 0
        %1445 = vmatprep.subr.bf16.mxu0 0
        %1446 = vmatpush1.bf16.msra.mxu0 0
        %1447 = vmatprep.subr.bf16.mxu0 0
        %1448 = vmatpush1.bf16.msra.mxu0 0
        %1449 = vmatprep.subr.bf16.mxu0 0
        %1450 = vmatpush1.bf16.msra.mxu0 0
        %1451 = vmatprep.subr.bf16.mxu0 0
        %1452 = vmatpush1.bf16.msra.mxu0 0
        %1453 = vmatprep.subr.bf16.mxu0 0
        %1454 = vmatpush1.bf16.msra.mxu0 0
        %1455 = vmatprep.subr.bf16.mxu0 0
        %1456 = vmatpush1.bf16.msra.mxu0 0
        %1457 = vmatprep.subr.bf16.mxu0 0
        %1458 = vmatpush1.bf16.msra.mxu0 0
        %1459 = vmatprep.subr.bf16.mxu0 0
        %1460 = vmatpush1.bf16.msra.mxu0 0
        %1461 = vmatprep.subr.bf16.mxu0 0
        %1462 = vmatpush1.bf16.msra.mxu0 0
        %1463 = vmatprep.subr.bf16.mxu0 0
        %1464 = vmatpush1.bf16.msra.mxu0 0
        %1465 = vmatprep.subr.bf16.mxu0 0
        %1466 = vmatpush1.bf16.msra.mxu0 0
        %1467 = vmatprep.mubr.bf16.mxu0 0
        %1468 = vmatmul.mubr.bf16.gmra.mrb[0].mxu0 %v1427
        %v1469 = vpop.f32.mrb[0].mxu0
        %v1470 = vadd.f32 0.0, %v1469
        %v1471 = vpop.f32.mrb[0].mxu0
        %v1472 = vadd.f32 0.0, %v1471
        %v1473 = vpop.f32.mrb[0].mxu0
        %v1474 = vadd.f32 0.0, %v1473
        %v1475 = vpop.f32.mrb[0].mxu0
        %v1476 = vadd.f32 0.0, %v1475
        %1477 = vdwg.mxu0
        %v1478 = vadd.f32 %v1408, %v1470
        %v1479 = vadd.f32 %v1409, %v1472
        %v1480 = vadd.f32 %v1410, %v1474
        %v1481 = vadd.f32 %v1411, %v1476
        %s1482 = scalar_lea.vmem %s5, 64
        %v1483 = vld [vmem:[%s1482] sm:$0xff]
        %v1484 = vld [vmem:[%s1482 + $0x8] sm:$0x77]
        %v1485 = vrot.slane %v1209, 2
        %v1488 = vunpack.c.l.b16 %v1483
        %v1489 = vunpack.c.h.b16 %v1483
        %v1490 = vunpack.c.l.b16 %v1484
        %v1491 = vunpack.c.h.b16 %v1484
        %v1492 = vpack.c.b16 %v1490, %v1488
        %v1493 = vpack.c.b16 %v1491, %v1489
        %v1495 = vsel %vm1230, %v1485, 0
        %v1498 = vsel %vm1234, %v1492, 0
        %v1501 = vsel %vm1234, %v1493, 0
        %1503 = vmatprep.subr.bf16.mxu0 %v1501
        %1504 = vmatpush1.bf16.msra.mxu0 %v1498
        %1505 = vmatprep.subr.bf16.mxu0 0
        %1506 = vmatpush1.bf16.msra.mxu0 0
        %1507 = vmatprep.subr.bf16.mxu0 0
        %1508 = vmatpush1.bf16.msra.mxu0 0
        %1509 = vmatprep.subr.bf16.mxu0 0
        %1510 = vmatpush1.bf16.msra.mxu0 0
        %1511 = vmatprep.subr.bf16.mxu0 0
        %1512 = vmatpush1.bf16.msra.mxu0 0
        %1513 = vmatprep.subr.bf16.mxu0 0
        %1514 = vmatpush1.bf16.msra.mxu0 0
        %1515 = vmatprep.subr.bf16.mxu0 0
        %1516 = vmatpush1.bf16.msra.mxu0 0
        %1517 = vmatprep.subr.bf16.mxu0 0
        %1518 = vmatpush1.bf16.msra.mxu0 0
        %1519 = vmatprep.subr.bf16.mxu0 0
        %1520 = vmatpush1.bf16.msra.mxu0 0
        %1521 = vmatprep.subr.bf16.mxu0 0
        %1522 = vmatpush1.bf16.msra.mxu0 0
        %1523 = vmatprep.subr.bf16.mxu0 0
        %1524 = vmatpush1.bf16.msra.mxu0 0
        %1525 = vmatprep.subr.bf16.mxu0 0
        %1526 = vmatpush1.bf16.msra.mxu0 0
        %1527 = vmatprep.subr.bf16.mxu0 0
        %1528 = vmatpush1.bf16.msra.mxu0 0
        %1529 = vmatprep.subr.bf16.mxu0 0
        %1530 = vmatpush1.bf16.msra.mxu0 0
        %1531 = vmatprep.subr.bf16.mxu0 0
        %1532 = vmatpush1.bf16.msra.mxu0 0
        %1533 = vmatprep.subr.bf16.mxu0 0
        %1534 = vmatpush1.bf16.msra.mxu0 0
        %1535 = vmatprep.mubr.bf16.mxu0 0
        %1536 = vmatmul.mubr.bf16.gmra.mrb[0].mxu0 %v1495
        %v1537 = vpop.f32.mrb[0].mxu0
        %v1538 = vadd.f32 0.0, %v1537
        %v1539 = vpop.f32.mrb[0].mxu0
        %v1540 = vadd.f32 0.0, %v1539
        %v1541 = vpop.f32.mrb[0].mxu0
        %v1542 = vadd.f32 0.0, %v1541
        %v1543 = vpop.f32.mrb[0].mxu0
        %v1544 = vadd.f32 0.0, %v1543
        %1545 = vdwg.mxu0
        %v1546 = vadd.f32 %v1478, %v1538
        %v1547 = vadd.f32 %v1479, %v1540
        %v1548 = vadd.f32 %v1480, %v1542
        %v1549 = vadd.f32 %v1481, %v1544
        %s1550 = scalar_lea.vmem %s5, 80
        %v1551 = vld [vmem:[%s1550] sm:$0xff]
        %v1552 = vld [vmem:[%s1550 + $0x8] sm:$0x77]
        %1553 = vrot.lane.b32.xlu0 %v1209, 114
        %v1554 = vpop.permute.xlu0 %1553
        %v1557 = vunpack.c.l.b16 %v1551
        %v1558 = vunpack.c.h.b16 %v1551
        %v1559 = vunpack.c.l.b16 %v1552
        %v1560 = vunpack.c.h.b16 %v1552
        %v1561 = vpack.c.b16 %v1559, %v1557
        %v1562 = vpack.c.b16 %v1560, %v1558
        %v1564 = vsel %vm1230, %v1554, 0
        %v1567 = vsel %vm1234, %v1561, 0
        %v1570 = vsel %vm1234, %v1562, 0
        %1572 = vmatprep.subr.bf16.mxu0 %v1570
        %1573 = vmatpush1.bf16.msra.mxu0 %v1567
        %1574 = vmatprep.subr.bf16.mxu0 0
        %1575 = vmatpush1.bf16.msra.mxu0 0
        %1576 = vmatprep.subr.bf16.mxu0 0
        %1577 = vmatpush1.bf16.msra.mxu0 0
        %1578 = vmatprep.subr.bf16.mxu0 0
        %1579 = vmatpush1.bf16.msra.mxu0 0
        %1580 = vmatprep.subr.bf16.mxu0 0
        %1581 = vmatpush1.bf16.msra.mxu0 0
        %1582 = vmatprep.subr.bf16.mxu0 0
        %1583 = vmatpush1.bf16.msra.mxu0 0
        %1584 = vmatprep.subr.bf16.mxu0 0
        %1585 = vmatpush1.bf16.msra.mxu0 0
        %1586 = vmatprep.subr.bf16.mxu0 0
        %1587 = vmatpush1.bf16.msra.mxu0 0
        %1588 = vmatprep.subr.bf16.mxu0 0
        %1589 = vmatpush1.bf16.msra.mxu0 0
        %1590 = vmatprep.subr.bf16.mxu0 0
        %1591 = vmatpush1.bf16.msra.mxu0 0
        %1592 = vmatprep.subr.bf16.mxu0 0
        %1593 = vmatpush1.bf16.msra.mxu0 0
        %1594 = vmatprep.subr.bf16.mxu0 0
        %1595 = vmatpush1.bf16.msra.mxu0 0
        %1596 = vmatprep.subr.bf16.mxu0 0
        %1597 = vmatpush1.bf16.msra.mxu0 0
        %1598 = vmatprep.subr.bf16.mxu0 0
        %1599 = vmatpush1.bf16.msra.mxu0 0
        %1600 = vmatprep.subr.bf16.mxu0 0
        %1601 = vmatpush1.bf16.msra.mxu0 0
        %1602 = vmatprep.subr.bf16.mxu0 0
        %1603 = vmatpush1.bf16.msra.mxu0 0
        %1604 = vmatprep.mubr.bf16.mxu0 0
        %1605 = vmatmul.mubr.bf16.gmra.mrb[0].mxu0 %v1564
        %v1606 = vpop.f32.mrb[0].mxu0
        %v1607 = vadd.f32 0.0, %v1606
        %v1608 = vpop.f32.mrb[0].mxu0
        %v1609 = vadd.f32 0.0, %v1608
        %v1610 = vpop.f32.mrb[0].mxu0
        %v1611 = vadd.f32 0.0, %v1610
        %v1612 = vpop.f32.mrb[0].mxu0
        %v1613 = vadd.f32 0.0, %v1612
        %1614 = vdwg.mxu0
        %v1615 = vadd.f32 %v1546, %v1607
        %v1616 = vadd.f32 %v1547, %v1609
        %v1617 = vadd.f32 %v1548, %v1611
        %v1618 = vadd.f32 %v1549, %v1613
        %s1619 = scalar_lea.vmem %s5, 96
        %v1620 = vld [vmem:[%s1619] sm:$0xff]
        %v1621 = vld [vmem:[%s1619 + $0x8] sm:$0x77]
        %1622 = vrot.lane.b32.xlu0 %v1221, 114
        %v1623 = vpop.permute.xlu0 %1622
        %v1626 = vunpack.c.l.b16 %v1620
        %v1627 = vunpack.c.h.b16 %v1620
        %v1628 = vunpack.c.l.b16 %v1621
        %v1629 = vunpack.c.h.b16 %v1621
        %v1630 = vpack.c.b16 %v1628, %v1626
        %v1631 = vpack.c.b16 %v1629, %v1627
        %v1633 = vsel %vm1230, %v1623, 0
        %v1636 = vsel %vm1234, %v1630, 0
        %v1639 = vsel %vm1234, %v1631, 0
        %1641 = vmatprep.subr.bf16.mxu0 %v1639
        %1642 = vmatpush1.bf16.msra.mxu0 %v1636
        %1643 = vmatprep.subr.bf16.mxu0 0
        %1644 = vmatpush1.bf16.msra.mxu0 0
        %1645 = vmatprep.subr.bf16.mxu0 0
        %1646 = vmatpush1.bf16.msra.mxu0 0
        %1647 = vmatprep.subr.bf16.mxu0 0
        %1648 = vmatpush1.bf16.msra.mxu0 0
        %1649 = vmatprep.subr.bf16.mxu0 0
        %1650 = vmatpush1.bf16.msra.mxu0 0
        %1651 = vmatprep.subr.bf16.mxu0 0
        %1652 = vmatpush1.bf16.msra.mxu0 0
        %1653 = vmatprep.subr.bf16.mxu0 0
        %1654 = vmatpush1.bf16.msra.mxu0 0
        %1655 = vmatprep.subr.bf16.mxu0 0
        %1656 = vmatpush1.bf16.msra.mxu0 0
        %1657 = vmatprep.subr.bf16.mxu0 0
        %1658 = vmatpush1.bf16.msra.mxu0 0
        %1659 = vmatprep.subr.bf16.mxu0 0
        %1660 = vmatpush1.bf16.msra.mxu0 0
        %1661 = vmatprep.subr.bf16.mxu0 0
        %1662 = vmatpush1.bf16.msra.mxu0 0
        %1663 = vmatprep.subr.bf16.mxu0 0
        %1664 = vmatpush1.bf16.msra.mxu0 0
        %1665 = vmatprep.subr.bf16.mxu0 0
        %1666 = vmatpush1.bf16.msra.mxu0 0
        %1667 = vmatprep.subr.bf16.mxu0 0
        %1668 = vmatpush1.bf16.msra.mxu0 0
        %1669 = vmatprep.subr.bf16.mxu0 0
        %1670 = vmatpush1.bf16.msra.mxu0 0
        %1671 = vmatprep.subr.bf16.mxu0 0
        %1672 = vmatpush1.bf16.msra.mxu0 0
        %1673 = vmatprep.mubr.bf16.mxu0 0
        %1674 = vmatmul.mubr.bf16.gmra.mrb[0].mxu0 %v1633
        %v1675 = vpop.f32.mrb[0].mxu0
        %v1676 = vadd.f32 0.0, %v1675
        %v1677 = vpop.f32.mrb[0].mxu0
        %v1678 = vadd.f32 0.0, %v1677
        %v1679 = vpop.f32.mrb[0].mxu0
        %v1680 = vadd.f32 0.0, %v1679
        %v1681 = vpop.f32.mrb[0].mxu0
        %v1682 = vadd.f32 0.0, %v1681
        %1683 = vdwg.mxu0
        %v1684 = vadd.f32 %v1615, %v1676
        %v1685 = vadd.f32 %v1616, %v1678
        %v1686 = vadd.f32 %v1617, %v1680
        %v1687 = vadd.f32 %v1618, %v1682
        %s1688 = scalar_lea.vmem %s5, 112
        %v1689 = vld [vmem:[%s1688] sm:$0xff]
        %v1690 = vld [vmem:[%s1688 + $0x8] sm:$0x77]
        %1691 = vrot.lane.b32.xlu0 %v1347, 114
        %v1692 = vpop.permute.xlu0 %1691
        %v1695 = vunpack.c.l.b16 %v1689
        %v1696 = vunpack.c.h.b16 %v1689
        %v1697 = vunpack.c.l.b16 %v1690
        %v1698 = vunpack.c.h.b16 %v1690
        %v1699 = vpack.c.b16 %v1697, %v1695
        %v1700 = vpack.c.b16 %v1698, %v1696
        %v1702 = vsel %vm1230, %v1692, 0
        %v1705 = vsel %vm1234, %v1699, 0
        %v1708 = vsel %vm1234, %v1700, 0
        %1710 = vmatprep.subr.bf16.mxu0 %v1708
        %1711 = vmatpush1.bf16.msra.mxu0 %v1705
        %1712 = vmatprep.subr.bf16.mxu0 0
        %1713 = vmatpush1.bf16.msra.mxu0 0
        %1714 = vmatprep.subr.bf16.mxu0 0
        %1715 = vmatpush1.bf16.msra.mxu0 0
        %1716 = vmatprep.subr.bf16.mxu0 0
        %1717 = vmatpush1.bf16.msra.mxu0 0
        %1718 = vmatprep.subr.bf16.mxu0 0
        %1719 = vmatpush1.bf16.msra.mxu0 0
        %1720 = vmatprep.subr.bf16.mxu0 0
        %1721 = vmatpush1.bf16.msra.mxu0 0
        %1722 = vmatprep.subr.bf16.mxu0 0
        %1723 = vmatpush1.bf16.msra.mxu0 0
        %1724 = vmatprep.subr.bf16.mxu0 0
        %1725 = vmatpush1.bf16.msra.mxu0 0
        %1726 = vmatprep.subr.bf16.mxu0 0
        %1727 = vmatpush1.bf16.msra.mxu0 0
        %1728 = vmatprep.subr.bf16.mxu0 0
        %1729 = vmatpush1.bf16.msra.mxu0 0
        %1730 = vmatprep.subr.bf16.mxu0 0
        %1731 = vmatpush1.bf16.msra.mxu0 0
        %1732 = vmatprep.subr.bf16.mxu0 0
        %1733 = vmatpush1.bf16.msra.mxu0 0
        %1734 = vmatprep.subr.bf16.mxu0 0
        %1735 = vmatpush1.bf16.msra.mxu0 0
        %1736 = vmatprep.subr.bf16.mxu0 0
        %1737 = vmatpush1.bf16.msra.mxu0 0
        %1738 = vmatprep.subr.bf16.mxu0 0
        %1739 = vmatpush1.bf16.msra.mxu0 0
        %1740 = vmatprep.subr.bf16.mxu0 0
        %1741 = vmatpush1.bf16.msra.mxu0 0
        %1742 = vmatprep.mubr.bf16.mxu0 0
        %1743 = vmatmul.mubr.bf16.gmra.mrb[0].mxu0 %v1702
        %v1744 = vpop.f32.mrb[0].mxu0
        %v1745 = vadd.f32 0.0, %v1744
        %v1746 = vpop.f32.mrb[0].mxu0
        %v1747 = vadd.f32 0.0, %v1746
        %v1748 = vpop.f32.mrb[0].mxu0
        %v1749 = vadd.f32 0.0, %v1748
        %v1750 = vpop.f32.mrb[0].mxu0
        %v1751 = vadd.f32 0.0, %v1750
        %1752 = vdwg.mxu0
        %v1753 = vadd.f32 %v1684, %v1745
        %v1754 = vadd.f32 %v1685, %v1747
        %v1755 = vadd.f32 %v1686, %v1749
        %v1756 = vadd.f32 %v1687, %v1751
        %s1757 = scalar_lea.vmem %s5, 128
        %v1758 = vld [vmem:[%s1757] sm:$0xff]
        %v1759 = vld [vmem:[%s1757 + $0x8] sm:$0x77]
        %1760 = vrot.lane.b32.xlu0 %v1417, 114
        %v1761 = vpop.permute.xlu0 %1760
        %v1764 = vunpack.c.l.b16 %v1758
        %v1765 = vunpack.c.h.b16 %v1758
        %v1766 = vunpack.c.l.b16 %v1759
        %v1767 = vunpack.c.h.b16 %v1759
        %v1768 = vpack.c.b16 %v1766, %v1764
        %v1769 = vpack.c.b16 %v1767, %v1765
        %v1771 = vsel %vm1230, %v1761, 0
        %v1774 = vsel %vm1234, %v1768, 0
        %v1777 = vsel %vm1234, %v1769, 0
        %1779 = vmatprep.subr.bf16.mxu0 %v1777
        %1780 = vmatpush1.bf16.msra.mxu0 %v1774
        %1781 = vmatprep.subr.bf16.mxu0 0
        %1782 = vmatpush1.bf16.msra.mxu0 0
        %1783 = vmatprep.subr.bf16.mxu0 0
        %1784 = vmatpush1.bf16.msra.mxu0 0
        %1785 = vmatprep.subr.bf16.mxu0 0
        %1786 = vmatpush1.bf16.msra.mxu0 0
        %1787 = vmatprep.subr.bf16.mxu0 0
        %1788 = vmatpush1.bf16.msra.mxu0 0
        %1789 = vmatprep.subr.bf16.mxu0 0
        %1790 = vmatpush1.bf16.msra.mxu0 0
        %1791 = vmatprep.subr.bf16.mxu0 0
        %1792 = vmatpush1.bf16.msra.mxu0 0
        %1793 = vmatprep.subr.bf16.mxu0 0
        %1794 = vmatpush1.bf16.msra.mxu0 0
        %1795 = vmatprep.subr.bf16.mxu0 0
        %1796 = vmatpush1.bf16.msra.mxu0 0
        %1797 = vmatprep.subr.bf16.mxu0 0
        %1798 = vmatpush1.bf16.msra.mxu0 0
        %1799 = vmatprep.subr.bf16.mxu0 0
        %1800 = vmatpush1.bf16.msra.mxu0 0
        %1801 = vmatprep.subr.bf16.mxu0 0
        %1802 = vmatpush1.bf16.msra.mxu0 0
        %1803 = vmatprep.subr.bf16.mxu0 0
        %1804 = vmatpush1.bf16.msra.mxu0 0
        %1805 = vmatprep.subr.bf16.mxu0 0
        %1806 = vmatpush1.bf16.msra.mxu0 0
        %1807 = vmatprep.subr.bf16.mxu0 0
        %1808 = vmatpush1.bf16.msra.mxu0 0
        %1809 = vmatprep.subr.bf16.mxu0 0
        %1810 = vmatpush1.bf16.msra.mxu0 0
        %1811 = vmatprep.mubr.bf16.mxu0 0
        %1812 = vmatmul.mubr.bf16.gmra.mrb[0].mxu0 %v1771
        %v1813 = vpop.f32.mrb[0].mxu0
        %v1814 = vadd.f32 0.0, %v1813
        %v1815 = vpop.f32.mrb[0].mxu0
        %v1816 = vadd.f32 0.0, %v1815
        %v1817 = vpop.f32.mrb[0].mxu0
        %v1818 = vadd.f32 0.0, %v1817
        %v1819 = vpop.f32.mrb[0].mxu0
        %v1820 = vadd.f32 0.0, %v1819
        %1821 = vdwg.mxu0
        %v1822 = vadd.f32 %v1753, %v1814
        %v1823 = vadd.f32 %v1754, %v1816
        %v1824 = vadd.f32 %v1755, %v1818
        %v1825 = vadd.f32 %v1756, %v1820
        %s1826 = scalar_lea.vmem %s5, 144
        %v1827 = vld [vmem:[%s1826] sm:$0xff]
        %v1828 = vld [vmem:[%s1826 + $0x8] sm:$0x77]
        %1829 = vrot.lane.b32.xlu0 %v1485, 114
        %v1830 = vpop.permute.xlu0 %1829
        %v1833 = vunpack.c.l.b16 %v1827
        %v1834 = vunpack.c.h.b16 %v1827
        %v1835 = vunpack.c.l.b16 %v1828
        %v1836 = vunpack.c.h.b16 %v1828
        %v1837 = vpack.c.b16 %v1835, %v1833
        %v1838 = vpack.c.b16 %v1836, %v1834
        %v1840 = vsel %vm1230, %v1830, 0
        %v1843 = vsel %vm1234, %v1837, 0
        %v1846 = vsel %vm1234, %v1838, 0
        %1848 = vmatprep.subr.bf16.mxu0 %v1846
        %1849 = vmatpush1.bf16.msra.mxu0 %v1843
        %1850 = vmatprep.subr.bf16.mxu0 0
        %1851 = vmatpush1.bf16.msra.mxu0 0
        %1852 = vmatprep.subr.bf16.mxu0 0
        %1853 = vmatpush1.bf16.msra.mxu0 0
        %1854 = vmatprep.subr.bf16.mxu0 0
        %1855 = vmatpush1.bf16.msra.mxu0 0
        %1856 = vmatprep.subr.bf16.mxu0 0
        %1857 = vmatpush1.bf16.msra.mxu0 0
        %1858 = vmatprep.subr.bf16.mxu0 0
        %1859 = vmatpush1.bf16.msra.mxu0 0
        %1860 = vmatprep.subr.bf16.mxu0 0
        %1861 = vmatpush1.bf16.msra.mxu0 0
        %1862 = vmatprep.subr.bf16.mxu0 0
        %1863 = vmatpush1.bf16.msra.mxu0 0
        %1864 = vmatprep.subr.bf16.mxu0 0
        %1865 = vmatpush1.bf16.msra.mxu0 0
        %1866 = vmatprep.subr.bf16.mxu0 0
        %1867 = vmatpush1.bf16.msra.mxu0 0
        %1868 = vmatprep.subr.bf16.mxu0 0
        %1869 = vmatpush1.bf16.msra.mxu0 0
        %1870 = vmatprep.subr.bf16.mxu0 0
        %1871 = vmatpush1.bf16.msra.mxu0 0
        %1872 = vmatprep.subr.bf16.mxu0 0
        %1873 = vmatpush1.bf16.msra.mxu0 0
        %1874 = vmatprep.subr.bf16.mxu0 0
        %1875 = vmatpush1.bf16.msra.mxu0 0
        %1876 = vmatprep.subr.bf16.mxu0 0
        %1877 = vmatpush1.bf16.msra.mxu0 0
        %1878 = vmatprep.subr.bf16.mxu0 0
        %1879 = vmatpush1.bf16.msra.mxu0 0
        %1880 = vmatprep.mubr.bf16.mxu0 0
        %1881 = vmatmul.mubr.bf16.gmra.mrb[0].mxu0 %v1840
        %v1882 = vpop.f32.mrb[0].mxu0
        %v1883 = vadd.f32 0.0, %v1882
        %v1884 = vpop.f32.mrb[0].mxu0
        %v1885 = vadd.f32 0.0, %v1884
        %v1886 = vpop.f32.mrb[0].mxu0
        %v1887 = vadd.f32 0.0, %v1886
        %v1888 = vpop.f32.mrb[0].mxu0
        %v1889 = vadd.f32 0.0, %v1888
        %1890 = vdwg.mxu0
        %v1891 = vadd.f32 %v1822, %v1883
        %v1892 = vadd.f32 %v1823, %v1885
        %v1893 = vadd.f32 %v1824, %v1887
        %v1894 = vadd.f32 %v1825, %v1889
        %s1895 = scalar_lea.vmem %s5, 160
        %v1896 = vld [vmem:[%s1895] sm:$0xff]
        %v1897 = vld [vmem:[%s1895 + $0x8] sm:$0x77]
        %1898 = vrot.lane.b32.xlu0 %v1209, 100
        %v1899 = vpop.permute.xlu0 %1898
        %v1902 = vunpack.c.l.b16 %v1896
        %v1903 = vunpack.c.h.b16 %v1896
        %v1904 = vunpack.c.l.b16 %v1897
        %v1905 = vunpack.c.h.b16 %v1897
        %v1906 = vpack.c.b16 %v1904, %v1902
        %v1907 = vpack.c.b16 %v1905, %v1903
        %v1909 = vsel %vm1230, %v1899, 0
        %v1912 = vsel %vm1234, %v1906, 0
        %v1915 = vsel %vm1234, %v1907, 0
        %1917 = vmatprep.subr.bf16.mxu0 %v1915
        %1918 = vmatpush1.bf16.msra.mxu0 %v1912
        %1919 = vmatprep.subr.bf16.mxu0 0
        %1920 = vmatpush1.bf16.msra.mxu0 0
        %1921 = vmatprep.subr.bf16.mxu0 0
        %1922 = vmatpush1.bf16.msra.mxu0 0
        %1923 = vmatprep.subr.bf16.mxu0 0
        %1924 = vmatpush1.bf16.msra.mxu0 0
        %1925 = vmatprep.subr.bf16.mxu0 0
        %1926 = vmatpush1.bf16.msra.mxu0 0
        %1927 = vmatprep.subr.bf16.mxu0 0
        %1928 = vmatpush1.bf16.msra.mxu0 0
        %1929 = vmatprep.subr.bf16.mxu0 0
        %1930 = vmatpush1.bf16.msra.mxu0 0
        %1931 = vmatprep.subr.bf16.mxu0 0
        %1932 = vmatpush1.bf16.msra.mxu0 0
        %1933 = vmatprep.subr.bf16.mxu0 0
        %1934 = vmatpush1.bf16.msra.mxu0 0
        %1935 = vmatprep.subr.bf16.mxu0 0
        %1936 = vmatpush1.bf16.msra.mxu0 0
        %1937 = vmatprep.subr.bf16.mxu0 0
        %1938 = vmatpush1.bf16.msra.mxu0 0
        %1939 = vmatprep.subr.bf16.mxu0 0
        %1940 = vmatpush1.bf16.msra.mxu0 0
        %1941 = vmatprep.subr.bf16.mxu0 0
        %1942 = vmatpush1.bf16.msra.mxu0 0
        %1943 = vmatprep.subr.bf16.mxu0 0
        %1944 = vmatpush1.bf16.msra.mxu0 0
        %1945 = vmatprep.subr.bf16.mxu0 0
        %1946 = vmatpush1.bf16.msra.mxu0 0
        %1947 = vmatprep.subr.bf16.mxu0 0
        %1948 = vmatpush1.bf16.msra.mxu0 0
        %1949 = vmatprep.mubr.bf16.mxu0 0
        %1950 = vmatmul.mubr.bf16.gmra.mrb[0].mxu0 %v1909
        %v1951 = vpop.f32.mrb[0].mxu0
        %v1952 = vadd.f32 0.0, %v1951
        %v1953 = vpop.f32.mrb[0].mxu0
        %v1954 = vadd.f32 0.0, %v1953
        %v1955 = vpop.f32.mrb[0].mxu0
        %v1956 = vadd.f32 0.0, %v1955
        %v1957 = vpop.f32.mrb[0].mxu0
        %v1958 = vadd.f32 0.0, %v1957
        %1959 = vdwg.mxu0
        %v1960 = vadd.f32 %v1891, %v1952
        %v1961 = vadd.f32 %v1892, %v1954
        %v1962 = vadd.f32 %v1893, %v1956
        %v1963 = vadd.f32 %v1894, %v1958
        %s1964 = scalar_lea.vmem %s5, 176
        %v1965 = vld [vmem:[%s1964] sm:$0xff]
        %v1966 = vld [vmem:[%s1964 + $0x8] sm:$0x77]
        %1967 = vrot.lane.b32.xlu0 %v1221, 100
        %v1968 = vpop.permute.xlu0 %1967
        %v1971 = vunpack.c.l.b16 %v1965
        %v1972 = vunpack.c.h.b16 %v1965
        %v1973 = vunpack.c.l.b16 %v1966
        %v1974 = vunpack.c.h.b16 %v1966
        %v1975 = vpack.c.b16 %v1973, %v1971
        %v1976 = vpack.c.b16 %v1974, %v1972
        %v1978 = vsel %vm1230, %v1968, 0
        %v1981 = vsel %vm1234, %v1975, 0
        %v1984 = vsel %vm1234, %v1976, 0
        %1986 = vmatprep.subr.bf16.mxu0 %v1984
        %1987 = vmatpush1.bf16.msra.mxu0 %v1981
        %1988 = vmatprep.subr.bf16.mxu0 0
        %1989 = vmatpush1.bf16.msra.mxu0 0
        %1990 = vmatprep.subr.bf16.mxu0 0
        %1991 = vmatpush1.bf16.msra.mxu0 0
        %1992 = vmatprep.subr.bf16.mxu0 0
        %1993 = vmatpush1.bf16.msra.mxu0 0
        %1994 = vmatprep.subr.bf16.mxu0 0
        %1995 = vmatpush1.bf16.msra.mxu0 0
        %1996 = vmatprep.subr.bf16.mxu0 0
        %1997 = vmatpush1.bf16.msra.mxu0 0
        %1998 = vmatprep.subr.bf16.mxu0 0
        %1999 = vmatpush1.bf16.msra.mxu0 0
        %2000 = vmatprep.subr.bf16.mxu0 0
        %2001 = vmatpush1.bf16.msra.mxu0 0
        %2002 = vmatprep.subr.bf16.mxu0 0
        %2003 = vmatpush1.bf16.msra.mxu0 0
        %2004 = vmatprep.subr.bf16.mxu0 0
        %2005 = vmatpush1.bf16.msra.mxu0 0
        %2006 = vmatprep.subr.bf16.mxu0 0
        %2007 = vmatpush1.bf16.msra.mxu0 0
        %2008 = vmatprep.subr.bf16.mxu0 0
        %2009 = vmatpush1.bf16.msra.mxu0 0
        %2010 = vmatprep.subr.bf16.mxu0 0
        %2011 = vmatpush1.bf16.msra.mxu0 0
        %2012 = vmatprep.subr.bf16.mxu0 0
        %2013 = vmatpush1.bf16.msra.mxu0 0
        %2014 = vmatprep.subr.bf16.mxu0 0
        %2015 = vmatpush1.bf16.msra.mxu0 0
        %2016 = vmatprep.subr.bf16.mxu0 0
        %2017 = vmatpush1.bf16.msra.mxu0 0
        %2018 = vmatprep.mubr.bf16.mxu0 0
        %2019 = vmatmul.mubr.bf16.gmra.mrb[0].mxu0 %v1978
        %v2020 = vpop.f32.mrb[0].mxu0
        %v2021 = vadd.f32 0.0, %v2020
        %v2022 = vpop.f32.mrb[0].mxu0
        %v2023 = vadd.f32 0.0, %v2022
        %v2024 = vpop.f32.mrb[0].mxu0
        %v2025 = vadd.f32 0.0, %v2024
        %v2026 = vpop.f32.mrb[0].mxu0
        %v2027 = vadd.f32 0.0, %v2026
        %2028 = vdwg.mxu0
        %v2029 = vadd.f32 %v1960, %v2021
        %v2030 = vadd.f32 %v1961, %v2023
        %v2031 = vadd.f32 %v1962, %v2025
        %v2032 = vadd.f32 %v1963, %v2027
        %s2033 = scalar_lea.vmem %s5, 192
        %v2034 = vld [vmem:[%s2033] sm:$0xff]
        %v2035 = vld [vmem:[%s2033 + $0x8] sm:$0x77]
        %2036 = vrot.lane.b32.xlu0 %v1347, 100
        %v2037 = vpop.permute.xlu0 %2036
        %v2040 = vunpack.c.l.b16 %v2034
        %v2041 = vunpack.c.h.b16 %v2034
        %v2042 = vunpack.c.l.b16 %v2035
        %v2043 = vunpack.c.h.b16 %v2035
        %v2044 = vpack.c.b16 %v2042, %v2040
        %v2045 = vpack.c.b16 %v2043, %v2041
        %v2047 = vsel %vm1230, %v2037, 0
        %v2050 = vsel %vm1234, %v2044, 0
        %v2053 = vsel %vm1234, %v2045, 0
        %2055 = vmatprep.subr.bf16.mxu0 %v2053
        %2056 = vmatpush1.bf16.msra.mxu0 %v2050
        %2057 = vmatprep.subr.bf16.mxu0 0
        %2058 = vmatpush1.bf16.msra.mxu0 0
        %2059 = vmatprep.subr.bf16.mxu0 0
        %2060 = vmatpush1.bf16.msra.mxu0 0
        %2061 = vmatprep.subr.bf16.mxu0 0
        %2062 = vmatpush1.bf16.msra.mxu0 0
        %2063 = vmatprep.subr.bf16.mxu0 0
        %2064 = vmatpush1.bf16.msra.mxu0 0
        %2065 = vmatprep.subr.bf16.mxu0 0
        %2066 = vmatpush1.bf16.msra.mxu0 0
        %2067 = vmatprep.subr.bf16.mxu0 0
        %2068 = vmatpush1.bf16.msra.mxu0 0
        %2069 = vmatprep.subr.bf16.mxu0 0
        %2070 = vmatpush1.bf16.msra.mxu0 0
        %2071 = vmatprep.subr.bf16.mxu0 0
        %2072 = vmatpush1.bf16.msra.mxu0 0
        %2073 = vmatprep.subr.bf16.mxu0 0
        %2074 = vmatpush1.bf16.msra.mxu0 0
        %2075 = vmatprep.subr.bf16.mxu0 0
        %2076 = vmatpush1.bf16.msra.mxu0 0
        %2077 = vmatprep.subr.bf16.mxu0 0
        %2078 = vmatpush1.bf16.msra.mxu0 0
        %2079 = vmatprep.subr.bf16.mxu0 0
        %2080 = vmatpush1.bf16.msra.mxu0 0
        %2081 = vmatprep.subr.bf16.mxu0 0
        %2082 = vmatpush1.bf16.msra.mxu0 0
        %2083 = vmatprep.subr.bf16.mxu0 0
        %2084 = vmatpush1.bf16.msra.mxu0 0
        %2085 = vmatprep.subr.bf16.mxu0 0
        %2086 = vmatpush1.bf16.msra.mxu0 0
        %2087 = vmatprep.mubr.bf16.mxu0 0
        %2088 = vmatmul.mubr.bf16.gmra.mrb[0].mxu0 %v2047
        %v2089 = vpop.f32.mrb[0].mxu0
        %v2090 = vadd.f32 0.0, %v2089
        %v2091 = vpop.f32.mrb[0].mxu0
        %v2092 = vadd.f32 0.0, %v2091
        %v2093 = vpop.f32.mrb[0].mxu0
        %v2094 = vadd.f32 0.0, %v2093
        %v2095 = vpop.f32.mrb[0].mxu0
        %v2096 = vadd.f32 0.0, %v2095
        %2097 = vdwg.mxu0
        %v2098 = vadd.f32 %v2029, %v2090
        %v2099 = vadd.f32 %v2030, %v2092
        %v2100 = vadd.f32 %v2031, %v2094
        %v2101 = vadd.f32 %v2032, %v2096
        %s2102 = scalar_lea.vmem %s5, 208
        %v2103 = vld [vmem:[%s2102] sm:$0xff]
        %v2104 = vld [vmem:[%s2102 + $0x8] sm:$0x77]
        %2105 = vrot.lane.b32.xlu0 %v1417, 100
        %v2106 = vpop.permute.xlu0 %2105
        %v2109 = vunpack.c.l.b16 %v2103
        %v2110 = vunpack.c.h.b16 %v2103
        %v2111 = vunpack.c.l.b16 %v2104
        %v2112 = vunpack.c.h.b16 %v2104
        %v2113 = vpack.c.b16 %v2111, %v2109
        %v2114 = vpack.c.b16 %v2112, %v2110
        %v2116 = vsel %vm1230, %v2106, 0
        %v2119 = vsel %vm1234, %v2113, 0
        %v2122 = vsel %vm1234, %v2114, 0
        %2124 = vmatprep.subr.bf16.mxu0 %v2122
        %2125 = vmatpush1.bf16.msra.mxu0 %v2119
        %2126 = vmatprep.subr.bf16.mxu0 0
        %2127 = vmatpush1.bf16.msra.mxu0 0
        %2128 = vmatprep.subr.bf16.mxu0 0
        %2129 = vmatpush1.bf16.msra.mxu0 0
        %2130 = vmatprep.subr.bf16.mxu0 0
        %2131 = vmatpush1.bf16.msra.mxu0 0
        %2132 = vmatprep.subr.bf16.mxu0 0
        %2133 = vmatpush1.bf16.msra.mxu0 0
        %2134 = vmatprep.subr.bf16.mxu0 0
        %2135 = vmatpush1.bf16.msra.mxu0 0
        %2136 = vmatprep.subr.bf16.mxu0 0
        %2137 = vmatpush1.bf16.msra.mxu0 0
        %2138 = vmatprep.subr.bf16.mxu0 0
        %2139 = vmatpush1.bf16.msra.mxu0 0
        %2140 = vmatprep.subr.bf16.mxu0 0
        %2141 = vmatpush1.bf16.msra.mxu0 0
        %2142 = vmatprep.subr.bf16.mxu0 0
        %2143 = vmatpush1.bf16.msra.mxu0 0
        %2144 = vmatprep.subr.bf16.mxu0 0
        %2145 = vmatpush1.bf16.msra.mxu0 0
        %2146 = vmatprep.subr.bf16.mxu0 0
        %2147 = vmatpush1.bf16.msra.mxu0 0
        %2148 = vmatprep.subr.bf16.mxu0 0
        %2149 = vmatpush1.bf16.msra.mxu0 0
        %2150 = vmatprep.subr.bf16.mxu0 0
        %2151 = vmatpush1.bf16.msra.mxu0 0
        %2152 = vmatprep.subr.bf16.mxu0 0
        %2153 = vmatpush1.bf16.msra.mxu0 0
        %2154 = vmatprep.subr.bf16.mxu0 0
        %2155 = vmatpush1.bf16.msra.mxu0 0
        %2156 = vmatprep.mubr.bf16.mxu0 0
        %2157 = vmatmul.mubr.bf16.gmra.mrb[0].mxu0 %v2116
        %v2158 = vpop.f32.mrb[0].mxu0
        %v2159 = vadd.f32 0.0, %v2158
        %v2160 = vpop.f32.mrb[0].mxu0
        %v2161 = vadd.f32 0.0, %v2160
        %v2162 = vpop.f32.mrb[0].mxu0
        %v2163 = vadd.f32 0.0, %v2162
        %v2164 = vpop.f32.mrb[0].mxu0
        %v2165 = vadd.f32 0.0, %v2164
        %2166 = vdwg.mxu0
        %v2167 = vadd.f32 %v2098, %v2159
        %v2168 = vadd.f32 %v2099, %v2161
        %v2169 = vadd.f32 %v2100, %v2163
        %v2170 = vadd.f32 %v2101, %v2165
        %s2171 = scalar_lea.vmem %s5, 224
        %v2172 = vld [vmem:[%s2171] sm:$0xff]
        %v2173 = vld [vmem:[%s2171 + $0x8] sm:$0x77]
        %2174 = vrot.lane.b32.xlu0 %v1485, 100
        %v2175 = vpop.permute.xlu0 %2174
        %v2178 = vunpack.c.l.b16 %v2172
        %v2179 = vunpack.c.h.b16 %v2172
        %v2180 = vunpack.c.l.b16 %v2173
        %v2181 = vunpack.c.h.b16 %v2173
        %v2182 = vpack.c.b16 %v2180, %v2178
        %v2183 = vpack.c.b16 %v2181, %v2179
        %v2185 = vsel %vm1230, %v2175, 0
        %v2188 = vsel %vm1234, %v2182, 0
        %v2191 = vsel %vm1234, %v2183, 0
        %2193 = vmatprep.subr.bf16.mxu0 %v2191
        %2194 = vmatpush1.bf16.msra.mxu0 %v2188
        %2195 = vmatprep.subr.bf16.mxu0 0
        %2196 = vmatpush1.bf16.msra.mxu0 0
        %2197 = vmatprep.subr.bf16.mxu0 0
        %2198 = vmatpush1.bf16.msra.mxu0 0
        %2199 = vmatprep.subr.bf16.mxu0 0
        %2200 = vmatpush1.bf16.msra.mxu0 0
        %2201 = vmatprep.subr.bf16.mxu0 0
        %2202 = vmatpush1.bf16.msra.mxu0 0
        %2203 = vmatprep.subr.bf16.mxu0 0
        %2204 = vmatpush1.bf16.msra.mxu0 0
        %2205 = vmatprep.subr.bf16.mxu0 0
        %2206 = vmatpush1.bf16.msra.mxu0 0
        %2207 = vmatprep.subr.bf16.mxu0 0
        %2208 = vmatpush1.bf16.msra.mxu0 0
        %2209 = vmatprep.subr.bf16.mxu0 0
        %2210 = vmatpush1.bf16.msra.mxu0 0
        %2211 = vmatprep.subr.bf16.mxu0 0
        %2212 = vmatpush1.bf16.msra.mxu0 0
        %2213 = vmatprep.subr.bf16.mxu0 0
        %2214 = vmatpush1.bf16.msra.mxu0 0
        %2215 = vmatprep.subr.bf16.mxu0 0
        %2216 = vmatpush1.bf16.msra.mxu0 0
        %2217 = vmatprep.subr.bf16.mxu0 0
        %2218 = vmatpush1.bf16.msra.mxu0 0
        %2219 = vmatprep.subr.bf16.mxu0 0
        %2220 = vmatpush1.bf16.msra.mxu0 0
        %2221 = vmatprep.subr.bf16.mxu0 0
        %2222 = vmatpush1.bf16.msra.mxu0 0
        %2223 = vmatprep.subr.bf16.mxu0 0
        %2224 = vmatpush1.bf16.msra.mxu0 0
        %2225 = vmatprep.mubr.bf16.mxu0 0
        %2226 = vmatmul.mubr.bf16.gmra.mrb[0].mxu0 %v2185
        %v2227 = vpop.f32.mrb[0].mxu0
        %v2228 = vadd.f32 0.0, %v2227
        %v2229 = vpop.f32.mrb[0].mxu0
        %v2230 = vadd.f32 0.0, %v2229
        %v2231 = vpop.f32.mrb[0].mxu0
        %v2232 = vadd.f32 0.0, %v2231
        %v2233 = vpop.f32.mrb[0].mxu0
        %v2234 = vadd.f32 0.0, %v2233
        %2235 = vdwg.mxu0
        %v2236 = vadd.f32 %v2167, %v2228
        %v2237 = vadd.f32 %v2168, %v2230
        %v2238 = vadd.f32 %v2169, %v2232
        %v2239 = vadd.f32 %v2170, %v2234
        %s2240 = scalar_lea.vmem %s5, 240
        %v2241 = vld [vmem:[%s2240] sm:$0xff]
        %v2242 = vld [vmem:[%s2240 + $0x8] sm:$0x77]
        %2243 = vrot.lane.b32.xlu0 %v1209, 86
        %v2244 = vpop.permute.xlu0 %2243
        %v2247 = vunpack.c.l.b16 %v2241
        %v2248 = vunpack.c.h.b16 %v2241
        %v2249 = vunpack.c.l.b16 %v2242
        %v2250 = vunpack.c.h.b16 %v2242
        %v2251 = vpack.c.b16 %v2249, %v2247
        %v2252 = vpack.c.b16 %v2250, %v2248
        %v2254 = vsel %vm1230, %v2244, 0
        %v2257 = vsel %vm1234, %v2251, 0
        %v2260 = vsel %vm1234, %v2252, 0
        %2262 = vmatprep.subr.bf16.mxu0 %v2260
        %2263 = vmatpush1.bf16.msra.mxu0 %v2257
        %2264 = vmatprep.subr.bf16.mxu0 0
        %2265 = vmatpush1.bf16.msra.mxu0 0
        %2266 = vmatprep.subr.bf16.mxu0 0
        %2267 = vmatpush1.bf16.msra.mxu0 0
        %2268 = vmatprep.subr.bf16.mxu0 0
        %2269 = vmatpush1.bf16.msra.mxu0 0
        %2270 = vmatprep.subr.bf16.mxu0 0
        %2271 = vmatpush1.bf16.msra.mxu0 0
        %2272 = vmatprep.subr.bf16.mxu0 0
        %2273 = vmatpush1.bf16.msra.mxu0 0
        %2274 = vmatprep.subr.bf16.mxu0 0
        %2275 = vmatpush1.bf16.msra.mxu0 0
        %2276 = vmatprep.subr.bf16.mxu0 0
        %2277 = vmatpush1.bf16.msra.mxu0 0
        %2278 = vmatprep.subr.bf16.mxu0 0
        %2279 = vmatpush1.bf16.msra.mxu0 0
        %2280 = vmatprep.subr.bf16.mxu0 0
        %2281 = vmatpush1.bf16.msra.mxu0 0
        %2282 = vmatprep.subr.bf16.mxu0 0
        %2283 = vmatpush1.bf16.msra.mxu0 0
        %2284 = vmatprep.subr.bf16.mxu0 0
        %2285 = vmatpush1.bf16.msra.mxu0 0
        %2286 = vmatprep.subr.bf16.mxu0 0
        %2287 = vmatpush1.bf16.msra.mxu0 0
        %2288 = vmatprep.subr.bf16.mxu0 0
        %2289 = vmatpush1.bf16.msra.mxu0 0
        %2290 = vmatprep.subr.bf16.mxu0 0
        %2291 = vmatpush1.bf16.msra.mxu0 0
        %2292 = vmatprep.subr.bf16.mxu0 0
        %2293 = vmatpush1.bf16.msra.mxu0 0
        %2294 = vmatprep.mubr.bf16.mxu0 0
        %2295 = vmatmul.mubr.bf16.gmra.mrb[0].mxu0 %v2254
        %v2296 = vpop.f32.mrb[0].mxu0
        %v2297 = vadd.f32 0.0, %v2296
        %v2298 = vpop.f32.mrb[0].mxu0
        %v2299 = vadd.f32 0.0, %v2298
        %v2300 = vpop.f32.mrb[0].mxu0
        %v2301 = vadd.f32 0.0, %v2300
        %v2302 = vpop.f32.mrb[0].mxu0
        %v2303 = vadd.f32 0.0, %v2302
        %2304 = vdwg.mxu0
        %v2305 = vadd.f32 %v2236, %v2297
        %v2306 = vadd.f32 %v2237, %v2299
        %v2307 = vadd.f32 %v2238, %v2301
        %v2308 = vadd.f32 %v2239, %v2303
        %s2309 = scalar_lea.vmem %s5, 256
        %v2310 = vld [vmem:[%s2309] sm:$0xff]
        %v2311 = vld [vmem:[%s2309 + $0x8] sm:$0x77]
        %2312 = vrot.lane.b32.xlu0 %v1221, 86
        %v2313 = vpop.permute.xlu0 %2312
        %v2316 = vunpack.c.l.b16 %v2310
        %v2317 = vunpack.c.h.b16 %v2310
        %v2318 = vunpack.c.l.b16 %v2311
        %v2319 = vunpack.c.h.b16 %v2311
        %v2320 = vpack.c.b16 %v2318, %v2316
        %v2321 = vpack.c.b16 %v2319, %v2317
        %v2323 = vsel %vm1230, %v2313, 0
        %v2326 = vsel %vm1234, %v2320, 0
        %v2329 = vsel %vm1234, %v2321, 0
        %2331 = vmatprep.subr.bf16.mxu0 %v2329
        %2332 = vmatpush1.bf16.msra.mxu0 %v2326
        %2333 = vmatprep.subr.bf16.mxu0 0
        %2334 = vmatpush1.bf16.msra.mxu0 0
        %2335 = vmatprep.subr.bf16.mxu0 0
        %2336 = vmatpush1.bf16.msra.mxu0 0
        %2337 = vmatprep.subr.bf16.mxu0 0
        %2338 = vmatpush1.bf16.msra.mxu0 0
        %2339 = vmatprep.subr.bf16.mxu0 0
        %2340 = vmatpush1.bf16.msra.mxu0 0
        %2341 = vmatprep.subr.bf16.mxu0 0
        %2342 = vmatpush1.bf16.msra.mxu0 0
        %2343 = vmatprep.subr.bf16.mxu0 0
        %2344 = vmatpush1.bf16.msra.mxu0 0
        %2345 = vmatprep.subr.bf16.mxu0 0
        %2346 = vmatpush1.bf16.msra.mxu0 0
        %2347 = vmatprep.subr.bf16.mxu0 0
        %2348 = vmatpush1.bf16.msra.mxu0 0
        %2349 = vmatprep.subr.bf16.mxu0 0
        %2350 = vmatpush1.bf16.msra.mxu0 0
        %2351 = vmatprep.subr.bf16.mxu0 0
        %2352 = vmatpush1.bf16.msra.mxu0 0
        %2353 = vmatprep.subr.bf16.mxu0 0
        %2354 = vmatpush1.bf16.msra.mxu0 0
        %2355 = vmatprep.subr.bf16.mxu0 0
        %2356 = vmatpush1.bf16.msra.mxu0 0
        %2357 = vmatprep.subr.bf16.mxu0 0
        %2358 = vmatpush1.bf16.msra.mxu0 0
        %2359 = vmatprep.subr.bf16.mxu0 0
        %2360 = vmatpush1.bf16.msra.mxu0 0
        %2361 = vmatprep.subr.bf16.mxu0 0
        %2362 = vmatpush1.bf16.msra.mxu0 0
        %2363 = vmatprep.mubr.bf16.mxu0 0
        %2364 = vmatmul.mubr.bf16.gmra.mrb[0].mxu0 %v2323
        %v2365 = vpop.f32.mrb[0].mxu0
        %v2366 = vadd.f32 0.0, %v2365
        %v2367 = vpop.f32.mrb[0].mxu0
        %v2368 = vadd.f32 0.0, %v2367
        %v2369 = vpop.f32.mrb[0].mxu0
        %v2370 = vadd.f32 0.0, %v2369
        %v2371 = vpop.f32.mrb[0].mxu0
        %v2372 = vadd.f32 0.0, %v2371
        %2373 = vdwg.mxu0
        %v2374 = vadd.f32 %v2305, %v2366
        %v2375 = vadd.f32 %v2306, %v2368
        %v2376 = vadd.f32 %v2307, %v2370
        %v2377 = vadd.f32 %v2308, %v2372
        %s2378 = scalar_lea.vmem %s5, 272
        %v2379 = vld [vmem:[%s2378] sm:$0xff]
        %v2380 = vld [vmem:[%s2378 + $0x8] sm:$0x77]
        %2381 = vrot.lane.b32.xlu0 %v1347, 86
        %v2382 = vpop.permute.xlu0 %2381
        %v2385 = vunpack.c.l.b16 %v2379
        %v2386 = vunpack.c.h.b16 %v2379
        %v2387 = vunpack.c.l.b16 %v2380
        %v2388 = vunpack.c.h.b16 %v2380
        %v2389 = vpack.c.b16 %v2387, %v2385
        %v2390 = vpack.c.b16 %v2388, %v2386
        %v2392 = vsel %vm1230, %v2382, 0
        %v2395 = vsel %vm1234, %v2389, 0
        %v2398 = vsel %vm1234, %v2390, 0
        %2400 = vmatprep.subr.bf16.mxu0 %v2398
        %2401 = vmatpush1.bf16.msra.mxu0 %v2395
        %2402 = vmatprep.subr.bf16.mxu0 0
        %2403 = vmatpush1.bf16.msra.mxu0 0
        %2404 = vmatprep.subr.bf16.mxu0 0
        %2405 = vmatpush1.bf16.msra.mxu0 0
        %2406 = vmatprep.subr.bf16.mxu0 0
        %2407 = vmatpush1.bf16.msra.mxu0 0
        %2408 = vmatprep.subr.bf16.mxu0 0
        %2409 = vmatpush1.bf16.msra.mxu0 0
        %2410 = vmatprep.subr.bf16.mxu0 0
        %2411 = vmatpush1.bf16.msra.mxu0 0
        %2412 = vmatprep.subr.bf16.mxu0 0
        %2413 = vmatpush1.bf16.msra.mxu0 0
        %2414 = vmatprep.subr.bf16.mxu0 0
        %2415 = vmatpush1.bf16.msra.mxu0 0
        %2416 = vmatprep.subr.bf16.mxu0 0
        %2417 = vmatpush1.bf16.msra.mxu0 0
        %2418 = vmatprep.subr.bf16.mxu0 0
        %2419 = vmatpush1.bf16.msra.mxu0 0
        %2420 = vmatprep.subr.bf16.mxu0 0
        %2421 = vmatpush1.bf16.msra.mxu0 0
        %2422 = vmatprep.subr.bf16.mxu0 0
        %2423 = vmatpush1.bf16.msra.mxu0 0
        %2424 = vmatprep.subr.bf16.mxu0 0
        %2425 = vmatpush1.bf16.msra.mxu0 0
        %2426 = vmatprep.subr.bf16.mxu0 0
        %2427 = vmatpush1.bf16.msra.mxu0 0
        %2428 = vmatprep.subr.bf16.mxu0 0
        %2429 = vmatpush1.bf16.msra.mxu0 0
        %2430 = vmatprep.subr.bf16.mxu0 0
        %2431 = vmatpush1.bf16.msra.mxu0 0
        %2432 = vmatprep.mubr.bf16.mxu0 0
        %2433 = vmatmul.mubr.bf16.gmra.mrb[0].mxu0 %v2392
        %v2434 = vpop.f32.mrb[0].mxu0
        %v2435 = vadd.f32 0.0, %v2434
        %v2436 = vpop.f32.mrb[0].mxu0
        %v2437 = vadd.f32 0.0, %v2436
        %v2438 = vpop.f32.mrb[0].mxu0
        %v2439 = vadd.f32 0.0, %v2438
        %v2440 = vpop.f32.mrb[0].mxu0
        %v2441 = vadd.f32 0.0, %v2440
        %2442 = vdwg.mxu0
        %v2443 = vadd.f32 %v2374, %v2435
        %v2444 = vadd.f32 %v2375, %v2437
        %v2445 = vadd.f32 %v2376, %v2439
        %v2446 = vadd.f32 %v2377, %v2441
        %s2447 = scalar_lea.vmem %s5, 288
        %v2448 = vld [vmem:[%s2447] sm:$0xff]
        %v2449 = vld [vmem:[%s2447 + $0x8] sm:$0x77]
        %2450 = vrot.lane.b32.xlu0 %v1417, 86
        %v2451 = vpop.permute.xlu0 %2450
        %v2454 = vunpack.c.l.b16 %v2448
        %v2455 = vunpack.c.h.b16 %v2448
        %v2456 = vunpack.c.l.b16 %v2449
        %v2457 = vunpack.c.h.b16 %v2449
        %v2458 = vpack.c.b16 %v2456, %v2454
        %v2459 = vpack.c.b16 %v2457, %v2455
        %v2461 = vsel %vm1230, %v2451, 0
        %v2464 = vsel %vm1234, %v2458, 0
        %v2467 = vsel %vm1234, %v2459, 0
        %2469 = vmatprep.subr.bf16.mxu0 %v2467
        %2470 = vmatpush1.bf16.msra.mxu0 %v2464
        %2471 = vmatprep.subr.bf16.mxu0 0
        %2472 = vmatpush1.bf16.msra.mxu0 0
        %2473 = vmatprep.subr.bf16.mxu0 0
        %2474 = vmatpush1.bf16.msra.mxu0 0
        %2475 = vmatprep.subr.bf16.mxu0 0
        %2476 = vmatpush1.bf16.msra.mxu0 0
        %2477 = vmatprep.subr.bf16.mxu0 0
        %2478 = vmatpush1.bf16.msra.mxu0 0
        %2479 = vmatprep.subr.bf16.mxu0 0
        %2480 = vmatpush1.bf16.msra.mxu0 0
        %2481 = vmatprep.subr.bf16.mxu0 0
        %2482 = vmatpush1.bf16.msra.mxu0 0
        %2483 = vmatprep.subr.bf16.mxu0 0
        %2484 = vmatpush1.bf16.msra.mxu0 0
        %2485 = vmatprep.subr.bf16.mxu0 0
        %2486 = vmatpush1.bf16.msra.mxu0 0
        %2487 = vmatprep.subr.bf16.mxu0 0
        %2488 = vmatpush1.bf16.msra.mxu0 0
        %2489 = vmatprep.subr.bf16.mxu0 0
        %2490 = vmatpush1.bf16.msra.mxu0 0
        %2491 = vmatprep.subr.bf16.mxu0 0
        %2492 = vmatpush1.bf16.msra.mxu0 0
        %2493 = vmatprep.subr.bf16.mxu0 0
        %2494 = vmatpush1.bf16.msra.mxu0 0
        %2495 = vmatprep.subr.bf16.mxu0 0
        %2496 = vmatpush1.bf16.msra.mxu0 0
        %2497 = vmatprep.subr.bf16.mxu0 0
        %2498 = vmatpush1.bf16.msra.mxu0 0
        %2499 = vmatprep.subr.bf16.mxu0 0
        %2500 = vmatpush1.bf16.msra.mxu0 0
        %2501 = vmatprep.mubr.bf16.mxu0 0
        %2502 = vmatmul.mubr.bf16.gmra.mrb[0].mxu0 %v2461
        %v2503 = vpop.f32.mrb[0].mxu0
        %v2504 = vadd.f32 0.0, %v2503
        %v2505 = vpop.f32.mrb[0].mxu0
        %v2506 = vadd.f32 0.0, %v2505
        %v2507 = vpop.f32.mrb[0].mxu0
        %v2508 = vadd.f32 0.0, %v2507
        %v2509 = vpop.f32.mrb[0].mxu0
        %v2510 = vadd.f32 0.0, %v2509
        %2511 = vdwg.mxu0
        %v2512 = vadd.f32 %v2443, %v2504
        %v2513 = vadd.f32 %v2444, %v2506
        %v2514 = vadd.f32 %v2445, %v2508
        %v2515 = vadd.f32 %v2446, %v2510
        %s2516 = scalar_lea.vmem %s5, 304
        %v2517 = vld [vmem:[%s2516] sm:$0xff]
        %v2518 = vld [vmem:[%s2516 + $0x8] sm:$0x77]
        %2519 = vrot.lane.b32.xlu0 %v1485, 86
        %v2520 = vpop.permute.xlu0 %2519
        %v2523 = vunpack.c.l.b16 %v2517
        %v2524 = vunpack.c.h.b16 %v2517
        %v2525 = vunpack.c.l.b16 %v2518
        %v2526 = vunpack.c.h.b16 %v2518
        %v2527 = vpack.c.b16 %v2525, %v2523
        %v2528 = vpack.c.b16 %v2526, %v2524
        %v2530 = vsel %vm1230, %v2520, 0
        %v2533 = vsel %vm1234, %v2527, 0
        %v2536 = vsel %vm1234, %v2528, 0
        %2538 = vmatprep.subr.bf16.mxu0 %v2536
        %2539 = vmatpush1.bf16.msra.mxu0 %v2533
        %2540 = vmatprep.subr.bf16.mxu0 0
        %2541 = vmatpush1.bf16.msra.mxu0 0
        %2542 = vmatprep.subr.bf16.mxu0 0
        %2543 = vmatpush1.bf16.msra.mxu0 0
        %2544 = vmatprep.subr.bf16.mxu0 0
        %2545 = vmatpush1.bf16.msra.mxu0 0
        %2546 = vmatprep.subr.bf16.mxu0 0
        %2547 = vmatpush1.bf16.msra.mxu0 0
        %2548 = vmatprep.subr.bf16.mxu0 0
        %2549 = vmatpush1.bf16.msra.mxu0 0
        %2550 = vmatprep.subr.bf16.mxu0 0
        %2551 = vmatpush1.bf16.msra.mxu0 0
        %2552 = vmatprep.subr.bf16.mxu0 0
        %2553 = vmatpush1.bf16.msra.mxu0 0
        %2554 = vmatprep.subr.bf16.mxu0 0
        %2555 = vmatpush1.bf16.msra.mxu0 0
        %2556 = vmatprep.subr.bf16.mxu0 0
        %2557 = vmatpush1.bf16.msra.mxu0 0
        %2558 = vmatprep.subr.bf16.mxu0 0
        %2559 = vmatpush1.bf16.msra.mxu0 0
        %2560 = vmatprep.subr.bf16.mxu0 0
        %2561 = vmatpush1.bf16.msra.mxu0 0
        %2562 = vmatprep.subr.bf16.mxu0 0
        %2563 = vmatpush1.bf16.msra.mxu0 0
        %2564 = vmatprep.subr.bf16.mxu0 0
        %2565 = vmatpush1.bf16.msra.mxu0 0
        %2566 = vmatprep.subr.bf16.mxu0 0
        %2567 = vmatpush1.bf16.msra.mxu0 0
        %2568 = vmatprep.subr.bf16.mxu0 0
        %2569 = vmatpush1.bf16.msra.mxu0 0
        %2570 = vmatprep.mubr.bf16.mxu0 0
        %2571 = vmatmul.mubr.bf16.gmra.mrb[0].mxu0 %v2530
        %v2572 = vpop.f32.mrb[0].mxu0
        %v2573 = vadd.f32 0.0, %v2572
        %v2574 = vpop.f32.mrb[0].mxu0
        %v2575 = vadd.f32 0.0, %v2574
        %v2576 = vpop.f32.mrb[0].mxu0
        %v2577 = vadd.f32 0.0, %v2576
        %v2578 = vpop.f32.mrb[0].mxu0
        %v2579 = vadd.f32 0.0, %v2578
        %2580 = vdwg.mxu0
        %v2581 = vadd.f32 %v2512, %v2573
        %v2582 = vadd.f32 %v2513, %v2575
        %v2583 = vadd.f32 %v2514, %v2577
        %v2584 = vadd.f32 %v2515, %v2579
        %s2585 = scalar_lea.vmem %s5, 320
        %v2586 = vld [vmem:[%s2585] sm:$0xff]
        %v2587 = vld [vmem:[%s2585 + $0x8] sm:$0x77]
        %2588 = vrot.lane.b32.xlu0 %v1209, 72
        %v2589 = vpop.permute.xlu0 %2588
        %v2592 = vunpack.c.l.b16 %v2586
        %v2593 = vunpack.c.h.b16 %v2586
        %v2594 = vunpack.c.l.b16 %v2587
        %v2595 = vunpack.c.h.b16 %v2587
        %v2596 = vpack.c.b16 %v2594, %v2592
        %v2597 = vpack.c.b16 %v2595, %v2593
        %v2599 = vsel %vm1230, %v2589, 0
        %v2602 = vsel %vm1234, %v2596, 0
        %v2605 = vsel %vm1234, %v2597, 0
        %2607 = vmatprep.subr.bf16.mxu0 %v2605
        %2608 = vmatpush1.bf16.msra.mxu0 %v2602
        %2609 = vmatprep.subr.bf16.mxu0 0
        %2610 = vmatpush1.bf16.msra.mxu0 0
        %2611 = vmatprep.subr.bf16.mxu0 0
        %2612 = vmatpush1.bf16.msra.mxu0 0
        %2613 = vmatprep.subr.bf16.mxu0 0
        %2614 = vmatpush1.bf16.msra.mxu0 0
        %2615 = vmatprep.subr.bf16.mxu0 0
        %2616 = vmatpush1.bf16.msra.mxu0 0
        %2617 = vmatprep.subr.bf16.mxu0 0
        %2618 = vmatpush1.bf16.msra.mxu0 0
        %2619 = vmatprep.subr.bf16.mxu0 0
        %2620 = vmatpush1.bf16.msra.mxu0 0
        %2621 = vmatprep.subr.bf16.mxu0 0
        %2622 = vmatpush1.bf16.msra.mxu0 0
        %2623 = vmatprep.subr.bf16.mxu0 0
        %2624 = vmatpush1.bf16.msra.mxu0 0
        %2625 = vmatprep.subr.bf16.mxu0 0
        %2626 = vmatpush1.bf16.msra.mxu0 0
        %2627 = vmatprep.subr.bf16.mxu0 0
        %2628 = vmatpush1.bf16.msra.mxu0 0
        %2629 = vmatprep.subr.bf16.mxu0 0
        %2630 = vmatpush1.bf16.msra.mxu0 0
        %2631 = vmatprep.subr.bf16.mxu0 0
        %2632 = vmatpush1.bf16.msra.mxu0 0
        %2633 = vmatprep.subr.bf16.mxu0 0
        %2634 = vmatpush1.bf16.msra.mxu0 0
        %2635 = vmatprep.subr.bf16.mxu0 0
        %2636 = vmatpush1.bf16.msra.mxu0 0
        %2637 = vmatprep.subr.bf16.mxu0 0
        %2638 = vmatpush1.bf16.msra.mxu0 0
        %2639 = vmatprep.mubr.bf16.mxu0 0
        %2640 = vmatmul.mubr.bf16.gmra.mrb[0].mxu0 %v2599
        %v2641 = vpop.f32.mrb[0].mxu0
        %v2642 = vadd.f32 0.0, %v2641
        %v2643 = vpop.f32.mrb[0].mxu0
        %v2644 = vadd.f32 0.0, %v2643
        %v2645 = vpop.f32.mrb[0].mxu0
        %v2646 = vadd.f32 0.0, %v2645
        %v2647 = vpop.f32.mrb[0].mxu0
        %v2648 = vadd.f32 0.0, %v2647
        %2649 = vdwg.mxu0
        %v2650 = vadd.f32 %v2581, %v2642
        %v2651 = vadd.f32 %v2582, %v2644
        %v2652 = vadd.f32 %v2583, %v2646
        %v2653 = vadd.f32 %v2584, %v2648
        %s2654 = scalar_lea.vmem %s5, 336
        %v2655 = vld [vmem:[%s2654] sm:$0xff]
        %v2656 = vld [vmem:[%s2654 + $0x8] sm:$0x77]
        %2657 = vrot.lane.b32.xlu0 %v1221, 72
        %v2658 = vpop.permute.xlu0 %2657
        %v2661 = vunpack.c.l.b16 %v2655
        %v2662 = vunpack.c.h.b16 %v2655
        %v2663 = vunpack.c.l.b16 %v2656
        %v2664 = vunpack.c.h.b16 %v2656
        %v2665 = vpack.c.b16 %v2663, %v2661
        %v2666 = vpack.c.b16 %v2664, %v2662
        %v2668 = vsel %vm1230, %v2658, 0
        %v2671 = vsel %vm1234, %v2665, 0
        %v2674 = vsel %vm1234, %v2666, 0
        %2676 = vmatprep.subr.bf16.mxu0 %v2674
        %2677 = vmatpush1.bf16.msra.mxu0 %v2671
        %2678 = vmatprep.subr.bf16.mxu0 0
        %2679 = vmatpush1.bf16.msra.mxu0 0
        %2680 = vmatprep.subr.bf16.mxu0 0
        %2681 = vmatpush1.bf16.msra.mxu0 0
        %2682 = vmatprep.subr.bf16.mxu0 0
        %2683 = vmatpush1.bf16.msra.mxu0 0
        %2684 = vmatprep.subr.bf16.mxu0 0
        %2685 = vmatpush1.bf16.msra.mxu0 0
        %2686 = vmatprep.subr.bf16.mxu0 0
        %2687 = vmatpush1.bf16.msra.mxu0 0
        %2688 = vmatprep.subr.bf16.mxu0 0
        %2689 = vmatpush1.bf16.msra.mxu0 0
        %2690 = vmatprep.subr.bf16.mxu0 0
        %2691 = vmatpush1.bf16.msra.mxu0 0
        %2692 = vmatprep.subr.bf16.mxu0 0
        %2693 = vmatpush1.bf16.msra.mxu0 0
        %2694 = vmatprep.subr.bf16.mxu0 0
        %2695 = vmatpush1.bf16.msra.mxu0 0
        %2696 = vmatprep.subr.bf16.mxu0 0
        %2697 = vmatpush1.bf16.msra.mxu0 0
        %2698 = vmatprep.subr.bf16.mxu0 0
        %2699 = vmatpush1.bf16.msra.mxu0 0
        %2700 = vmatprep.subr.bf16.mxu0 0
        %2701 = vmatpush1.bf16.msra.mxu0 0
        %2702 = vmatprep.subr.bf16.mxu0 0
        %2703 = vmatpush1.bf16.msra.mxu0 0
        %2704 = vmatprep.subr.bf16.mxu0 0
        %2705 = vmatpush1.bf16.msra.mxu0 0
        %2706 = vmatprep.subr.bf16.mxu0 0
        %2707 = vmatpush1.bf16.msra.mxu0 0
        %2708 = vmatprep.mubr.bf16.mxu0 0
        %2709 = vmatmul.mubr.bf16.gmra.mrb[0].mxu0 %v2668
        %v2710 = vpop.f32.mrb[0].mxu0
        %v2711 = vadd.f32 0.0, %v2710
        %v2712 = vpop.f32.mrb[0].mxu0
        %v2713 = vadd.f32 0.0, %v2712
        %v2714 = vpop.f32.mrb[0].mxu0
        %v2715 = vadd.f32 0.0, %v2714
        %v2716 = vpop.f32.mrb[0].mxu0
        %v2717 = vadd.f32 0.0, %v2716
        %2718 = vdwg.mxu0
        %v2719 = vadd.f32 %v2650, %v2711
        %v2720 = vadd.f32 %v2651, %v2713
        %v2721 = vadd.f32 %v2652, %v2715
        %v2722 = vadd.f32 %v2653, %v2717
        %s2723 = scalar_lea.vmem %s5, 352
        %v2724 = vld [vmem:[%s2723] sm:$0xff]
        %v2725 = vld [vmem:[%s2723 + $0x8] sm:$0x77]
        %2726 = vrot.lane.b32.xlu0 %v1347, 72
        %v2727 = vpop.permute.xlu0 %2726
        %v2730 = vunpack.c.l.b16 %v2724
        %v2731 = vunpack.c.h.b16 %v2724
        %v2732 = vunpack.c.l.b16 %v2725
        %v2733 = vunpack.c.h.b16 %v2725
        %v2734 = vpack.c.b16 %v2732, %v2730
        %v2735 = vpack.c.b16 %v2733, %v2731
        %v2737 = vsel %vm1230, %v2727, 0
        %v2740 = vsel %vm1234, %v2734, 0
        %v2743 = vsel %vm1234, %v2735, 0
        %2745 = vmatprep.subr.bf16.mxu0 %v2743
        %2746 = vmatpush1.bf16.msra.mxu0 %v2740
        %2747 = vmatprep.subr.bf16.mxu0 0
        %2748 = vmatpush1.bf16.msra.mxu0 0
        %2749 = vmatprep.subr.bf16.mxu0 0
        %2750 = vmatpush1.bf16.msra.mxu0 0
        %2751 = vmatprep.subr.bf16.mxu0 0
        %2752 = vmatpush1.bf16.msra.mxu0 0
        %2753 = vmatprep.subr.bf16.mxu0 0
        %2754 = vmatpush1.bf16.msra.mxu0 0
        %2755 = vmatprep.subr.bf16.mxu0 0
        %2756 = vmatpush1.bf16.msra.mxu0 0
        %2757 = vmatprep.subr.bf16.mxu0 0
        %2758 = vmatpush1.bf16.msra.mxu0 0
        %2759 = vmatprep.subr.bf16.mxu0 0
        %2760 = vmatpush1.bf16.msra.mxu0 0
        %2761 = vmatprep.subr.bf16.mxu0 0
        %2762 = vmatpush1.bf16.msra.mxu0 0
        %2763 = vmatprep.subr.bf16.mxu0 0
        %2764 = vmatpush1.bf16.msra.mxu0 0
        %2765 = vmatprep.subr.bf16.mxu0 0
        %2766 = vmatpush1.bf16.msra.mxu0 0
        %2767 = vmatprep.subr.bf16.mxu0 0
        %2768 = vmatpush1.bf16.msra.mxu0 0
        %2769 = vmatprep.subr.bf16.mxu0 0
        %2770 = vmatpush1.bf16.msra.mxu0 0
        %2771 = vmatprep.subr.bf16.mxu0 0
        %2772 = vmatpush1.bf16.msra.mxu0 0
        %2773 = vmatprep.subr.bf16.mxu0 0
        %2774 = vmatpush1.bf16.msra.mxu0 0
        %2775 = vmatprep.subr.bf16.mxu0 0
        %2776 = vmatpush1.bf16.msra.mxu0 0
        %2777 = vmatprep.mubr.bf16.mxu0 0
        %2778 = vmatmul.mubr.bf16.gmra.mrb[0].mxu0 %v2737
        %v2779 = vpop.f32.mrb[0].mxu0
        %v2780 = vadd.f32 0.0, %v2779
        %v2781 = vpop.f32.mrb[0].mxu0
        %v2782 = vadd.f32 0.0, %v2781
        %v2783 = vpop.f32.mrb[0].mxu0
        %v2784 = vadd.f32 0.0, %v2783
        %v2785 = vpop.f32.mrb[0].mxu0
        %v2786 = vadd.f32 0.0, %v2785
        %2787 = vdwg.mxu0
        %v2788 = vadd.f32 %v2719, %v2780
        %v2789 = vadd.f32 %v2720, %v2782
        %v2790 = vadd.f32 %v2721, %v2784
        %v2791 = vadd.f32 %v2722, %v2786
        %s2792 = scalar_lea.vmem %s5, 368
        %v2793 = vld [vmem:[%s2792] sm:$0xff]
        %v2794 = vld [vmem:[%s2792 + $0x8] sm:$0x77]
        %2795 = vrot.lane.b32.xlu0 %v1417, 72
        %v2796 = vpop.permute.xlu0 %2795
        %v2799 = vunpack.c.l.b16 %v2793
        %v2800 = vunpack.c.h.b16 %v2793
        %v2801 = vunpack.c.l.b16 %v2794
        %v2802 = vunpack.c.h.b16 %v2794
        %v2803 = vpack.c.b16 %v2801, %v2799
        %v2804 = vpack.c.b16 %v2802, %v2800
        %v2806 = vsel %vm1230, %v2796, 0
        %v2809 = vsel %vm1234, %v2803, 0
        %v2812 = vsel %vm1234, %v2804, 0
        %2814 = vmatprep.subr.bf16.mxu0 %v2812
        %2815 = vmatpush1.bf16.msra.mxu0 %v2809
        %2816 = vmatprep.subr.bf16.mxu0 0
        %2817 = vmatpush1.bf16.msra.mxu0 0
        %2818 = vmatprep.subr.bf16.mxu0 0
        %2819 = vmatpush1.bf16.msra.mxu0 0
        %2820 = vmatprep.subr.bf16.mxu0 0
        %2821 = vmatpush1.bf16.msra.mxu0 0
        %2822 = vmatprep.subr.bf16.mxu0 0
        %2823 = vmatpush1.bf16.msra.mxu0 0
        %2824 = vmatprep.subr.bf16.mxu0 0
        %2825 = vmatpush1.bf16.msra.mxu0 0
        %2826 = vmatprep.subr.bf16.mxu0 0
        %2827 = vmatpush1.bf16.msra.mxu0 0
        %2828 = vmatprep.subr.bf16.mxu0 0
        %2829 = vmatpush1.bf16.msra.mxu0 0
        %2830 = vmatprep.subr.bf16.mxu0 0
        %2831 = vmatpush1.bf16.msra.mxu0 0
        %2832 = vmatprep.subr.bf16.mxu0 0
        %2833 = vmatpush1.bf16.msra.mxu0 0
        %2834 = vmatprep.subr.bf16.mxu0 0
        %2835 = vmatpush1.bf16.msra.mxu0 0
        %2836 = vmatprep.subr.bf16.mxu0 0
        %2837 = vmatpush1.bf16.msra.mxu0 0
        %2838 = vmatprep.subr.bf16.mxu0 0
        %2839 = vmatpush1.bf16.msra.mxu0 0
        %2840 = vmatprep.subr.bf16.mxu0 0
        %2841 = vmatpush1.bf16.msra.mxu0 0
        %2842 = vmatprep.subr.bf16.mxu0 0
        %2843 = vmatpush1.bf16.msra.mxu0 0
        %2844 = vmatprep.subr.bf16.mxu0 0
        %2845 = vmatpush1.bf16.msra.mxu0 0
        %2846 = vmatprep.mubr.bf16.mxu0 0
        %2847 = vmatmul.mubr.bf16.gmra.mrb[0].mxu0 %v2806
        %v2848 = vpop.f32.mrb[0].mxu0
        %v2849 = vadd.f32 0.0, %v2848
        %v2850 = vpop.f32.mrb[0].mxu0
        %v2851 = vadd.f32 0.0, %v2850
        %v2852 = vpop.f32.mrb[0].mxu0
        %v2853 = vadd.f32 0.0, %v2852
        %v2854 = vpop.f32.mrb[0].mxu0
        %v2855 = vadd.f32 0.0, %v2854
        %2856 = vdwg.mxu0
        %v2857 = vadd.f32 %v2788, %v2849
        %v2858 = vadd.f32 %v2789, %v2851
        %v2859 = vadd.f32 %v2790, %v2853
        %v2860 = vadd.f32 %v2791, %v2855
        %s2861 = scalar_lea.vmem %s5, 384
        %v2862 = vld [vmem:[%s2861] sm:$0xff]
        %v2863 = vld [vmem:[%s2861 + $0x8] sm:$0x77]
        %2864 = vrot.lane.b32.xlu0 %v1485, 72
        %v2865 = vpop.permute.xlu0 %2864
        %v2868 = vunpack.c.l.b16 %v2862
        %v2869 = vunpack.c.h.b16 %v2862
        %v2870 = vunpack.c.l.b16 %v2863
        %v2871 = vunpack.c.h.b16 %v2863
        %v2872 = vpack.c.b16 %v2870, %v2868
        %v2873 = vpack.c.b16 %v2871, %v2869
        %v2875 = vsel %vm1230, %v2865, 0
        %v2878 = vsel %vm1234, %v2872, 0
        %v2881 = vsel %vm1234, %v2873, 0
        %2883 = vmatprep.subr.bf16.mxu0 %v2881
        %2884 = vmatpush1.bf16.msra.mxu0 %v2878
        %2885 = vmatprep.subr.bf16.mxu0 0
        %2886 = vmatpush1.bf16.msra.mxu0 0
        %2887 = vmatprep.subr.bf16.mxu0 0
        %2888 = vmatpush1.bf16.msra.mxu0 0
        %2889 = vmatprep.subr.bf16.mxu0 0
        %2890 = vmatpush1.bf16.msra.mxu0 0
        %2891 = vmatprep.subr.bf16.mxu0 0
        %2892 = vmatpush1.bf16.msra.mxu0 0
        %2893 = vmatprep.subr.bf16.mxu0 0
        %2894 = vmatpush1.bf16.msra.mxu0 0
        %2895 = vmatprep.subr.bf16.mxu0 0
        %2896 = vmatpush1.bf16.msra.mxu0 0
        %2897 = vmatprep.subr.bf16.mxu0 0
        %2898 = vmatpush1.bf16.msra.mxu0 0
        %2899 = vmatprep.subr.bf16.mxu0 0
        %2900 = vmatpush1.bf16.msra.mxu0 0
        %2901 = vmatprep.subr.bf16.mxu0 0
        %2902 = vmatpush1.bf16.msra.mxu0 0
        %2903 = vmatprep.subr.bf16.mxu0 0
        %2904 = vmatpush1.bf16.msra.mxu0 0
        %2905 = vmatprep.subr.bf16.mxu0 0
        %2906 = vmatpush1.bf16.msra.mxu0 0
        %2907 = vmatprep.subr.bf16.mxu0 0
        %2908 = vmatpush1.bf16.msra.mxu0 0
        %2909 = vmatprep.subr.bf16.mxu0 0
        %2910 = vmatpush1.bf16.msra.mxu0 0
        %2911 = vmatprep.subr.bf16.mxu0 0
        %2912 = vmatpush1.bf16.msra.mxu0 0
        %2913 = vmatprep.subr.bf16.mxu0 0
        %2914 = vmatpush1.bf16.msra.mxu0 0
        %2915 = vmatprep.mubr.bf16.mxu0 0
        %2916 = vmatmul.mubr.bf16.gmra.mrb[0].mxu0 %v2875
        %v2917 = vpop.f32.mrb[0].mxu0
        %v2918 = vadd.f32 0.0, %v2917
        %v2919 = vpop.f32.mrb[0].mxu0
        %v2920 = vadd.f32 0.0, %v2919
        %v2921 = vpop.f32.mrb[0].mxu0
        %v2922 = vadd.f32 0.0, %v2921
        %v2923 = vpop.f32.mrb[0].mxu0
        %v2924 = vadd.f32 0.0, %v2923
        %2925 = vdwg.mxu0
        %v2926 = vadd.f32 %v2857, %v2918
        %v2927 = vadd.f32 %v2858, %v2920
        %v2928 = vadd.f32 %v2859, %v2922
        %v2929 = vadd.f32 %v2860, %v2924
        %s2930 = scalar_lea.vmem %s5, 400
        %v2931 = vld [vmem:[%s2930] sm:$0xff]
        %v2932 = vld [vmem:[%s2930 + $0x8] sm:$0x77]
        %2933 = vrot.lane.b32.xlu0 %v1209, 58
        %v2934 = vpop.permute.xlu0 %2933
        %v2937 = vunpack.c.l.b16 %v2931
        %v2938 = vunpack.c.h.b16 %v2931
        %v2939 = vunpack.c.l.b16 %v2932
        %v2940 = vunpack.c.h.b16 %v2932
        %v2941 = vpack.c.b16 %v2939, %v2937
        %v2942 = vpack.c.b16 %v2940, %v2938
        %v2944 = vsel %vm1230, %v2934, 0
        %v2947 = vsel %vm1234, %v2941, 0
        %v2950 = vsel %vm1234, %v2942, 0
        %2952 = vmatprep.subr.bf16.mxu0 %v2950
        %2953 = vmatpush1.bf16.msra.mxu0 %v2947
        %2954 = vmatprep.subr.bf16.mxu0 0
        %2955 = vmatpush1.bf16.msra.mxu0 0
        %2956 = vmatprep.subr.bf16.mxu0 0
        %2957 = vmatpush1.bf16.msra.mxu0 0
        %2958 = vmatprep.subr.bf16.mxu0 0
        %2959 = vmatpush1.bf16.msra.mxu0 0
        %2960 = vmatprep.subr.bf16.mxu0 0
        %2961 = vmatpush1.bf16.msra.mxu0 0
        %2962 = vmatprep.subr.bf16.mxu0 0
        %2963 = vmatpush1.bf16.msra.mxu0 0
        %2964 = vmatprep.subr.bf16.mxu0 0
        %2965 = vmatpush1.bf16.msra.mxu0 0
        %2966 = vmatprep.subr.bf16.mxu0 0
        %2967 = vmatpush1.bf16.msra.mxu0 0
        %2968 = vmatprep.subr.bf16.mxu0 0
        %2969 = vmatpush1.bf16.msra.mxu0 0
        %2970 = vmatprep.subr.bf16.mxu0 0
        %2971 = vmatpush1.bf16.msra.mxu0 0
        %2972 = vmatprep.subr.bf16.mxu0 0
        %2973 = vmatpush1.bf16.msra.mxu0 0
        %2974 = vmatprep.subr.bf16.mxu0 0
        %2975 = vmatpush1.bf16.msra.mxu0 0
        %2976 = vmatprep.subr.bf16.mxu0 0
        %2977 = vmatpush1.bf16.msra.mxu0 0
        %2978 = vmatprep.subr.bf16.mxu0 0
        %2979 = vmatpush1.bf16.msra.mxu0 0
        %2980 = vmatprep.subr.bf16.mxu0 0
        %2981 = vmatpush1.bf16.msra.mxu0 0
        %2982 = vmatprep.subr.bf16.mxu0 0
        %2983 = vmatpush1.bf16.msra.mxu0 0
        %2984 = vmatprep.mubr.bf16.mxu0 0
        %2985 = vmatmul.mubr.bf16.gmra.mrb[0].mxu0 %v2944
        %v2986 = vpop.f32.mrb[0].mxu0
        %v2987 = vadd.f32 0.0, %v2986
        %v2988 = vpop.f32.mrb[0].mxu0
        %v2989 = vadd.f32 0.0, %v2988
        %v2990 = vpop.f32.mrb[0].mxu0
        %v2991 = vadd.f32 0.0, %v2990
        %v2992 = vpop.f32.mrb[0].mxu0
        %v2993 = vadd.f32 0.0, %v2992
        %2994 = vdwg.mxu0
        %v2995 = vadd.f32 %v2926, %v2987
        %v2996 = vadd.f32 %v2927, %v2989
        %v2997 = vadd.f32 %v2928, %v2991
        %v2998 = vadd.f32 %v2929, %v2993
        %s2999 = scalar_lea.vmem %s5, 416
        %v3000 = vld [vmem:[%s2999] sm:$0xff]
        %v3001 = vld [vmem:[%s2999 + $0x8] sm:$0x77]
        %3002 = vrot.lane.b32.xlu0 %v1221, 58
        %v3003 = vpop.permute.xlu0 %3002
        %v3006 = vunpack.c.l.b16 %v3000
        %v3007 = vunpack.c.h.b16 %v3000
        %v3008 = vunpack.c.l.b16 %v3001
        %v3009 = vunpack.c.h.b16 %v3001
        %v3010 = vpack.c.b16 %v3008, %v3006
        %v3011 = vpack.c.b16 %v3009, %v3007
        %v3013 = vsel %vm1230, %v3003, 0
        %v3016 = vsel %vm1234, %v3010, 0
        %v3019 = vsel %vm1234, %v3011, 0
        %3021 = vmatprep.subr.bf16.mxu0 %v3019
        %3022 = vmatpush1.bf16.msra.mxu0 %v3016
        %3023 = vmatprep.subr.bf16.mxu0 0
        %3024 = vmatpush1.bf16.msra.mxu0 0
        %3025 = vmatprep.subr.bf16.mxu0 0
        %3026 = vmatpush1.bf16.msra.mxu0 0
        %3027 = vmatprep.subr.bf16.mxu0 0
        %3028 = vmatpush1.bf16.msra.mxu0 0
        %3029 = vmatprep.subr.bf16.mxu0 0
        %3030 = vmatpush1.bf16.msra.mxu0 0
        %3031 = vmatprep.subr.bf16.mxu0 0
        %3032 = vmatpush1.bf16.msra.mxu0 0
        %3033 = vmatprep.subr.bf16.mxu0 0
        %3034 = vmatpush1.bf16.msra.mxu0 0
        %3035 = vmatprep.subr.bf16.mxu0 0
        %3036 = vmatpush1.bf16.msra.mxu0 0
        %3037 = vmatprep.subr.bf16.mxu0 0
        %3038 = vmatpush1.bf16.msra.mxu0 0
        %3039 = vmatprep.subr.bf16.mxu0 0
        %3040 = vmatpush1.bf16.msra.mxu0 0
        %3041 = vmatprep.subr.bf16.mxu0 0
        %3042 = vmatpush1.bf16.msra.mxu0 0
        %3043 = vmatprep.subr.bf16.mxu0 0
        %3044 = vmatpush1.bf16.msra.mxu0 0
        %3045 = vmatprep.subr.bf16.mxu0 0
        %3046 = vmatpush1.bf16.msra.mxu0 0
        %3047 = vmatprep.subr.bf16.mxu0 0
        %3048 = vmatpush1.bf16.msra.mxu0 0
        %3049 = vmatprep.subr.bf16.mxu0 0
        %3050 = vmatpush1.bf16.msra.mxu0 0
        %3051 = vmatprep.subr.bf16.mxu0 0
        %3052 = vmatpush1.bf16.msra.mxu0 0
        %3053 = vmatprep.mubr.bf16.mxu0 0
        %3054 = vmatmul.mubr.bf16.gmra.mrb[0].mxu0 %v3013
        %v3055 = vpop.f32.mrb[0].mxu0
        %v3056 = vadd.f32 0.0, %v3055
        %v3057 = vpop.f32.mrb[0].mxu0
        %v3058 = vadd.f32 0.0, %v3057
        %v3059 = vpop.f32.mrb[0].mxu0
        %v3060 = vadd.f32 0.0, %v3059
        %v3061 = vpop.f32.mrb[0].mxu0
        %v3062 = vadd.f32 0.0, %v3061
        %3063 = vdwg.mxu0
        %v3064 = vadd.f32 %v2995, %v3056
        %v3065 = vadd.f32 %v2996, %v3058
        %v3066 = vadd.f32 %v2997, %v3060
        %v3067 = vadd.f32 %v2998, %v3062
        %s3068 = scalar_lea.vmem %s5, 432
        %v3069 = vld [vmem:[%s3068] sm:$0xff]
        %v3070 = vld [vmem:[%s3068 + $0x8] sm:$0x77]
        %3071 = vrot.lane.b32.xlu0 %v1347, 58
        %v3072 = vpop.permute.xlu0 %3071
        %v3075 = vunpack.c.l.b16 %v3069
        %v3076 = vunpack.c.h.b16 %v3069
        %v3077 = vunpack.c.l.b16 %v3070
        %v3078 = vunpack.c.h.b16 %v3070
        %v3079 = vpack.c.b16 %v3077, %v3075
        %v3080 = vpack.c.b16 %v3078, %v3076
        %v3082 = vsel %vm1230, %v3072, 0
        %v3085 = vsel %vm1234, %v3079, 0
        %v3088 = vsel %vm1234, %v3080, 0
        %3090 = vmatprep.subr.bf16.mxu0 %v3088
        %3091 = vmatpush1.bf16.msra.mxu0 %v3085
        %3092 = vmatprep.subr.bf16.mxu0 0
        %3093 = vmatpush1.bf16.msra.mxu0 0
        %3094 = vmatprep.subr.bf16.mxu0 0
        %3095 = vmatpush1.bf16.msra.mxu0 0
        %3096 = vmatprep.subr.bf16.mxu0 0
        %3097 = vmatpush1.bf16.msra.mxu0 0
        %3098 = vmatprep.subr.bf16.mxu0 0
        %3099 = vmatpush1.bf16.msra.mxu0 0
        %3100 = vmatprep.subr.bf16.mxu0 0
        %3101 = vmatpush1.bf16.msra.mxu0 0
        %3102 = vmatprep.subr.bf16.mxu0 0
        %3103 = vmatpush1.bf16.msra.mxu0 0
        %3104 = vmatprep.subr.bf16.mxu0 0
        %3105 = vmatpush1.bf16.msra.mxu0 0
        %3106 = vmatprep.subr.bf16.mxu0 0
        %3107 = vmatpush1.bf16.msra.mxu0 0
        %3108 = vmatprep.subr.bf16.mxu0 0
        %3109 = vmatpush1.bf16.msra.mxu0 0
        %3110 = vmatprep.subr.bf16.mxu0 0
        %3111 = vmatpush1.bf16.msra.mxu0 0
        %3112 = vmatprep.subr.bf16.mxu0 0
        %3113 = vmatpush1.bf16.msra.mxu0 0
        %3114 = vmatprep.subr.bf16.mxu0 0
        %3115 = vmatpush1.bf16.msra.mxu0 0
        %3116 = vmatprep.subr.bf16.mxu0 0
        %3117 = vmatpush1.bf16.msra.mxu0 0
        %3118 = vmatprep.subr.bf16.mxu0 0
        %3119 = vmatpush1.bf16.msra.mxu0 0
        %3120 = vmatprep.subr.bf16.mxu0 0
        %3121 = vmatpush1.bf16.msra.mxu0 0
        %3122 = vmatprep.mubr.bf16.mxu0 0
        %3123 = vmatmul.mubr.bf16.gmra.mrb[0].mxu0 %v3082
        %v3124 = vpop.f32.mrb[0].mxu0
        %v3125 = vadd.f32 0.0, %v3124
        %v3126 = vpop.f32.mrb[0].mxu0
        %v3127 = vadd.f32 0.0, %v3126
        %v3128 = vpop.f32.mrb[0].mxu0
        %v3129 = vadd.f32 0.0, %v3128
        %v3130 = vpop.f32.mrb[0].mxu0
        %v3131 = vadd.f32 0.0, %v3130
        %3132 = vdwg.mxu0
        %v3133 = vadd.f32 %v3064, %v3125
        %v3134 = vadd.f32 %v3065, %v3127
        %v3135 = vadd.f32 %v3066, %v3129
        %v3136 = vadd.f32 %v3067, %v3131
        %s3137 = scalar_lea.vmem %s5, 448
        %v3138 = vld [vmem:[%s3137] sm:$0xff]
        %v3139 = vld [vmem:[%s3137 + $0x8] sm:$0x77]
        %3140 = vrot.lane.b32.xlu0 %v1417, 58
        %v3141 = vpop.permute.xlu0 %3140
        %v3144 = vunpack.c.l.b16 %v3138
        %v3145 = vunpack.c.h.b16 %v3138
        %v3146 = vunpack.c.l.b16 %v3139
        %v3147 = vunpack.c.h.b16 %v3139
        %v3148 = vpack.c.b16 %v3146, %v3144
        %v3149 = vpack.c.b16 %v3147, %v3145
        %v3151 = vsel %vm1230, %v3141, 0
        %v3154 = vsel %vm1234, %v3148, 0
        %v3157 = vsel %vm1234, %v3149, 0
        %3159 = vmatprep.subr.bf16.mxu0 %v3157
        %3160 = vmatpush1.bf16.msra.mxu0 %v3154
        %3161 = vmatprep.subr.bf16.mxu0 0
        %3162 = vmatpush1.bf16.msra.mxu0 0
        %3163 = vmatprep.subr.bf16.mxu0 0
        %3164 = vmatpush1.bf16.msra.mxu0 0
        %3165 = vmatprep.subr.bf16.mxu0 0
        %3166 = vmatpush1.bf16.msra.mxu0 0
        %3167 = vmatprep.subr.bf16.mxu0 0
        %3168 = vmatpush1.bf16.msra.mxu0 0
        %3169 = vmatprep.subr.bf16.mxu0 0
        %3170 = vmatpush1.bf16.msra.mxu0 0
        %3171 = vmatprep.subr.bf16.mxu0 0
        %3172 = vmatpush1.bf16.msra.mxu0 0
        %3173 = vmatprep.subr.bf16.mxu0 0
        %3174 = vmatpush1.bf16.msra.mxu0 0
        %3175 = vmatprep.subr.bf16.mxu0 0
        %3176 = vmatpush1.bf16.msra.mxu0 0
        %3177 = vmatprep.subr.bf16.mxu0 0
        %3178 = vmatpush1.bf16.msra.mxu0 0
        %3179 = vmatprep.subr.bf16.mxu0 0
        %3180 = vmatpush1.bf16.msra.mxu0 0
        %3181 = vmatprep.subr.bf16.mxu0 0
        %3182 = vmatpush1.bf16.msra.mxu0 0
        %3183 = vmatprep.subr.bf16.mxu0 0
        %3184 = vmatpush1.bf16.msra.mxu0 0
        %3185 = vmatprep.subr.bf16.mxu0 0
        %3186 = vmatpush1.bf16.msra.mxu0 0
        %3187 = vmatprep.subr.bf16.mxu0 0
        %3188 = vmatpush1.bf16.msra.mxu0 0
        %3189 = vmatprep.subr.bf16.mxu0 0
        %3190 = vmatpush1.bf16.msra.mxu0 0
        %3191 = vmatprep.mubr.bf16.mxu0 0
        %3192 = vmatmul.mubr.bf16.gmra.mrb[0].mxu0 %v3151
        %v3193 = vpop.f32.mrb[0].mxu0
        %v3194 = vadd.f32 0.0, %v3193
        %v3195 = vpop.f32.mrb[0].mxu0
        %v3196 = vadd.f32 0.0, %v3195
        %v3197 = vpop.f32.mrb[0].mxu0
        %v3198 = vadd.f32 0.0, %v3197
        %v3199 = vpop.f32.mrb[0].mxu0
        %v3200 = vadd.f32 0.0, %v3199
        %3201 = vdwg.mxu0
        %v3202 = vadd.f32 %v3133, %v3194
        %v3203 = vadd.f32 %v3134, %v3196
        %v3204 = vadd.f32 %v3135, %v3198
        %v3205 = vadd.f32 %v3136, %v3200
        %s3206 = scalar_lea.vmem %s5, 464
        %v3207 = vld [vmem:[%s3206] sm:$0xff]
        %v3208 = vld [vmem:[%s3206 + $0x8] sm:$0x77]
        %3209 = vrot.lane.b32.xlu0 %v1485, 58
        %v3210 = vpop.permute.xlu0 %3209
        %v3213 = vunpack.c.l.b16 %v3207
        %v3214 = vunpack.c.h.b16 %v3207
        %v3215 = vunpack.c.l.b16 %v3208
        %v3216 = vunpack.c.h.b16 %v3208
        %v3217 = vpack.c.b16 %v3215, %v3213
        %v3218 = vpack.c.b16 %v3216, %v3214
        %v3220 = vsel %vm1230, %v3210, 0
        %v3223 = vsel %vm1234, %v3217, 0
        %v3226 = vsel %vm1234, %v3218, 0
        %3228 = vmatprep.subr.bf16.mxu0 %v3226
        %3229 = vmatpush1.bf16.msra.mxu0 %v3223
        %3230 = vmatprep.subr.bf16.mxu0 0
        %3231 = vmatpush1.bf16.msra.mxu0 0
        %3232 = vmatprep.subr.bf16.mxu0 0
        %3233 = vmatpush1.bf16.msra.mxu0 0
        %3234 = vmatprep.subr.bf16.mxu0 0
        %3235 = vmatpush1.bf16.msra.mxu0 0
        %3236 = vmatprep.subr.bf16.mxu0 0
        %3237 = vmatpush1.bf16.msra.mxu0 0
        %3238 = vmatprep.subr.bf16.mxu0 0
        %3239 = vmatpush1.bf16.msra.mxu0 0
        %3240 = vmatprep.subr.bf16.mxu0 0
        %3241 = vmatpush1.bf16.msra.mxu0 0
        %3242 = vmatprep.subr.bf16.mxu0 0
        %3243 = vmatpush1.bf16.msra.mxu0 0
        %3244 = vmatprep.subr.bf16.mxu0 0
        %3245 = vmatpush1.bf16.msra.mxu0 0
        %3246 = vmatprep.subr.bf16.mxu0 0
        %3247 = vmatpush1.bf16.msra.mxu0 0
        %3248 = vmatprep.subr.bf16.mxu0 0
        %3249 = vmatpush1.bf16.msra.mxu0 0
        %3250 = vmatprep.subr.bf16.mxu0 0
        %3251 = vmatpush1.bf16.msra.mxu0 0
        %3252 = vmatprep.subr.bf16.mxu0 0
        %3253 = vmatpush1.bf16.msra.mxu0 0
        %3254 = vmatprep.subr.bf16.mxu0 0
        %3255 = vmatpush1.bf16.msra.mxu0 0
        %3256 = vmatprep.subr.bf16.mxu0 0
        %3257 = vmatpush1.bf16.msra.mxu0 0
        %3258 = vmatprep.subr.bf16.mxu0 0
        %3259 = vmatpush1.bf16.msra.mxu0 0
        %3260 = vmatprep.mubr.bf16.mxu0 0
        %3261 = vmatmul.mubr.bf16.gmra.mrb[0].mxu0 %v3220
        %v3262 = vpop.f32.mrb[0].mxu0
        %v3263 = vadd.f32 0.0, %v3262
        %v3264 = vpop.f32.mrb[0].mxu0
        %v3265 = vadd.f32 0.0, %v3264
        %v3266 = vpop.f32.mrb[0].mxu0
        %v3267 = vadd.f32 0.0, %v3266
        %v3268 = vpop.f32.mrb[0].mxu0
        %v3269 = vadd.f32 0.0, %v3268
        %3270 = vdwg.mxu0
        %v3271 = vadd.f32 %v3202, %v3263
        %v3272 = vadd.f32 %v3203, %v3265
        %v3273 = vadd.f32 %v3204, %v3267
        %v3274 = vadd.f32 %v3205, %v3269
        %v3275 = vld [vmem:[%s6] sm:$0x3]
        %v3277 = vlaneseq
        %v3278 = vshrl.u32 %v3277, 7
        %v3279 = vsub.s32 0, %v3278
        %v3280 = vrot.slane %v3275, %v3279
        %v3281 = vlaneseq
        %v3282 = vshrl.u32 %v3281, 7
        %v3283 = vsub.s32 1, %v3282
        %v3284 = vrot.slane %v3275, %v3283
        %v3287 = vadd.f32 %v3271, %v3280
        %v3288 = vadd.f32 %v3272, %v3284
        %v3289 = vadd.f32 %v3273, %v3280
        %v3290 = vadd.f32 %v3274, %v3284
        %v3291 = vtanh.pop %v3287
        %v3292 = vtanh.pop %v3288
        %v3293 = vtanh.pop %v3289
        %v3294 = vtanh.pop %v3290
        %v3295 = vld [vmem:[%s7] sm:$0x7]
        %v3296 = vpack.c.bf16 %v3293, %v3291
        %v3297 = vpack.c.bf16 %v3294, %v3292
        %vm3298 = vcmask 80896
        %v3300 = vsel %vm3298, %v3295, 0
        %vm3302 = vcmask 1044480
        %v3304 = vsel %vm3302, %v3296, 0
        %v3307 = vsel %vm3302, %v3297, 0
        %3309 = vmatprep.subr.bf16.mxu0 %v3307
        %3310 = vmatpush1.bf16.msra.mxu0 %v3304
        %3311 = vmatprep.subr.bf16.mxu0 0
        %3312 = vmatpush1.bf16.msra.mxu0 0
        %3313 = vmatprep.subr.bf16.mxu0 0
        %3314 = vmatpush1.bf16.msra.mxu0 0
        %3315 = vmatprep.subr.bf16.mxu0 0
        %3316 = vmatpush1.bf16.msra.mxu0 0
        %3317 = vmatprep.subr.bf16.mxu0 0
        %3318 = vmatpush1.bf16.msra.mxu0 0
        %3319 = vmatprep.subr.bf16.mxu0 0
        %3320 = vmatpush1.bf16.msra.mxu0 0
        %3321 = vmatprep.subr.bf16.mxu0 0
        %3322 = vmatpush1.bf16.msra.mxu0 0
        %3323 = vmatprep.subr.bf16.mxu0 0
        %3324 = vmatpush1.bf16.msra.mxu0 0
        %3325 = vmatprep.subr.bf16.mxu0 0
        %3326 = vmatpush1.bf16.msra.mxu0 0
        %3327 = vmatprep.subr.bf16.mxu0 0
        %3328 = vmatpush1.bf16.msra.mxu0 0
        %3329 = vmatprep.subr.bf16.mxu0 0
        %3330 = vmatpush1.bf16.msra.mxu0 0
        %3331 = vmatprep.subr.bf16.mxu0 0
        %3332 = vmatpush1.bf16.msra.mxu0 0
        %3333 = vmatprep.subr.bf16.mxu0 0
        %3334 = vmatpush1.bf16.msra.mxu0 0
        %3335 = vmatprep.subr.bf16.mxu0 0
        %3336 = vmatpush1.bf16.msra.mxu0 0
        %3337 = vmatprep.subr.bf16.mxu0 0
        %3338 = vmatpush1.bf16.msra.mxu0 0
        %3339 = vmatprep.subr.bf16.mxu0 0
        %3340 = vmatpush1.bf16.msra.mxu0 0
        %3341 = vmatprep.mubr.bf16.mxu0 0
        %3342 = vmatmul.mubr.bf16.gmra.mrb[0].mxu0 %v3300
        %v3343 = vpop.f32.mrb[0].mxu0
        %v3344 = vadd.f32 0.0, %v3343
        %v3345 = vpop.f32.mrb[0].mxu0
        %v3346 = vadd.f32 0.0, %v3345
        %v3347 = vpop.f32.mrb[0].mxu0
        %v3348 = vpop.f32.mrb[0].mxu0
        %3349 = vdwg.mxu0
        %v3350 = vpack.c.bf16 %v3344, %v3344
        %v3351 = vpack.c.bf16 %v3346, %v3346
        %v3352 = vld [vmem:[%s8] sm:$0xf]
        %v3353 = vld [vmem:[%s8 + $0x4] sm:$0xf]
        %v3354 = vld [vmem:[%s8 + $0x8] sm:$0xf]
        %v3355 = vld [vmem:[%s8 + $0xc] sm:$0xf]
        %v3356 = vld [vmem:[%s8 + $0x10] sm:$0xf]
        %v3357 = vld [vmem:[%s8 + $0x14] sm:$0xf]
        %v3358 = vld [vmem:[%s8 + $0x18] sm:$0xf]
        %v3359 = vld [vmem:[%s8 + $0x1c] sm:$0xf]
        %v3360 = vld [vmem:[%s8 + $0x20] sm:$0xf]
        %v3361 = vld [vmem:[%s8 + $0x24] sm:$0xf]
        %v3362 = vld [vmem:[%s8 + $0x28] sm:$0xf]
        %v3363 = vld [vmem:[%s8 + $0x2c] sm:$0xf]
        %v3364 = vld [vmem:[%s8 + $0x30] sm:$0xf]
        %v3365 = vld [vmem:[%s8 + $0x34] sm:$0xf]
        %v3366 = vld [vmem:[%s8 + $0x38] sm:$0xf]
        %v3367 = vld [vmem:[%s8 + $0x3c] sm:$0xf]
        %v3368 = vld [vmem:[%s8 + $0x40] sm:$0xf]
        %v3369 = vld [vmem:[%s8 + $0x44] sm:$0xf]
        %v3370 = vld [vmem:[%s8 + $0x48] sm:$0xf]
        %v3371 = vld [vmem:[%s8 + $0x4c] sm:$0xf]
        %v3392 = vunpack.c.l.b16 %v3352
        %v3393 = vunpack.c.l.b16 %v3353
        %v3394 = vunpack.c.l.b16 %v3354
        %v3395 = vunpack.c.l.b16 %v3355
        %v3396 = vunpack.c.l.b16 %v3356
        %v3397 = vunpack.c.l.b16 %v3357
        %v3398 = vunpack.c.l.b16 %v3358
        %v3399 = vunpack.c.l.b16 %v3359
        %v3400 = vunpack.c.l.b16 %v3360
        %v3401 = vunpack.c.l.b16 %v3361
        %v3402 = vunpack.c.l.b16 %v3362
        %v3403 = vunpack.c.l.b16 %v3363
        %v3404 = vunpack.c.l.b16 %v3364
        %v3405 = vunpack.c.l.b16 %v3365
        %v3406 = vunpack.c.l.b16 %v3366
        %v3407 = vunpack.c.l.b16 %v3367
        %v3408 = vunpack.c.l.b16 %v3368
        %v3409 = vunpack.c.l.b16 %v3369
        %v3410 = vunpack.c.l.b16 %v3370
        %v3411 = vunpack.c.l.b16 %v3371
        %v3412 = vpack.c.b16 %v3393, %v3392
        %v3413 = vpack.c.b16 %v3395, %v3394
        %v3414 = vpack.c.b16 %v3397, %v3396
        %v3415 = vpack.c.b16 %v3399, %v3398
        %v3416 = vpack.c.b16 %v3401, %v3400
        %v3417 = vpack.c.b16 %v3403, %v3402
        %v3418 = vpack.c.b16 %v3405, %v3404
        %v3419 = vpack.c.b16 %v3407, %v3406
        %v3420 = vpack.c.b16 %v3409, %v3408
        %v3421 = vpack.c.b16 %v3411, %v3410
        %v3433 = vsel %vm552, %v3351, 0
        %3435 = vmatprep.subr.bf16.mxu0 0
        %3436 = vmatpush1.bf16.msra.mxu0 %v3412
        %3437 = vmatprep.subr.bf16.mxu0 0
        %3438 = vmatpush1.bf16.msra.mxu0 %v3413
        %3439 = vmatprep.subr.bf16.mxu0 0
        %3440 = vmatpush1.bf16.msra.mxu0 %v3414
        %3441 = vmatprep.subr.bf16.mxu0 0
        %3442 = vmatpush1.bf16.msra.mxu0 %v3415
        %3443 = vmatprep.subr.bf16.mxu0 0
        %3444 = vmatpush1.bf16.msra.mxu0 %v3416
        %3445 = vmatprep.subr.bf16.mxu0 0
        %3446 = vmatpush1.bf16.msra.mxu0 %v3417
        %3447 = vmatprep.subr.bf16.mxu0 0
        %3448 = vmatpush1.bf16.msra.mxu0 %v3418
        %3449 = vmatprep.subr.bf16.mxu0 0
        %3450 = vmatpush1.bf16.msra.mxu0 %v3419
        %3451 = vmatprep.subr.bf16.mxu0 0
        %3452 = vmatpush1.bf16.msra.mxu0 %v3420
        %3453 = vmatprep.subr.bf16.mxu0 0
        %3454 = vmatpush1.bf16.msra.mxu0 %v3421
        %3455 = vmatprep.subr.bf16.mxu0 0
        %3456 = vmatpush1.bf16.msra.mxu0 0
        %3457 = vmatprep.subr.bf16.mxu0 0
        %3458 = vmatpush1.bf16.msra.mxu0 0
        %3459 = vmatprep.subr.bf16.mxu0 0
        %3460 = vmatpush1.bf16.msra.mxu0 0
        %3461 = vmatprep.subr.bf16.mxu0 0
        %3462 = vmatpush1.bf16.msra.mxu0 0
        %3463 = vmatprep.subr.bf16.mxu0 0
        %3464 = vmatpush1.bf16.msra.mxu0 0
        %3465 = vmatprep.subr.bf16.mxu0 0
        %3466 = vmatpush1.bf16.msra.mxu0 0
        %3467 = vmatprep.mubr.bf16.mxu0 %v3433
        %3468 = vmatmul.mubr.bf16.gmra.mrb[0].mxu0 %v3350
        %v3469 = vpop.f32.mrb[0].mxu0
        %v3470 = vadd.f32 0.0, %v3469
        %v3471 = vpop.f32.mrb[0].mxu0
        %v3472 = vpop.f32.mrb[0].mxu0
        %v3473 = vpop.f32.mrb[0].mxu0
        %3474 = vdwg.mxu0
        %v3475 = vpack.c.bf16 %v3470, %v3470
        %v3476 = vld [vmem:[%s9] sm:$0xf]
        %v3477 = vld [vmem:[%s9 + $0x4] sm:$0xf]
        %v3478 = vld [vmem:[%s9 + $0x8] sm:$0xf]
        %v3479 = vld [vmem:[%s9 + $0xc] sm:$0xf]
        %v3480 = vld [vmem:[%s9 + $0x10] sm:$0xf]
        %v3481 = vld [vmem:[%s9 + $0x14] sm:$0xf]
        %v3482 = vld [vmem:[%s9 + $0x18] sm:$0xf]
        %v3483 = vld [vmem:[%s9 + $0x1c] sm:$0xf]
        %v3484 = vld [vmem:[%s9 + $0x20] sm:$0xf]
        %v3485 = vld [vmem:[%s9 + $0x24] sm:$0xf]
        %s3486 = scalar_lea.vmem %s9, 40
        %v3487 = vld [vmem:[%s3486] sm:$0xf]
        %v3488 = vld [vmem:[%s3486 + $0x4] sm:$0xf]
        %v3489 = vld [vmem:[%s3486 + $0x8] sm:$0xf]
        %v3490 = vld [vmem:[%s3486 + $0xc] sm:$0xf]
        %v3491 = vld [vmem:[%s3486 + $0x10] sm:$0xf]
        %v3492 = vld [vmem:[%s3486 + $0x14] sm:$0xf]
        %v3493 = vld [vmem:[%s3486 + $0x18] sm:$0xf]
        %v3494 = vld [vmem:[%s3486 + $0x1c] sm:$0xf]
        %v3495 = vld [vmem:[%s3486 + $0x20] sm:$0xf]
        %v3496 = vld [vmem:[%s3486 + $0x24] sm:$0xf]
        %v3498 = vshrl.u32 %v3475, 16
        %v3510 = vunpack.c.l.b16 %v3487
        %v3511 = vunpack.c.l.b16 %v3488
        %v3512 = vunpack.c.l.b16 %v3489
        %v3513 = vunpack.c.l.b16 %v3490
        %v3514 = vunpack.c.l.b16 %v3491
        %v3515 = vunpack.c.l.b16 %v3492
        %v3516 = vunpack.c.l.b16 %v3493
        %v3517 = vunpack.c.l.b16 %v3494
        %v3518 = vunpack.c.l.b16 %v3495
        %v3519 = vunpack.c.l.b16 %v3496
        %v3520 = vpack.c.b16 %v3511, %v3510
        %v3521 = vpack.c.b16 %v3513, %v3512
        %v3522 = vpack.c.b16 %v3515, %v3514
        %v3523 = vpack.c.b16 %v3517, %v3516
        %v3524 = vpack.c.b16 %v3519, %v3518
        %vm3530 = vcmask 654336
        %v3532 = vsel %vm3530, %v3498, 0
        %3534 = vmatprep.subr.bf16.mxu0 0
        %3535 = vmatpush1.bf16.msra.mxu0 %v3520
        %3536 = vmatprep.subr.bf16.mxu0 0
        %3537 = vmatpush1.bf16.msra.mxu0 %v3521
        %3538 = vmatprep.subr.bf16.mxu0 0
        %3539 = vmatpush1.bf16.msra.mxu0 %v3522
        %3540 = vmatprep.subr.bf16.mxu0 0
        %3541 = vmatpush1.bf16.msra.mxu0 %v3523
        %3542 = vmatprep.subr.bf16.mxu0 0
        %3543 = vmatpush1.bf16.msra.mxu0 %v3524
        %3544 = vmatprep.subr.bf16.mxu0 0
        %3545 = vmatpush1.bf16.msra.mxu0 0
        %3546 = vmatprep.subr.bf16.mxu0 0
        %3547 = vmatpush1.bf16.msra.mxu0 0
        %3548 = vmatprep.subr.bf16.mxu0 0
        %3549 = vmatpush1.bf16.msra.mxu0 0
        %3550 = vmatprep.subr.bf16.mxu0 0
        %3551 = vmatpush1.bf16.msra.mxu0 0
        %3552 = vmatprep.subr.bf16.mxu0 0
        %3553 = vmatpush1.bf16.msra.mxu0 0
        %3554 = vmatprep.subr.bf16.mxu0 0
        %3555 = vmatpush1.bf16.msra.mxu0 0
        %3556 = vmatprep.subr.bf16.mxu0 0
        %3557 = vmatpush1.bf16.msra.mxu0 0
        %3558 = vmatprep.subr.bf16.mxu0 0
        %3559 = vmatpush1.bf16.msra.mxu0 0
        %3560 = vmatprep.subr.bf16.mxu0 0
        %3561 = vmatpush1.bf16.msra.mxu0 0
        %3562 = vmatprep.subr.bf16.mxu0 0
        %3563 = vmatpush1.bf16.msra.mxu0 0
        %3564 = vmatprep.subr.bf16.mxu0 0
        %3565 = vmatpush1.bf16.msra.mxu0 0
        %3566 = vmatprep.mubr.bf16.mxu0 0
        %3567 = vmatmul.mubr.bf16.gmra.mrb[0].mxu0 %v3532
        %v3568 = vpop.f32.mrb[0].mxu0
        %v3569 = vadd.f32 0.0, %v3568
        %v3570 = vpop.f32.mrb[0].mxu0
        %v3571 = vpop.f32.mrb[0].mxu0
        %v3572 = vpop.f32.mrb[0].mxu0
        %3573 = vdwg.mxu0
        %v3584 = vunpack.c.l.b16 %v3476
        %v3585 = vunpack.c.l.b16 %v3477
        %v3586 = vunpack.c.l.b16 %v3478
        %v3587 = vunpack.c.l.b16 %v3479
        %v3588 = vunpack.c.l.b16 %v3480
        %v3589 = vunpack.c.l.b16 %v3481
        %v3590 = vunpack.c.l.b16 %v3482
        %v3591 = vunpack.c.l.b16 %v3483
        %v3592 = vunpack.c.l.b16 %v3484
        %v3593 = vunpack.c.l.b16 %v3485
        %v3594 = vpack.c.b16 %v3585, %v3584
        %v3595 = vpack.c.b16 %v3587, %v3586
        %v3596 = vpack.c.b16 %v3589, %v3588
        %v3597 = vpack.c.b16 %v3591, %v3590
        %v3598 = vpack.c.b16 %v3593, %v3592
        %v3604 = vsel %vm3530, %v3475, 0
        %3606 = vmatprep.subr.bf16.mxu0 0
        %3607 = vmatpush1.bf16.msra.mxu0 %v3594
        %3608 = vmatprep.subr.bf16.mxu0 0
        %3609 = vmatpush1.bf16.msra.mxu0 %v3595
        %3610 = vmatprep.subr.bf16.mxu0 0
        %3611 = vmatpush1.bf16.msra.mxu0 %v3596
        %3612 = vmatprep.subr.bf16.mxu0 0
        %3613 = vmatpush1.bf16.msra.mxu0 %v3597
        %3614 = vmatprep.subr.bf16.mxu0 0
        %3615 = vmatpush1.bf16.msra.mxu0 %v3598
        %3616 = vmatprep.subr.bf16.mxu0 0
        %3617 = vmatpush1.bf16.msra.mxu0 0
        %3618 = vmatprep.subr.bf16.mxu0 0
        %3619 = vmatpush1.bf16.msra.mxu0 0
        %3620 = vmatprep.subr.bf16.mxu0 0
        %3621 = vmatpush1.bf16.msra.mxu0 0
        %3622 = vmatprep.subr.bf16.mxu0 0
        %3623 = vmatpush1.bf16.msra.mxu0 0
        %3624 = vmatprep.subr.bf16.mxu0 0
        %3625 = vmatpush1.bf16.msra.mxu0 0
        %3626 = vmatprep.subr.bf16.mxu0 0
        %3627 = vmatpush1.bf16.msra.mxu0 0
        %3628 = vmatprep.subr.bf16.mxu0 0
        %3629 = vmatpush1.bf16.msra.mxu0 0
        %3630 = vmatprep.subr.bf16.mxu0 0
        %3631 = vmatpush1.bf16.msra.mxu0 0
        %3632 = vmatprep.subr.bf16.mxu0 0
        %3633 = vmatpush1.bf16.msra.mxu0 0
        %3634 = vmatprep.subr.bf16.mxu0 0
        %3635 = vmatpush1.bf16.msra.mxu0 0
        %3636 = vmatprep.subr.bf16.mxu0 0
        %3637 = vmatpush1.bf16.msra.mxu0 0
        %3638 = vmatprep.mubr.bf16.mxu0 0
        %3639 = vmatmul.mubr.bf16.gmra.mrb[0].mxu0 %v3604
        %v3640 = vpop.f32.mrb[0].mxu0
        %v3641 = vadd.f32 %v3569, %v3640
        %v3642 = vpop.f32.mrb[0].mxu0
        %v3643 = vpop.f32.mrb[0].mxu0
        %v3644 = vpop.f32.mrb[0].mxu0
        %3645 = vdwg.mxu0
        %s3646 = scalar_lea.vmem %s9, 80
        %v3647 = vld [vmem:[%s3646] sm:$0xf]
        %v3648 = vld [vmem:[%s3646 + $0x4] sm:$0xf]
        %v3649 = vld [vmem:[%s3646 + $0x8] sm:$0xf]
        %v3650 = vld [vmem:[%s3646 + $0xc] sm:$0xf]
        %v3651 = vld [vmem:[%s3646 + $0x10] sm:$0xf]
        %v3652 = vld [vmem:[%s3646 + $0x14] sm:$0xf]
        %v3653 = vld [vmem:[%s3646 + $0x18] sm:$0xf]
        %v3654 = vld [vmem:[%s3646 + $0x1c] sm:$0xf]
        %v3655 = vld [vmem:[%s3646 + $0x20] sm:$0xf]
        %v3656 = vld [vmem:[%s3646 + $0x24] sm:$0xf]
        %v3658 = vrot.slane %v3475, 1
        %v3669 = vunpack.c.l.b16 %v3647
        %v3670 = vunpack.c.l.b16 %v3648
        %v3671 = vunpack.c.l.b16 %v3649
        %v3672 = vunpack.c.l.b16 %v3650
        %v3673 = vunpack.c.l.b16 %v3651
        %v3674 = vunpack.c.l.b16 %v3652
        %v3675 = vunpack.c.l.b16 %v3653
        %v3676 = vunpack.c.l.b16 %v3654
        %v3677 = vunpack.c.l.b16 %v3655
        %v3678 = vunpack.c.l.b16 %v3656
        %v3679 = vpack.c.b16 %v3670, %v3669
        %v3680 = vpack.c.b16 %v3672, %v3671
        %v3681 = vpack.c.b16 %v3674, %v3673
        %v3682 = vpack.c.b16 %v3676, %v3675
        %v3683 = vpack.c.b16 %v3678, %v3677
        %v3690 = vsel %vm3530, %v3658, 0
        %3692 = vmatprep.subr.bf16.mxu0 0
        %3693 = vmatpush1.bf16.msra.mxu0 %v3679
        %3694 = vmatprep.subr.bf16.mxu0 0
        %3695 = vmatpush1.bf16.msra.mxu0 %v3680
        %3696 = vmatprep.subr.bf16.mxu0 0
        %3697 = vmatpush1.bf16.msra.mxu0 %v3681
        %3698 = vmatprep.subr.bf16.mxu0 0
        %3699 = vmatpush1.bf16.msra.mxu0 %v3682
        %3700 = vmatprep.subr.bf16.mxu0 0
        %3701 = vmatpush1.bf16.msra.mxu0 %v3683
        %3702 = vmatprep.subr.bf16.mxu0 0
        %3703 = vmatpush1.bf16.msra.mxu0 0
        %3704 = vmatprep.subr.bf16.mxu0 0
        %3705 = vmatpush1.bf16.msra.mxu0 0
        %3706 = vmatprep.subr.bf16.mxu0 0
        %3707 = vmatpush1.bf16.msra.mxu0 0
        %3708 = vmatprep.subr.bf16.mxu0 0
        %3709 = vmatpush1.bf16.msra.mxu0 0
        %3710 = vmatprep.subr.bf16.mxu0 0
        %3711 = vmatpush1.bf16.msra.mxu0 0
        %3712 = vmatprep.subr.bf16.mxu0 0
        %3713 = vmatpush1.bf16.msra.mxu0 0
        %3714 = vmatprep.subr.bf16.mxu0 0
        %3715 = vmatpush1.bf16.msra.mxu0 0
        %3716 = vmatprep.subr.bf16.mxu0 0
        %3717 = vmatpush1.bf16.msra.mxu0 0
        %3718 = vmatprep.subr.bf16.mxu0 0
        %3719 = vmatpush1.bf16.msra.mxu0 0
        %3720 = vmatprep.subr.bf16.mxu0 0
        %3721 = vmatpush1.bf16.msra.mxu0 0
        %3722 = vmatprep.subr.bf16.mxu0 0
        %3723 = vmatpush1.bf16.msra.mxu0 0
        %3724 = vmatprep.mubr.bf16.mxu0 0
        %3725 = vmatmul.mubr.bf16.gmra.mrb[0].mxu0 %v3690
        %v3726 = vpop.f32.mrb[0].mxu0
        %v3727 = vadd.f32 0.0, %v3726
        %v3728 = vpop.f32.mrb[0].mxu0
        %v3729 = vpop.f32.mrb[0].mxu0
        %v3730 = vpop.f32.mrb[0].mxu0
        %3731 = vdwg.mxu0
        %v3732 = vadd.f32 %v3641, %v3727
        %s3733 = scalar_lea.vmem %s9, 120
        %v3734 = vld [vmem:[%s3733] sm:$0xf]
        %v3735 = vld [vmem:[%s3733 + $0x4] sm:$0xf]
        %v3736 = vld [vmem:[%s3733 + $0x8] sm:$0xf]
        %v3737 = vld [vmem:[%s3733 + $0xc] sm:$0xf]
        %v3738 = vld [vmem:[%s3733 + $0x10] sm:$0xf]
        %v3739 = vld [vmem:[%s3733 + $0x14] sm:$0xf]
        %v3740 = vld [vmem:[%s3733 + $0x18] sm:$0xf]
        %v3741 = vld [vmem:[%s3733 + $0x1c] sm:$0xf]
        %v3742 = vld [vmem:[%s3733 + $0x20] sm:$0xf]
        %v3743 = vld [vmem:[%s3733 + $0x24] sm:$0xf]
        %v3744 = vrot.slane %v3498, 1
        %v3755 = vunpack.c.l.b16 %v3734
        %v3756 = vunpack.c.l.b16 %v3735
        %v3757 = vunpack.c.l.b16 %v3736
        %v3758 = vunpack.c.l.b16 %v3737
        %v3759 = vunpack.c.l.b16 %v3738
        %v3760 = vunpack.c.l.b16 %v3739
        %v3761 = vunpack.c.l.b16 %v3740
        %v3762 = vunpack.c.l.b16 %v3741
        %v3763 = vunpack.c.l.b16 %v3742
        %v3764 = vunpack.c.l.b16 %v3743
        %v3765 = vpack.c.b16 %v3756, %v3755
        %v3766 = vpack.c.b16 %v3758, %v3757
        %v3767 = vpack.c.b16 %v3760, %v3759
        %v3768 = vpack.c.b16 %v3762, %v3761
        %v3769 = vpack.c.b16 %v3764, %v3763
        %v3776 = vsel %vm3530, %v3744, 0
        %3778 = vmatprep.subr.bf16.mxu0 0
        %3779 = vmatpush1.bf16.msra.mxu0 %v3765
        %3780 = vmatprep.subr.bf16.mxu0 0
        %3781 = vmatpush1.bf16.msra.mxu0 %v3766
        %3782 = vmatprep.subr.bf16.mxu0 0
        %3783 = vmatpush1.bf16.msra.mxu0 %v3767
        %3784 = vmatprep.subr.bf16.mxu0 0
        %3785 = vmatpush1.bf16.msra.mxu0 %v3768
        %3786 = vmatprep.subr.bf16.mxu0 0
        %3787 = vmatpush1.bf16.msra.mxu0 %v3769
        %3788 = vmatprep.subr.bf16.mxu0 0
        %3789 = vmatpush1.bf16.msra.mxu0 0
        %3790 = vmatprep.subr.bf16.mxu0 0
        %3791 = vmatpush1.bf16.msra.mxu0 0
        %3792 = vmatprep.subr.bf16.mxu0 0
        %3793 = vmatpush1.bf16.msra.mxu0 0
        %3794 = vmatprep.subr.bf16.mxu0 0
        %3795 = vmatpush1.bf16.msra.mxu0 0
        %3796 = vmatprep.subr.bf16.mxu0 0
        %3797 = vmatpush1.bf16.msra.mxu0 0
        %3798 = vmatprep.subr.bf16.mxu0 0
        %3799 = vmatpush1.bf16.msra.mxu0 0
        %3800 = vmatprep.subr.bf16.mxu0 0
        %3801 = vmatpush1.bf16.msra.mxu0 0
        %3802 = vmatprep.subr.bf16.mxu0 0
        %3803 = vmatpush1.bf16.msra.mxu0 0
        %3804 = vmatprep.subr.bf16.mxu0 0
        %3805 = vmatpush1.bf16.msra.mxu0 0
        %3806 = vmatprep.subr.bf16.mxu0 0
        %3807 = vmatpush1.bf16.msra.mxu0 0
        %3808 = vmatprep.subr.bf16.mxu0 0
        %3809 = vmatpush1.bf16.msra.mxu0 0
        %3810 = vmatprep.mubr.bf16.mxu0 0
        %3811 = vmatmul.mubr.bf16.gmra.mrb[0].mxu0 %v3776
        %v3812 = vpop.f32.mrb[0].mxu0
        %v3813 = vadd.f32 0.0, %v3812
        %v3814 = vpop.f32.mrb[0].mxu0
        %v3815 = vpop.f32.mrb[0].mxu0
        %v3816 = vpop.f32.mrb[0].mxu0
        %3817 = vdwg.mxu0
        %v3818 = vadd.f32 %v3732, %v3813
        %s3819 = scalar_lea.vmem %s9, 160
        %v3820 = vld [vmem:[%s3819] sm:$0xf]
        %v3821 = vld [vmem:[%s3819 + $0x4] sm:$0xf]
        %v3822 = vld [vmem:[%s3819 + $0x8] sm:$0xf]
        %v3823 = vld [vmem:[%s3819 + $0xc] sm:$0xf]
        %v3824 = vld [vmem:[%s3819 + $0x10] sm:$0xf]
        %v3825 = vld [vmem:[%s3819 + $0x14] sm:$0xf]
        %v3826 = vld [vmem:[%s3819 + $0x18] sm:$0xf]
        %v3827 = vld [vmem:[%s3819 + $0x1c] sm:$0xf]
        %v3828 = vld [vmem:[%s3819 + $0x20] sm:$0xf]
        %v3829 = vld [vmem:[%s3819 + $0x24] sm:$0xf]
        %v3830 = vrot.slane %v3475, 2
        %v3841 = vunpack.c.l.b16 %v3820
        %v3842 = vunpack.c.l.b16 %v3821
        %v3843 = vunpack.c.l.b16 %v3822
        %v3844 = vunpack.c.l.b16 %v3823
        %v3845 = vunpack.c.l.b16 %v3824
        %v3846 = vunpack.c.l.b16 %v3825
        %v3847 = vunpack.c.l.b16 %v3826
        %v3848 = vunpack.c.l.b16 %v3827
        %v3849 = vunpack.c.l.b16 %v3828
        %v3850 = vunpack.c.l.b16 %v3829
        %v3851 = vpack.c.b16 %v3842, %v3841
        %v3852 = vpack.c.b16 %v3844, %v3843
        %v3853 = vpack.c.b16 %v3846, %v3845
        %v3854 = vpack.c.b16 %v3848, %v3847
        %v3855 = vpack.c.b16 %v3850, %v3849
        %v3862 = vsel %vm3530, %v3830, 0
        %3864 = vmatprep.subr.bf16.mxu0 0
        %3865 = vmatpush1.bf16.msra.mxu0 %v3851
        %3866 = vmatprep.subr.bf16.mxu0 0
        %3867 = vmatpush1.bf16.msra.mxu0 %v3852
        %3868 = vmatprep.subr.bf16.mxu0 0
        %3869 = vmatpush1.bf16.msra.mxu0 %v3853
        %3870 = vmatprep.subr.bf16.mxu0 0
        %3871 = vmatpush1.bf16.msra.mxu0 %v3854
        %3872 = vmatprep.subr.bf16.mxu0 0
        %3873 = vmatpush1.bf16.msra.mxu0 %v3855
        %3874 = vmatprep.subr.bf16.mxu0 0
        %3875 = vmatpush1.bf16.msra.mxu0 0
        %3876 = vmatprep.subr.bf16.mxu0 0
        %3877 = vmatpush1.bf16.msra.mxu0 0
        %3878 = vmatprep.subr.bf16.mxu0 0
        %3879 = vmatpush1.bf16.msra.mxu0 0
        %3880 = vmatprep.subr.bf16.mxu0 0
        %3881 = vmatpush1.bf16.msra.mxu0 0
        %3882 = vmatprep.subr.bf16.mxu0 0
        %3883 = vmatpush1.bf16.msra.mxu0 0
        %3884 = vmatprep.subr.bf16.mxu0 0
        %3885 = vmatpush1.bf16.msra.mxu0 0
        %3886 = vmatprep.subr.bf16.mxu0 0
        %3887 = vmatpush1.bf16.msra.mxu0 0
        %3888 = vmatprep.subr.bf16.mxu0 0
        %3889 = vmatpush1.bf16.msra.mxu0 0
        %3890 = vmatprep.subr.bf16.mxu0 0
        %3891 = vmatpush1.bf16.msra.mxu0 0
        %3892 = vmatprep.subr.bf16.mxu0 0
        %3893 = vmatpush1.bf16.msra.mxu0 0
        %3894 = vmatprep.subr.bf16.mxu0 0
        %3895 = vmatpush1.bf16.msra.mxu0 0
        %3896 = vmatprep.mubr.bf16.mxu0 0
        %3897 = vmatmul.mubr.bf16.gmra.mrb[0].mxu0 %v3862
        %v3898 = vpop.f32.mrb[0].mxu0
        %v3899 = vadd.f32 0.0, %v3898
        %v3900 = vpop.f32.mrb[0].mxu0
        %v3901 = vpop.f32.mrb[0].mxu0
        %v3902 = vpop.f32.mrb[0].mxu0
        %3903 = vdwg.mxu0
        %v3904 = vadd.f32 %v3818, %v3899
        %v3905 = vld [vmem:[%s10] sm:$0x1]
        %v3906 = vadd.f32 %v3904, %v3905
        %v3907 = vtanh.pop %v3906
        %v3908 = vpack.c.bf16 %v3907, %v3907
        %v3909 = vld [vmem:[%s11] sm:$0xf]
        %v3910 = vld [vmem:[%s11 + $0x4] sm:$0xf]
        %v3911 = vld [vmem:[%s11 + $0x8] sm:$0xf]
        %v3912 = vld [vmem:[%s11 + $0xc] sm:$0xf]
        %v3913 = vld [vmem:[%s11 + $0x10] sm:$0xf]
        %v3914 = vld [vmem:[%s11 + $0x14] sm:$0xf]
        %v3915 = vld [vmem:[%s11 + $0x18] sm:$0xf]
        %v3916 = vld [vmem:[%s11 + $0x1c] sm:$0xf]
        %v3917 = vld [vmem:[%s11 + $0x20] sm:$0xf]
        %v3918 = vld [vmem:[%s11 + $0x24] sm:$0xf]
        %v3919 = vld [vmem:[%s11 + $0x28] sm:$0xf]
        %v3920 = vld [vmem:[%s11 + $0x2c] sm:$0xf]
        %v3921 = vld [vmem:[%s11 + $0x30] sm:$0xf]
        %v3922 = vld [vmem:[%s11 + $0x34] sm:$0xf]
        %v3923 = vld [vmem:[%s11 + $0x38] sm:$0xf]
        %v3924 = vld [vmem:[%s12] sm:$0x1]
        %v3940 = vunpack.c.l.b16 %v3909
        %v3941 = vunpack.c.l.b16 %v3910
        %v3942 = vunpack.c.l.b16 %v3911
        %v3943 = vunpack.c.l.b16 %v3912
        %v3944 = vunpack.c.l.b16 %v3913
        %v3945 = vunpack.c.l.b16 %v3914
        %v3946 = vunpack.c.l.b16 %v3915
        %v3947 = vunpack.c.l.b16 %v3916
        %v3948 = vunpack.c.l.b16 %v3917
        %v3949 = vunpack.c.l.b16 %v3918
        %v3950 = vunpack.c.l.b16 %v3919
        %v3951 = vunpack.c.l.b16 %v3920
        %v3952 = vunpack.c.l.b16 %v3921
        %v3953 = vunpack.c.l.b16 %v3922
        %v3954 = vunpack.c.l.b16 %v3923
        %v3955 = vpack.c.b16 %v3941, %v3940
        %v3956 = vpack.c.b16 %v3943, %v3942
        %v3957 = vpack.c.b16 %v3945, %v3944
        %v3958 = vpack.c.b16 %v3947, %v3946
        %v3959 = vpack.c.b16 %v3949, %v3948
        %v3960 = vpack.c.b16 %v3951, %v3950
        %v3961 = vpack.c.b16 %v3953, %v3952
        %v3962 = vpack.c.b16 %v3954, %v3954
        %vm3970 = vcmask 982016
        %v3972 = vsel %vm3970, %v3908, 0
        %v3975 = vsel %vm1164, %v3962, 0
        %3977 = vmatprep.subr.bf16.mxu0 0
        %3978 = vmatpush1.bf16.msra.mxu0 %v3955
        %3979 = vmatprep.subr.bf16.mxu0 0
        %3980 = vmatpush1.bf16.msra.mxu0 %v3956
        %3981 = vmatprep.subr.bf16.mxu0 0
        %3982 = vmatpush1.bf16.msra.mxu0 %v3957
        %3983 = vmatprep.subr.bf16.mxu0 0
        %3984 = vmatpush1.bf16.msra.mxu0 %v3958
        %3985 = vmatprep.subr.bf16.mxu0 0
        %3986 = vmatpush1.bf16.msra.mxu0 %v3959
        %3987 = vmatprep.subr.bf16.mxu0 0
        %3988 = vmatpush1.bf16.msra.mxu0 %v3960
        %3989 = vmatprep.subr.bf16.mxu0 0
        %3990 = vmatpush1.bf16.msra.mxu0 %v3961
        %3991 = vmatprep.subr.bf16.mxu0 0
        %3992 = vmatpush1.bf16.msra.mxu0 %v3975
        %3993 = vmatprep.subr.bf16.mxu0 0
        %3994 = vmatpush1.bf16.msra.mxu0 0
        %3995 = vmatprep.subr.bf16.mxu0 0
        %3996 = vmatpush1.bf16.msra.mxu0 0
        %3997 = vmatprep.subr.bf16.mxu0 0
        %3998 = vmatpush1.bf16.msra.mxu0 0
        %3999 = vmatprep.subr.bf16.mxu0 0
        %4000 = vmatpush1.bf16.msra.mxu0 0
        %4001 = vmatprep.subr.bf16.mxu0 0
        %4002 = vmatpush1.bf16.msra.mxu0 0
        %4003 = vmatprep.subr.bf16.mxu0 0
        %4004 = vmatpush1.bf16.msra.mxu0 0
        %4005 = vmatprep.subr.bf16.mxu0 0
        %4006 = vmatpush1.bf16.msra.mxu0 0
        %4007 = vmatprep.subr.bf16.mxu0 0
        %4008 = vmatpush1.bf16.msra.mxu0 0
        %4009 = vmatprep.mubr.bf16.mxu0 0
        %4010 = vmatmul.mubr.bf16.gmra.mrb[0].mxu0 %v3972
        %v4011 = vpop.f32.mrb[0].mxu0
        %v4012 = vadd.f32 %v3924, %v4011
        %v4013 = vpop.f32.mrb[0].mxu0
        %v4014 = vpop.f32.mrb[0].mxu0
        %v4015 = vpop.f32.mrb[0].mxu0
        %4016 = vdwg.mxu0
        %v4017 = vtanh.pop %v4012
        %v4018 = vpack.c.bf16 %v4017, %v4017
        %v4019 = vld [vmem:[%s13] sm:$0xf]
        %v4020 = vld [vmem:[%s13 + $0x4] sm:$0xf]
        %v4021 = vld [vmem:[%s13 + $0x8] sm:$0xf]
        %v4022 = vld [vmem:[%s13 + $0xc] sm:$0xf]
        %v4023 = vld [vmem:[%s13 + $0x10] sm:$0xf]
        %v4024 = vld [vmem:[%s13 + $0x14] sm:$0xf]
        %v4025 = vld [vmem:[%s13 + $0x18] sm:$0xf]
        %v4026 = vld [vmem:[%s13 + $0x1c] sm:$0xf]
        %v4027 = vld [vmem:[%s13 + $0x20] sm:$0xf]
        %v4028 = vld [vmem:[%s13 + $0x24] sm:$0xf]
        %v4029 = vld [vmem:[%s13 + $0x28] sm:$0x3]
        %v4030 = vld [vmem:[%s14] sm:$0x1]
        %v4042 = vunpack.c.l.b16 %v4019
        %v4043 = vunpack.c.l.b16 %v4020
        %v4044 = vunpack.c.l.b16 %v4021
        %v4045 = vunpack.c.l.b16 %v4022
        %v4046 = vunpack.c.l.b16 %v4023
        %v4047 = vunpack.c.l.b16 %v4024
        %v4048 = vunpack.c.l.b16 %v4025
        %v4049 = vunpack.c.l.b16 %v4026
        %v4050 = vunpack.c.l.b16 %v4027
        %v4051 = vunpack.c.l.b16 %v4028
        %v4052 = vunpack.c.l.b16 %v4029
        %v4053 = vpack.c.b16 %v4043, %v4042
        %v4054 = vpack.c.b16 %v4045, %v4044
        %v4055 = vpack.c.b16 %v4047, %v4046
        %v4056 = vpack.c.b16 %v4049, %v4048
        %v4057 = vpack.c.b16 %v4051, %v4050
        %v4058 = vpack.c.b16 %v4052, %v4052
        %vm4064 = vcmask 687104
        %v4066 = vsel %vm4064, %v4018, 0
        %vm4068 = vcmask 1041408
        %v4070 = vsel %vm4068, %v4058, 0
        %4072 = vmatprep.subr.bf16.mxu0 0
        %4073 = vmatpush1.bf16.msra.mxu0 %v4053
        %4074 = vmatprep.subr.bf16.mxu0 0
        %4075 = vmatpush1.bf16.msra.mxu0 %v4054
        %4076 = vmatprep.subr.bf16.mxu0 0
        %4077 = vmatpush1.bf16.msra.mxu0 %v4055
        %4078 = vmatprep.subr.bf16.mxu0 0
        %4079 = vmatpush1.bf16.msra.mxu0 %v4056
        %4080 = vmatprep.subr.bf16.mxu0 0
        %4081 = vmatpush1.bf16.msra.mxu0 %v4057
        %4082 = vmatprep.subr.bf16.mxu0 0
        %4083 = vmatpush1.bf16.msra.mxu0 %v4070
        %4084 = vmatprep.subr.bf16.mxu0 0
        %4085 = vmatpush1.bf16.msra.mxu0 0
        %4086 = vmatprep.subr.bf16.mxu0 0
        %4087 = vmatpush1.bf16.msra.mxu0 0
        %4088 = vmatprep.subr.bf16.mxu0 0
        %4089 = vmatpush1.bf16.msra.mxu0 0
        %4090 = vmatprep.subr.bf16.mxu0 0
        %4091 = vmatpush1.bf16.msra.mxu0 0
        %4092 = vmatprep.subr.bf16.mxu0 0
        %4093 = vmatpush1.bf16.msra.mxu0 0
        %4094 = vmatprep.subr.bf16.mxu0 0
        %4095 = vmatpush1.bf16.msra.mxu0 0
        %4096 = vmatprep.subr.bf16.mxu0 0
        %4097 = vmatpush1.bf16.msra.mxu0 0
        %4098 = vmatprep.subr.bf16.mxu0 0
        %4099 = vmatpush1.bf16.msra.mxu0 0
        %4100 = vmatprep.subr.bf16.mxu0 0
        %4101 = vmatpush1.bf16.msra.mxu0 0
        %4102 = vmatprep.subr.bf16.mxu0 0
        %4103 = vmatpush1.bf16.msra.mxu0 0
        %4104 = vmatprep.mubr.bf16.mxu0 0
        %4105 = vmatmul.mubr.bf16.gmra.mrb[0].mxu0 %v4066
        %v4106 = vpop.f32.mrb[0].mxu0
        %v4107 = vadd.f32 %v4030, %v4106
        %v4108 = vpop.f32.mrb[0].mxu0
        %v4109 = vpop.f32.mrb[0].mxu0
        %v4110 = vpop.f32.mrb[0].mxu0
        %4111 = vdwg.mxu0
        %vm4112 = vcmask 73728
        %4113 = vst.msk [vmem:[%s486] sm:$0x1] %vm4112, %v4107
        %s4114 = sand.u32 %s357, 1
        %s4115 = scalar_lea.sflag [#allocation3], %s4114
        %s4116 = sand.u32 %s357, 1
        %s4117 = scalar_lea.vmem [#allocation2], %s4116
        // Predicated region
        $region81: #{lenet5_forward.1} parent=79 // pred_check
          %p4118 = pneg %p367
        $region82: #{lenet5_forward.1} parent=79 // pred_check_branch
          %4120 = sbr.rel (%p4118) target = $region84
        $region83: #{lenet5_forward.1} parent=79 // pred_region
          %s4122 = ssub.s32 16, 16
          %4123 = vsyncadd %s4115, %s4122
          %s4124 = smul.addr %s29, 16
          %s4125 = scalar_lea.hbm %s15, %s4124
          %s4127 = sshll.u32 %s4117, 4
          %s4128 = int_to_ptr.vmem [resolvable:$true] %s4127
          %4130 = dma.vmem_to_hbm [thread:$0]  %s4128, 16, %s4125, %s4115
        $region84: #{lenet5_forward.1} parent=79 // pred_fallthru
          _
      $region80: #{lenet5_forward.1} parent=5 // pred_fallthru
        _
      %p4131 = scmp.le.s32.totalorder 2, %s24
      // Predicated region
      $region85: #{lenet5_forward.1} parent=5 // pred_check
        %p4132 = pneg %p4131
      $region86: #{lenet5_forward.1} parent=5 // pred_check_branch
        %4134 = sbr.rel (%p4132) target = $region88
      $region87: #{lenet5_forward.1} parent=5 // pred_region
        %s4135 = ssub.s32 %s24, 2
        // Predicated region
        $region89: #{lenet5_forward.1} parent=87 // pred_check
          %p4136 = pneg %p373
        $region90: #{lenet5_forward.1} parent=87 // pred_check_branch
          %4138 = sbr.rel (%p4136) target = $region92
        $region91: #{lenet5_forward.1} parent=87 // pred_region
          %s4139 = sand.u32 %s358, 1
          %s4140 = scalar_lea.sflag [#allocation3], %s4139
          %s4141 = sand.u32 %s358, 1
          %s4142 = scalar_lea.vmem [#allocation2], %s4141
          %4143 = dma.done %s4140, 16
        $region92: #{lenet5_forward.1} parent=87 // pred_fallthru
          _
      $region88: #{lenet5_forward.1} parent=5 // pred_fallthru
        _
    $region6: #{lenet5_forward.1} parent=1 // loop_footer
      %s28 = sadd.s32 1, %s24
    $region7: #{lenet5_forward.1} parent=1 // loop_footer_branch
      %23 = sbr.rel target = $region3
    $region8: #{lenet5_forward.1} parent=1 // loop_exit
      _
    %4144 = vsyncpa [#allocation3], 1
    %s4145 = scalar_lea.sflag [#allocation3], 1
    %4146 = vsyncpa %s4145, 1

</llo_original>
